<compile_context>
chip_gen: v5e
topology: v5e:2x2
jax: 0.10.0
libtpu: 0.0.40
codegen_flags: <defaults>
</compile_context>

<pallas_src>
import math
from functools import partial

import numpy as np
import jax
import jax.numpy as jnp
from jax import lax
from jax.experimental import pallas as pl
from jax.experimental.pallas import tpu as pltpu

MAX_WINDOW_SIZE = 8          # matches WindowAttention.max_window_size
TOKENS_PER_GROUP = 128       # tokens per grid step; keeps grid extent >= 2 at demo shapes
                             # so both v7x TensorCores get work (raise on single-TC chips)


# --------------------------------------------------------------------------------------
# Shared helpers (work on both numpy and jax arrays)
# --------------------------------------------------------------------------------------
def _window_partition(x, ws):
    B, H, W, C = x.shape
    x = x.reshape(B, H // ws, ws, W // ws, ws, C)
    return x.transpose(0, 1, 3, 2, 4, 5).reshape(-1, ws, ws, C)


def _window_reverse(windows, ws, H, W):
    B = windows.shape[0] // ((H // ws) * (W // ws))
    x = windows.reshape(B, H // ws, W // ws, ws, ws, -1)
    return x.transpose(0, 1, 3, 2, 4, 5).reshape(B, H, W, -1)


def _relative_position_index(ws, max_ws):
    coords = np.stack(np.meshgrid(np.arange(ws), np.arange(ws), indexing="ij"))
    cf = coords.reshape(2, -1)
    rel = (cf[:, :, None] - cf[:, None, :]).transpose(1, 2, 0).astype(np.int64)
    rel[:, :, 0] += max_ws - 1
    rel[:, :, 1] += max_ws - 1
    rel[:, :, 0] *= 2 * max_ws - 1
    return rel.sum(-1)  # (N, N)


def _shift_attn_mask(H, W, ws, shift):
    """Shifted-window attention mask, identical to the PyTorch construction (numpy, static)."""
    nW = (H // ws) * (W // ws)
    N = ws * ws
    if shift == 0:
        return np.zeros((nW, N, N), np.float32)
    img = np.zeros((1, H, W, 1), np.float32)
    cnt = 0
    for hs in (slice(0, -ws), slice(-ws, -shift), slice(-shift, None)):
        for wsl in (slice(0, -ws), slice(-ws, -shift), slice(-shift, None)):
            img[:, hs, wsl, :] = cnt
            cnt += 1
    mw = _window_partition(img, ws).reshape(-1, N)
    diff = mw[:, None, :] - mw[:, :, None]
    return np.where(diff != 0, -100.0, 0.0).astype(np.float32)


def _gelu_tanh(x):
    # TODO(synk): PyTorch nn.GELU() defaults to the erf form; tanh approximation differs by <1e-3.
    c = math.sqrt(2.0 / math.pi)
    return 0.5 * x * (1.0 + jnp.tanh(c * (x + 0.044715 * x * x * x)))


# --------------------------------------------------------------------------------------
# Fused Swin block kernel (transposed (C, T) activation layout)
# --------------------------------------------------------------------------------------
def swin_block_kernel(xT_ref, ln1g_ref, ln1b_ref, wqkvT_ref, bqkv_ref,
                      wprojT_ref, bproj_ref, rel_ref, mask_ref,
                      ln2g_ref, ln2b_ref, w1T_ref, b1_ref, w2T_ref, b2_ref,
                      o_ref, *, num_heads):
    C, T = xT_ref.shape                       # (32, 128) at demo shapes
    Dh = C // num_heads

    x = xT_ref[...]                           # (C, T) f32 — residual shortcut

    # ---- LayerNorm 1 (channel axis = sublanes, all 128 lanes dense) ----
    mu = jnp.mean(x, axis=0, keepdims=True)
    xc = x - mu
    var = jnp.mean(xc * xc, axis=0, keepdims=True)
    xn = xc * lax.rsqrt(var + 1e-5) * ln1g_ref[...] + ln1b_ref[...]

    # ---- fused QKV^T: (3C, C) @ (C, T) -> (3C, T); q rows carry the 1/sqrt(Dh) scale ----
    qkvT = jnp.dot(wqkvT_ref[...], xn.astype(jnp.bfloat16),
                   preferred_element_type=jnp.float32) + bqkv_ref[...]

    mask = mask_ref[0]                        # (T, T): cross-window -1e9 + shift mask

    # ---- full-group block-diagonal attention: one (T,T) matmul pair per head ----
    heads = []
    for h in range(num_heads):
        q = qkvT[0 * C + h * Dh:0 * C + (h + 1) * Dh, :].astype(jnp.bfloat16)   # (Dh, T)
        k = qkvT[1 * C + h * Dh:1 * C + (h + 1) * Dh, :].astype(jnp.bfloat16)
        v = qkvT[2 * C + h * Dh:2 * C + (h + 1) * Dh, :].astype(jnp.bfloat16)

        # S[n, m] = sum_d q[d, n] * k[d, m]            (TN matmul -> (T, T))
        s = lax.dot_general(q, k, (((0,), (0,)), ((), ())),
                            preferred_element_type=jnp.float32)
        s = s + rel_ref[h] + mask             # mask added BEFORE row-max subtraction

        m = jnp.max(s, axis=-1, keepdims=True)
        p = jnp.exp(s - m)                    # cross-window logits underflow to exactly 0
        denom = jnp.sum(p, axis=-1, keepdims=True)
        p = (p * pl.reciprocal(denom, approx=True)).astype(jnp.bfloat16)

        # o^T[d, n] = sum_m v[d, m] * p[n, m]          (NT matmul -> (Dh, T))
        heads.append(lax.dot_general(v, p, (((1,), (1,)), ((), ())),
                                     preferred_element_type=jnp.float32))

    oT = jnp.concatenate(heads, axis=0).astype(jnp.bfloat16)        # (C, T) sublane concat

    # ---- single output projection + residual 1 ----
    attnT = jnp.dot(wprojT_ref[...], oT, preferred_element_type=jnp.float32)
    # TODO(synk): nn.Dropout(p=0.0) layers are identities and are omitted.
    x1 = x + attnT + bproj_ref[...]

    # ---- LayerNorm 2 ----
    mu2 = jnp.mean(x1, axis=0, keepdims=True)
    xc2 = x1 - mu2
    var2 = jnp.mean(xc2 * xc2, axis=0, keepdims=True)
    x2n = xc2 * lax.rsqrt(var2 + 1e-5) * ln2g_ref[...] + ln2b_ref[...]

    # ---- MLP (kept in the transposed (. , T) orientation) ----
    h1 = jnp.dot(w1T_ref[...], x2n.astype(jnp.bfloat16),
                 preferred_element_type=jnp.float32) + b1_ref[...]
    g = _gelu_tanh(h1)
    h2 = jnp.dot(w2T_ref[...], g.astype(jnp.bfloat16),
                 preferred_element_type=jnp.float32) + b2_ref[...]

    o_ref[...] = (x1 + h2).astype(o_ref.dtype)                      # lane-dense (C, 128) store


# --------------------------------------------------------------------------------------
# One-time parameter preparation (weight re-layout, bf16 casts, scale folding, bias tiling)
# --------------------------------------------------------------------------------------
def prepare_block_params(p, *, num_heads, ws, H, W, B, shift, tokens_per_group):
    C = p["w_qkv"].shape[0]
    F = p["w1"].shape[1]
    Dh = C // num_heads
    N = ws * ws
    GT = tokens_per_group
    assert GT % N == 0
    wg = GT // N
    nW = (H // ws) * (W // ws)
    Wtot = B * nW
    assert (Wtot * N) % GT == 0
    n_groups = (Wtot * N) // GT

    scale = Dh ** -0.5
    qscale = jnp.concatenate([jnp.full((C,), scale, jnp.float32),
                              jnp.ones((2 * C,), jnp.float32)])

    out = {
        "wqkvT": (p["w_qkv"].T * qscale[:, None]).astype(jnp.bfloat16),   # (3C, C)
        "bqkv": (p["b_qkv"] * qscale).reshape(3 * C, 1),
        "wprojT": p["w_proj"].T.astype(jnp.bfloat16),                     # (C, C)
        "bproj": p["b_proj"].reshape(C, 1),
        "w1T": p["w1"].T.astype(jnp.bfloat16),                            # (F, C)
        "b1": p["b1"].reshape(F, 1),
        "w2T": p["w2"].T.astype(jnp.bfloat16),                            # (C, F)
        "b2": p["b2"].reshape(C, 1),
        "ln1g": p["ln1_g"].reshape(C, 1), "ln1b": p["ln1_b"].reshape(C, 1),
        "ln2g": p["ln2_g"].reshape(C, 1), "ln2b": p["ln2_b"].reshape(C, 1),
    }

    # relative-position bias tiled over the wg x wg window blocks of a token group
    rel_idx = _relative_position_index(ws, MAX_WINDOW_SIZE).reshape(-1)
    rel_bias = p["rel_table"][rel_idx].reshape(N, N, num_heads).transpose(2, 0, 1)  # (H,N,N)
    out["rel"] = jnp.tile(rel_bias, (1, wg, wg)).astype(jnp.float32)                # (H,GT,GT)

    # per-group additive mask: -1e9 off the window diagonal + the shifted-window mask
    sm = np.tile(_shift_attn_mask(H, W, ws, shift), (B, 1, 1))                      # (Wtot,N,N)
    mask = np.full((n_groups, GT, GT), -1e9, np.float32)
    for g in range(n_groups):
        for j in range(wg):
            mask[g, j * N:(j + 1) * N, j * N:(j + 1) * N] = sm[g * wg + j]
    out["mask"] = jnp.asarray(mask)
    return out


# --------------------------------------------------------------------------------------
# Wrapper: one Swin block (shift / window partition / reverse stay in XLA)
# --------------------------------------------------------------------------------------
def swin_block_pallas(x, pp, H, W, ws, shift, num_heads):
    B, L, C = x.shape
    N = ws * ws
    F = pp["w1T"].shape[0]
    GT = TOKENS_PER_GROUP

    # ---- cyclic shift + window partition (tiny data movement) ----
    xs = x.reshape(B, H, W, C)
    if shift > 0:
        xs = jnp.roll(xs, (-shift, -shift), axis=(1, 2))
    xw = _window_partition(xs, ws).reshape(-1, N, C)       # (Wtot, N, C)
    Wtot = xw.shape[0]
    T = Wtot * N
    assert T % GT == 0, f"total tokens {T} must be a multiple of {GT}"
    n_groups = T // GT
    assert pp["mask"].shape[0] == n_groups
    xT = xw.reshape(T, C).T                                 # (C, T) lane-dense kernel input

    flops = T * (2 * C * 3 * C + 2 * C * C + 4 * C * F + 4 * GT * C)
    transcendentals = num_heads * T * GT + T * F + num_heads * T
    operands = (xT, pp["ln1g"], pp["ln1b"], pp["wqkvT"], pp["bqkv"],
                pp["wprojT"], pp["bproj"], pp["rel"], pp["mask"],
                pp["ln2g"], pp["ln2b"], pp["w1T"], pp["b1"], pp["w2T"], pp["b2"])
    bytes_accessed = int(sum(int(np.prod(a.shape)) * a.dtype.itemsize for a in operands)
                         + T * C * 4)

    c2 = lambda g: (0, 0)
    c3 = lambda g: (0, 0, 0)
    outT = pl.pallas_call(
        partial(swin_block_kernel, num_heads=num_heads),
        out_shape=jax.ShapeDtypeStruct((C, T), jnp.float32),
        grid=(n_groups,),
        in_specs=[
            pl.BlockSpec((C, GT), lambda g: (0, g)),                  # x^T tokens
            pl.BlockSpec((C, 1), c2), pl.BlockSpec((C, 1), c2),       # LN1 gamma/beta
            pl.BlockSpec((3 * C, C), c2),                             # fused W_qkv^T (q scaled)
            pl.BlockSpec((3 * C, 1), c2),                             # b_qkv (q scaled)
            pl.BlockSpec((C, C), c2),                                 # W_proj^T
            pl.BlockSpec((C, 1), c2),                                 # b_proj
            pl.BlockSpec((num_heads, GT, GT), c3),                    # rel-pos bias (constant)
            pl.BlockSpec((1, GT, GT), lambda g: (g, 0, 0)),           # per-group mask
            pl.BlockSpec((C, 1), c2), pl.BlockSpec((C, 1), c2),       # LN2 gamma/beta
            pl.BlockSpec((F, C), c2), pl.BlockSpec((F, 1), c2),       # MLP fc1^T
            pl.BlockSpec((C, F), c2), pl.BlockSpec((C, 1), c2),       # MLP fc2^T
        ],
        out_specs=pl.BlockSpec((C, GT), lambda g: (0, g)),            # lane-dense (C, 128)
        compiler_params=pltpu.CompilerParams(dimension_semantics=("parallel",)),
        cost_estimate=pl.CostEstimate(flops=int(flops),
                                      transcendentals=int(transcendentals),
                                      bytes_accessed=bytes_accessed),
    )(*operands)

    # ---- window reverse + undo cyclic shift ----
    y = outT.T.reshape(Wtot, ws, ws, C)
    y = _window_reverse(y, ws, H, W)
    if shift > 0:
        y = jnp.roll(y, (shift, shift), axis=(1, 2))
    return y.reshape(B, L, C)


def swin_stage_pallas(x, prepared, H, W, ws, num_heads):
    for i, pp in enumerate(prepared):
        shift = 0 if i % 2 == 0 else ws // 2
        x = swin_block_pallas(x, pp, H, W, ws, shift, num_heads)
    return x


# --------------------------------------------------------------------------------------
# Pure-JAX (f32) reference mirroring the PyTorch SwinTransformerStage forward
# --------------------------------------------------------------------------------------
def _layernorm(x, g, b, eps=1e-5):
    mu = jnp.mean(x, axis=-1, keepdims=True)
    var = jnp.mean((x - mu) ** 2, axis=-1, keepdims=True)
    return (x - mu) * lax.rsqrt(var + eps) * g + b


def swin_block_ref(x, p, H, W, ws, shift, num_heads):
    B, L, C = x.shape
    N = ws * ws
    Dh = C // num_heads
    shortcut = x
    xn = _layernorm(x, p["ln1_g"], p["ln1_b"])
    xs = xn.reshape(B, H, W, C)
    if shift > 0:
        xs = jnp.roll(xs, (-shift, -shift), axis=(1, 2))
    xw = _window_partition(xs, ws).reshape(-1, N, C)
    Bw = xw.shape[0]
    qkv = xw @ p["w_qkv"] + p["b_qkv"]
    qkv = qkv.reshape(Bw, N, 3, num_heads, Dh).transpose(2, 0, 3, 1, 4)
    q, k, v = qkv[0] * (Dh ** -0.5), qkv[1], qkv[2]
    attn = jnp.einsum("bhnd,bhmd->bhnm", q, k)
    rel_idx = _relative_position_index(ws, MAX_WINDOW_SIZE).reshape(-1)
    rel_bias = p["rel_table"][rel_idx].reshape(N, N, num_heads).transpose(2, 0, 1)
    attn = attn + rel_bias[None]
    if shift > 0:
        mask = jnp.asarray(_shift_attn_mask(H, W, ws, shift))
        nW = mask.shape[0]
        attn = attn.reshape(Bw // nW, nW, num_heads, N, N) + mask[None, :, None]
        attn = attn.reshape(Bw, num_heads, N, N)
    attn = jax.nn.softmax(attn, axis=-1)
    out = jnp.einsum("bhnm,bhmd->bhnd", attn, v).transpose(0, 2, 1, 3).reshape(Bw, N, C)
    out = out @ p["w_proj"] + p["b_proj"]
    out = _window_reverse(out.reshape(Bw, ws, ws, C), ws, H, W)
    if shift > 0:
        out = jnp.roll(out, (shift, shift), axis=(1, 2))
    x = shortcut + out.reshape(B, L, C)
    xn2 = _layernorm(x, p["ln2_g"], p["ln2_b"])
    h = _gelu_tanh(xn2 @ p["w1"] + p["b1"])
    return x + (h @ p["w2"] + p["b2"])


def swin_stage_ref(x, params, H, W, ws, num_heads):
    for i, p in enumerate(params):
        shift = 0 if i % 2 == 0 else ws // 2
        x = swin_block_ref(x, p, H, W, ws, shift, num_heads)
    return x


# --------------------------------------------------------------------------------------
# Parameter construction (PyTorch default inits) and demo
# --------------------------------------------------------------------------------------
def init_block_params(key, dim, num_heads, mlp_ratio):
    F = int(dim * mlp_ratio)
    ks = jax.random.split(key, 9)

    def linear(kw, kb, fin, fout):
        bound = 1.0 / math.sqrt(fin)
        w = jax.random.uniform(kw, (fin, fout), jnp.float32, -bound, bound)
        b = jax.random.uniform(kb, (fout,), jnp.float32, -bound, bound)
        return w, b

    w_qkv, b_qkv = linear(ks[0], ks[1], dim, 3 * dim)
    w_proj, b_proj = linear(ks[2], ks[3], dim, dim)
    w1, b1 = linear(ks[4], ks[5], dim, F)
    w2, b2 = linear(ks[6], ks[7], F, dim)
    M = MAX_WINDOW_SIZE
    rel_table = 0.02 * jax.random.truncated_normal(
        ks[8], -2.0, 2.0, ((2 * M - 1) * (2 * M - 1), num_heads), jnp.float32)
    return dict(ln1_g=jnp.ones((dim,), jnp.float32), ln1_b=jnp.zeros((dim,), jnp.float32),
                ln2_g=jnp.ones((dim,), jnp.float32), ln2_b=jnp.zeros((dim,), jnp.float32),
                w_qkv=w_qkv, b_qkv=b_qkv, w_proj=w_proj, b_proj=b_proj,
                rel_table=rel_table, w1=w1, b1=b1, w2=w2, b2=b2)


if __name__ == "__main__":
    DIM, NUM_HEADS, WINDOW_SIZE, DEPTH, MLP_RATIO = 32, 4, 4, 2, 4.0
    B, Himg, Wimg = 4, 8, 8          # 4 images of 8x8 tokens -> 16 windows of 16 tokens
    L = Himg * Wimg

    key = jax.random.PRNGKey(0)
    keys = jax.random.split(key, DEPTH + 1)
    x = jax.random.normal(keys[0], (B, L, DIM), jnp.float32)
    params = [init_block_params(keys[1 + i], DIM, NUM_HEADS, MLP_RATIO) for i in range(DEPTH)]

    # Kernel-layout parameters prepared once (review item: hoist re-layout/casts out of forward).
    prepared = [
        prepare_block_params(p, num_heads=NUM_HEADS, ws=WINDOW_SIZE, H=Himg, W=Wimg, B=B,
                             shift=(0 if i % 2 == 0 else WINDOW_SIZE // 2),
                             tokens_per_group=TOKENS_PER_GROUP)
        for i, p in enumerate(params)
    ]

    run = jax.jit(partial(swin_stage_pallas, H=Himg, W=Wimg, ws=WINDOW_SIZE,
                          num_heads=NUM_HEADS))
    out = jax.block_until_ready(run(x, prepared))

    ref = swin_stage_ref(x, params, Himg, Wimg, WINDOW_SIZE, NUM_HEADS)
    assert out.shape == (B, L, DIM)
    # Tolerance loosened because the kernel uses bf16 MXU operands (f32 accumulation)
    # and the EUP approximate reciprocal, while the reference is pure f32.
    assert jnp.allclose(out, ref, atol=5e-2, rtol=5e-2), (
        f"mismatch vs reference (max abs err {float(jnp.max(jnp.abs(out - ref)))})")
    print("KERNEL_OK")
</pallas_src>

<mosaic_0001>
module attributes {stable_mosaic.version = 11 : i64} {
  func.func @swin_block_kernel(%arg0: i32, %arg1: memref<32x128xf32, #tpu.memory_space<vmem>>, %arg2: memref<32x1xf32, #tpu.memory_space<vmem>>, %arg3: memref<32x1xf32, #tpu.memory_space<vmem>>, %arg4: memref<96x32xbf16, #tpu.memory_space<vmem>>, %arg5: memref<96x1xf32, #tpu.memory_space<vmem>>, %arg6: memref<32x32xbf16, #tpu.memory_space<vmem>>, %arg7: memref<32x1xf32, #tpu.memory_space<vmem>>, %arg8: memref<4x128x128xf32, #tpu.memory_space<vmem>>, %arg9: memref<1x128x128xf32, #tpu.memory_space<vmem>>, %arg10: memref<32x1xf32, #tpu.memory_space<vmem>>, %arg11: memref<32x1xf32, #tpu.memory_space<vmem>>, %arg12: memref<128x32xbf16, #tpu.memory_space<vmem>>, %arg13: memref<128x1xf32, #tpu.memory_space<vmem>>, %arg14: memref<32x128xbf16, #tpu.memory_space<vmem>>, %arg15: memref<32x1xf32, #tpu.memory_space<vmem>>, %arg16: memref<32x128xf32, #tpu.memory_space<vmem>>) attributes {dimension_semantics = [#tpu.dimension_semantics<parallel>], iteration_bounds = array<i64: 2>, scalar_prefetch = 0 : i64, scratch_operands = 0 : i64, tpu.core_type = #tpu.core_type<tc>, window_params = [{transform_indices = @transform_0, window_bounds = array<i64: 32, 128>}, {pipeline_mode = #tpu.pipeline_mode<synchronous>, transform_indices = @transform_1, window_bounds = array<i64: 32, 1>}, {pipeline_mode = #tpu.pipeline_mode<synchronous>, transform_indices = @transform_2, window_bounds = array<i64: 32, 1>}, {pipeline_mode = #tpu.pipeline_mode<synchronous>, transform_indices = @transform_3, window_bounds = array<i64: 96, 32>}, {pipeline_mode = #tpu.pipeline_mode<synchronous>, transform_indices = @transform_4, window_bounds = array<i64: 96, 1>}, {pipeline_mode = #tpu.pipeline_mode<synchronous>, transform_indices = @transform_5, window_bounds = array<i64: 32, 32>}, {pipeline_mode = #tpu.pipeline_mode<synchronous>, transform_indices = @transform_6, window_bounds = array<i64: 32, 1>}, {pipeline_mode = #tpu.pipeline_mode<synchronous>, transform_indices = @transform_7, window_bounds = array<i64: 4, 128, 128>}, {transform_indices = @transform_8, window_bounds = array<i64: 1, 128, 128>}, {pipeline_mode = #tpu.pipeline_mode<synchronous>, transform_indices = @transform_9, window_bounds = array<i64: 32, 1>}, {pipeline_mode = #tpu.pipeline_mode<synchronous>, transform_indices = @transform_10, window_bounds = array<i64: 32, 1>}, {pipeline_mode = #tpu.pipeline_mode<synchronous>, transform_indices = @transform_11, window_bounds = array<i64: 128, 32>}, {pipeline_mode = #tpu.pipeline_mode<synchronous>, transform_indices = @transform_12, window_bounds = array<i64: 128, 1>}, {pipeline_mode = #tpu.pipeline_mode<synchronous>, transform_indices = @transform_13, window_bounds = array<i64: 32, 128>}, {pipeline_mode = #tpu.pipeline_mode<synchronous>, transform_indices = @transform_14, window_bounds = array<i64: 32, 1>}, {transform_indices = @transform_15, window_bounds = array<i64: 32, 128>}]} {
    %c0 = arith.constant 0 : index
    %c0_0 = arith.constant 0 : index
    %0 = vector.load %arg1[%c0, %c0_0] : memref<32x128xf32, #tpu.memory_space<vmem>>, vector<32x128xf32>
    %cst = arith.constant dense<0.000000e+00> : vector<128xf32>
    %1 = vector.multi_reduction <add>, %0, %cst [0] : vector<32x128xf32> to vector<128xf32>
    %2 = vector.shape_cast %1 : vector<128xf32> to vector<1x128xf32>
    %cst_1 = arith.constant 3.200000e+01 : f32
    %3 = vector.broadcast %cst_1 : f32 to vector<1x128xf32>
    %4 = arith.divf %2, %3 : vector<1x128xf32>
    %5 = vector.broadcast %4 : vector<1x128xf32> to vector<32x128xf32>
    %6 = arith.subf %0, %5 : vector<32x128xf32>
    %7 = arith.mulf %6, %6 : vector<32x128xf32>
    %cst_2 = arith.constant dense<0.000000e+00> : vector<128xf32>
    %8 = vector.multi_reduction <add>, %7, %cst_2 [0] : vector<32x128xf32> to vector<128xf32>
    %9 = vector.shape_cast %8 : vector<128xf32> to vector<1x128xf32>
    %cst_3 = arith.constant 3.200000e+01 : f32
    %10 = vector.broadcast %cst_3 : f32 to vector<1x128xf32>
    %11 = arith.divf %9, %10 : vector<1x128xf32>
    %cst_4 = arith.constant 9.99999974E-6 : f32
    %12 = vector.broadcast %cst_4 : f32 to vector<1x128xf32>
    %13 = arith.addf %11, %12 : vector<1x128xf32>
    %14 = math.rsqrt %13 : vector<1x128xf32>
    %15 = vector.broadcast %14 : vector<1x128xf32> to vector<32x128xf32>
    %16 = arith.mulf %6, %15 : vector<32x128xf32>
    %c0_5 = arith.constant 0 : index
    %c0_6 = arith.constant 0 : index
    %17 = vector.load %arg2[%c0_5, %c0_6] : memref<32x1xf32, #tpu.memory_space<vmem>>, vector<32x1xf32>
    %18 = vector.broadcast %17 : vector<32x1xf32> to vector<32x128xf32>
    %19 = arith.mulf %16, %18 : vector<32x128xf32>
    %c0_7 = arith.constant 0 : index
    %c0_8 = arith.constant 0 : index
    %20 = vector.load %arg3[%c0_7, %c0_8] : memref<32x1xf32, #tpu.memory_space<vmem>>, vector<32x1xf32>
    %21 = vector.broadcast %20 : vector<32x1xf32> to vector<32x128xf32>
    %22 = arith.addf %19, %21 : vector<32x128xf32>
    %c0_9 = arith.constant 0 : index
    %c0_10 = arith.constant 0 : index
    %23 = vector.load %arg4[%c0_9, %c0_10] : memref<96x32xbf16, #tpu.memory_space<vmem>>, vector<96x32xbf16>
    %24 = arith.truncf %22 : vector<32x128xf32> to vector<32x128xbf16>
    %cst_11 = arith.constant dense<0.000000e+00> : vector<96x128xf32>
    %25 = tpu.matmul %23, %24, %cst_11 {dimension_numbers = #tpu.dot_dimension_numbers<[1], [0], [0], [1], [0, 0, 1, 1], [], []>} : vector<96x32xbf16>, vector<32x128xbf16>, vector<96x128xf32> -> vector<96x128xf32>
    %c0_12 = arith.constant 0 : index
    %c0_13 = arith.constant 0 : index
    %26 = vector.load %arg5[%c0_12, %c0_13] : memref<96x1xf32, #tpu.memory_space<vmem>>, vector<96x1xf32>
    %27 = vector.broadcast %26 : vector<96x1xf32> to vector<96x128xf32>
    %28 = arith.addf %25, %27 : vector<96x128xf32>
    %c0_14 = arith.constant 0 : index
    %c0_15 = arith.constant 0 : index
    %c0_16 = arith.constant 0 : index
    %29 = vector.load %arg9[%c0_14, %c0_15, %c0_16] : memref<1x128x128xf32, #tpu.memory_space<vmem>>, vector<1x128x128xf32>
    %30 = vector.shape_cast %29 : vector<1x128x128xf32> to vector<128x128xf32>
    %31 = vector.extract_strided_slice %28 {offsets = [0, 0], sizes = [8, 128], strides = [1, 1]} : vector<96x128xf32> to vector<8x128xf32>
    %32 = arith.truncf %31 : vector<8x128xf32> to vector<8x128xbf16>
    %33 = vector.extract_strided_slice %28 {offsets = [32, 0], sizes = [8, 128], strides = [1, 1]} : vector<96x128xf32> to vector<8x128xf32>
    %34 = arith.truncf %33 : vector<8x128xf32> to vector<8x128xbf16>
    %35 = vector.extract_strided_slice %28 {offsets = [64, 0], sizes = [8, 128], strides = [1, 1]} : vector<96x128xf32> to vector<8x128xf32>
    %36 = arith.truncf %35 : vector<8x128xf32> to vector<8x128xbf16>
    %cst_17 = arith.constant dense<0.000000e+00> : vector<128x128xf32>
    %37 = tpu.matmul %32, %34, %cst_17 {dimension_numbers = #tpu.dot_dimension_numbers<[0], [0], [1], [1], [0, 1, 1, 1], [], []>} : vector<8x128xbf16>, vector<8x128xbf16>, vector<128x128xf32> -> vector<128x128xf32>
    %c0_18 = arith.constant 0 : index
    %c0_19 = arith.constant 0 : index
    %c0_20 = arith.constant 0 : index
    %38 = vector.load %arg8[%c0_18, %c0_19, %c0_20] : memref<4x128x128xf32, #tpu.memory_space<vmem>>, vector<1x128x128xf32>
    %39 = vector.shape_cast %38 : vector<1x128x128xf32> to vector<128x128xf32>
    %40 = arith.addf %37, %39 : vector<128x128xf32>
    %41 = arith.addf %40, %30 : vector<128x128xf32>
    %cst_21 = arith.constant dense<0xFF800000> : vector<128xf32>
    %42 = vector.multi_reduction <maximumf>, %41, %cst_21 [1] : vector<128x128xf32> to vector<128xf32>
    %43 = vector.shape_cast %42 : vector<128xf32> to vector<128x1xf32>
    %44 = vector.broadcast %43 : vector<128x1xf32> to vector<128x128xf32>
    %45 = arith.subf %41, %44 : vector<128x128xf32>
    %46 = math.exp %45 : vector<128x128xf32>
    %cst_22 = arith.constant dense<0.000000e+00> : vector<128xf32>
    %47 = vector.multi_reduction <add>, %46, %cst_22 [1] : vector<128x128xf32> to vector<128xf32>
    %48 = vector.shape_cast %47 : vector<128xf32> to vector<128x1xf32>
    %49 = tpu.reciprocal %48 {approx = true} : vector<128x1xf32> -> vector<128x1xf32>
    %50 = vector.broadcast %49 : vector<128x1xf32> to vector<128x128xf32>
    %51 = arith.mulf %46, %50 : vector<128x128xf32>
    %52 = arith.truncf %51 : vector<128x128xf32> to vector<128x128xbf16>
    %cst_23 = arith.constant dense<0.000000e+00> : vector<8x128xf32>
    %53 = tpu.matmul %36, %52, %cst_23 {dimension_numbers = #tpu.dot_dimension_numbers<[1], [1], [0], [0], [0, 0, 1, 0], [], []>} : vector<8x128xbf16>, vector<128x128xbf16>, vector<8x128xf32> -> vector<8x128xf32>
    %54 = vector.extract_strided_slice %28 {offsets = [8, 0], sizes = [8, 128], strides = [1, 1]} : vector<96x128xf32> to vector<8x128xf32>
    %55 = arith.truncf %54 : vector<8x128xf32> to vector<8x128xbf16>
    %56 = vector.extract_strided_slice %28 {offsets = [40, 0], sizes = [8, 128], strides = [1, 1]} : vector<96x128xf32> to vector<8x128xf32>
    %57 = arith.truncf %56 : vector<8x128xf32> to vector<8x128xbf16>
    %58 = vector.extract_strided_slice %28 {offsets = [72, 0], sizes = [8, 128], strides = [1, 1]} : vector<96x128xf32> to vector<8x128xf32>
    %59 = arith.truncf %58 : vector<8x128xf32> to vector<8x128xbf16>
    %cst_24 = arith.constant dense<0.000000e+00> : vector<128x128xf32>
    %60 = tpu.matmul %55, %57, %cst_24 {dimension_numbers = #tpu.dot_dimension_numbers<[0], [0], [1], [1], [0, 1, 1, 1], [], []>} : vector<8x128xbf16>, vector<8x128xbf16>, vector<128x128xf32> -> vector<128x128xf32>
    %c1 = arith.constant 1 : index
    %c0_25 = arith.constant 0 : index
    %c0_26 = arith.constant 0 : index
    %61 = vector.load %arg8[%c1, %c0_25, %c0_26] : memref<4x128x128xf32, #tpu.memory_space<vmem>>, vector<1x128x128xf32>
    %62 = vector.shape_cast %61 : vector<1x128x128xf32> to vector<128x128xf32>
    %63 = arith.addf %60, %62 : vector<128x128xf32>
    %64 = arith.addf %63, %30 : vector<128x128xf32>
    %cst_27 = arith.constant dense<0xFF800000> : vector<128xf32>
    %65 = vector.multi_reduction <maximumf>, %64, %cst_27 [1] : vector<128x128xf32> to vector<128xf32>
    %66 = vector.shape_cast %65 : vector<128xf32> to vector<128x1xf32>
    %67 = vector.broadcast %66 : vector<128x1xf32> to vector<128x128xf32>
    %68 = arith.subf %64, %67 : vector<128x128xf32>
    %69 = math.exp %68 : vector<128x128xf32>
    %cst_28 = arith.constant dense<0.000000e+00> : vector<128xf32>
    %70 = vector.multi_reduction <add>, %69, %cst_28 [1] : vector<128x128xf32> to vector<128xf32>
    %71 = vector.shape_cast %70 : vector<128xf32> to vector<128x1xf32>
    %72 = tpu.reciprocal %71 {approx = true} : vector<128x1xf32> -> vector<128x1xf32>
    %73 = vector.broadcast %72 : vector<128x1xf32> to vector<128x128xf32>
    %74 = arith.mulf %69, %73 : vector<128x128xf32>
    %75 = arith.truncf %74 : vector<128x128xf32> to vector<128x128xbf16>
    %cst_29 = arith.constant dense<0.000000e+00> : vector<8x128xf32>
    %76 = tpu.matmul %59, %75, %cst_29 {dimension_numbers = #tpu.dot_dimension_numbers<[1], [1], [0], [0], [0, 0, 1, 0], [], []>} : vector<8x128xbf16>, vector<128x128xbf16>, vector<8x128xf32> -> vector<8x128xf32>
    %77 = vector.extract_strided_slice %28 {offsets = [16, 0], sizes = [8, 128], strides = [1, 1]} : vector<96x128xf32> to vector<8x128xf32>
    %78 = arith.truncf %77 : vector<8x128xf32> to vector<8x128xbf16>
    %79 = vector.extract_strided_slice %28 {offsets = [48, 0], sizes = [8, 128], strides = [1, 1]} : vector<96x128xf32> to vector<8x128xf32>
    %80 = arith.truncf %79 : vector<8x128xf32> to vector<8x128xbf16>
    %81 = vector.extract_strided_slice %28 {offsets = [80, 0], sizes = [8, 128], strides = [1, 1]} : vector<96x128xf32> to vector<8x128xf32>
    %82 = arith.truncf %81 : vector<8x128xf32> to vector<8x128xbf16>
    %cst_30 = arith.constant dense<0.000000e+00> : vector<128x128xf32>
    %83 = tpu.matmul %78, %80, %cst_30 {dimension_numbers = #tpu.dot_dimension_numbers<[0], [0], [1], [1], [0, 1, 1, 1], [], []>} : vector<8x128xbf16>, vector<8x128xbf16>, vector<128x128xf32> -> vector<128x128xf32>
    %c2 = arith.constant 2 : index
    %c0_31 = arith.constant 0 : index
    %c0_32 = arith.constant 0 : index
    %84 = vector.load %arg8[%c2, %c0_31, %c0_32] : memref<4x128x128xf32, #tpu.memory_space<vmem>>, vector<1x128x128xf32>
    %85 = vector.shape_cast %84 : vector<1x128x128xf32> to vector<128x128xf32>
    %86 = arith.addf %83, %85 : vector<128x128xf32>
    %87 = arith.addf %86, %30 : vector<128x128xf32>
    %cst_33 = arith.constant dense<0xFF800000> : vector<128xf32>
    %88 = vector.multi_reduction <maximumf>, %87, %cst_33 [1] : vector<128x128xf32> to vector<128xf32>
    %89 = vector.shape_cast %88 : vector<128xf32> to vector<128x1xf32>
    %90 = vector.broadcast %89 : vector<128x1xf32> to vector<128x128xf32>
    %91 = arith.subf %87, %90 : vector<128x128xf32>
    %92 = math.exp %91 : vector<128x128xf32>
    %cst_34 = arith.constant dense<0.000000e+00> : vector<128xf32>
    %93 = vector.multi_reduction <add>, %92, %cst_34 [1] : vector<128x128xf32> to vector<128xf32>
    %94 = vector.shape_cast %93 : vector<128xf32> to vector<128x1xf32>
    %95 = tpu.reciprocal %94 {approx = true} : vector<128x1xf32> -> vector<128x1xf32>
    %96 = vector.broadcast %95 : vector<128x1xf32> to vector<128x128xf32>
    %97 = arith.mulf %92, %96 : vector<128x128xf32>
    %98 = arith.truncf %97 : vector<128x128xf32> to vector<128x128xbf16>
    %cst_35 = arith.constant dense<0.000000e+00> : vector<8x128xf32>
    %99 = tpu.matmul %82, %98, %cst_35 {dimension_numbers = #tpu.dot_dimension_numbers<[1], [1], [0], [0], [0, 0, 1, 0], [], []>} : vector<8x128xbf16>, vector<128x128xbf16>, vector<8x128xf32> -> vector<8x128xf32>
    %100 = vector.extract_strided_slice %28 {offsets = [24, 0], sizes = [8, 128], strides = [1, 1]} : vector<96x128xf32> to vector<8x128xf32>
    %101 = arith.truncf %100 : vector<8x128xf32> to vector<8x128xbf16>
    %102 = vector.extract_strided_slice %28 {offsets = [56, 0], sizes = [8, 128], strides = [1, 1]} : vector<96x128xf32> to vector<8x128xf32>
    %103 = arith.truncf %102 : vector<8x128xf32> to vector<8x128xbf16>
    %104 = vector.extract_strided_slice %28 {offsets = [88, 0], sizes = [8, 128], strides = [1, 1]} : vector<96x128xf32> to vector<8x128xf32>
    %105 = arith.truncf %104 : vector<8x128xf32> to vector<8x128xbf16>
    %cst_36 = arith.constant dense<0.000000e+00> : vector<128x128xf32>
    %106 = tpu.matmul %101, %103, %cst_36 {dimension_numbers = #tpu.dot_dimension_numbers<[0], [0], [1], [1], [0, 1, 1, 1], [], []>} : vector<8x128xbf16>, vector<8x128xbf16>, vector<128x128xf32> -> vector<128x128xf32>
    %c3 = arith.constant 3 : index
    %c0_37 = arith.constant 0 : index
    %c0_38 = arith.constant 0 : index
    %107 = vector.load %arg8[%c3, %c0_37, %c0_38] : memref<4x128x128xf32, #tpu.memory_space<vmem>>, vector<1x128x128xf32>
    %108 = vector.shape_cast %107 : vector<1x128x128xf32> to vector<128x128xf32>
    %109 = arith.addf %106, %108 : vector<128x128xf32>
    %110 = arith.addf %109, %30 : vector<128x128xf32>
    %cst_39 = arith.constant dense<0xFF800000> : vector<128xf32>
    %111 = vector.multi_reduction <maximumf>, %110, %cst_39 [1] : vector<128x128xf32> to vector<128xf32>
    %112 = vector.shape_cast %111 : vector<128xf32> to vector<128x1xf32>
    %113 = vector.broadcast %112 : vector<128x1xf32> to vector<128x128xf32>
    %114 = arith.subf %110, %113 : vector<128x128xf32>
    %115 = math.exp %114 : vector<128x128xf32>
    %cst_40 = arith.constant dense<0.000000e+00> : vector<128xf32>
    %116 = vector.multi_reduction <add>, %115, %cst_40 [1] : vector<128x128xf32> to vector<128xf32>
    %117 = vector.shape_cast %116 : vector<128xf32> to vector<128x1xf32>
    %118 = tpu.reciprocal %117 {approx = true} : vector<128x1xf32> -> vector<128x1xf32>
    %119 = vector.broadcast %118 : vector<128x1xf32> to vector<128x128xf32>
    %120 = arith.mulf %115, %119 : vector<128x128xf32>
    %121 = arith.truncf %120 : vector<128x128xf32> to vector<128x128xbf16>
    %cst_41 = arith.constant dense<0.000000e+00> : vector<8x128xf32>
    %122 = tpu.matmul %105, %121, %cst_41 {dimension_numbers = #tpu.dot_dimension_numbers<[1], [1], [0], [0], [0, 0, 1, 0], [], []>} : vector<8x128xbf16>, vector<128x128xbf16>, vector<8x128xf32> -> vector<8x128xf32>
    %123 = tpu.concatenate %53, %76, %99, %122 in 0 : vector<8x128xf32>, vector<8x128xf32>, vector<8x128xf32>, vector<8x128xf32> -> vector<32x128xf32>
    %124 = arith.truncf %123 : vector<32x128xf32> to vector<32x128xbf16>
    %c0_42 = arith.constant 0 : index
    %c0_43 = arith.constant 0 : index
    %125 = vector.load %arg6[%c0_42, %c0_43] : memref<32x32xbf16, #tpu.memory_space<vmem>>, vector<32x32xbf16>
    %cst_44 = arith.constant dense<0.000000e+00> : vector<32x128xf32>
    %126 = tpu.matmul %125, %124, %cst_44 {dimension_numbers = #tpu.dot_dimension_numbers<[1], [0], [0], [1], [0, 0, 1, 1], [], []>} : vector<32x32xbf16>, vector<32x128xbf16>, vector<32x128xf32> -> vector<32x128xf32>
    %127 = arith.addf %0, %126 : vector<32x128xf32>
    %c0_45 = arith.constant 0 : index
    %c0_46 = arith.constant 0 : index
    %128 = vector.load %arg7[%c0_45, %c0_46] : memref<32x1xf32, #tpu.memory_space<vmem>>, vector<32x1xf32>
    %129 = vector.broadcast %128 : vector<32x1xf32> to vector<32x128xf32>
    %130 = arith.addf %127, %129 : vector<32x128xf32>
    %cst_47 = arith.constant dense<0.000000e+00> : vector<128xf32>
    %131 = vector.multi_reduction <add>, %130, %cst_47 [0] : vector<32x128xf32> to vector<128xf32>
    %132 = vector.shape_cast %131 : vector<128xf32> to vector<1x128xf32>
    %cst_48 = arith.constant 3.200000e+01 : f32
    %133 = vector.broadcast %cst_48 : f32 to vector<1x128xf32>
    %134 = arith.divf %132, %133 : vector<1x128xf32>
    %135 = vector.broadcast %134 : vector<1x128xf32> to vector<32x128xf32>
    %136 = arith.subf %130, %135 : vector<32x128xf32>
    %137 = arith.mulf %136, %136 : vector<32x128xf32>
    %cst_49 = arith.constant dense<0.000000e+00> : vector<128xf32>
    %138 = vector.multi_reduction <add>, %137, %cst_49 [0] : vector<32x128xf32> to vector<128xf32>
    %139 = vector.shape_cast %138 : vector<128xf32> to vector<1x128xf32>
    %cst_50 = arith.constant 3.200000e+01 : f32
    %140 = vector.broadcast %cst_50 : f32 to vector<1x128xf32>
    %141 = arith.divf %139, %140 : vector<1x128xf32>
    %cst_51 = arith.constant 9.99999974E-6 : f32
    %142 = vector.broadcast %cst_51 : f32 to vector<1x128xf32>
    %143 = arith.addf %141, %142 : vector<1x128xf32>
    %144 = math.rsqrt %143 : vector<1x128xf32>
    %145 = vector.broadcast %144 : vector<1x128xf32> to vector<32x128xf32>
    %146 = arith.mulf %136, %145 : vector<32x128xf32>
    %c0_52 = arith.constant 0 : index
    %c0_53 = arith.constant 0 : index
    %147 = vector.load %arg10[%c0_52, %c0_53] : memref<32x1xf32, #tpu.memory_space<vmem>>, vector<32x1xf32>
    %148 = vector.broadcast %147 : vector<32x1xf32> to vector<32x128xf32>
    %149 = arith.mulf %146, %148 : vector<32x128xf32>
    %c0_54 = arith.constant 0 : index
    %c0_55 = arith.constant 0 : index
    %150 = vector.load %arg11[%c0_54, %c0_55] : memref<32x1xf32, #tpu.memory_space<vmem>>, vector<32x1xf32>
    %151 = vector.broadcast %150 : vector<32x1xf32> to vector<32x128xf32>
    %152 = arith.addf %149, %151 : vector<32x128xf32>
    %c0_56 = arith.constant 0 : index
    %c0_57 = arith.constant 0 : index
    %153 = vector.load %arg12[%c0_56, %c0_57] : memref<128x32xbf16, #tpu.memory_space<vmem>>, vector<128x32xbf16>
    %154 = arith.truncf %152 : vector<32x128xf32> to vector<32x128xbf16>
    %cst_58 = arith.constant dense<0.000000e+00> : vector<128x128xf32>
    %155 = tpu.matmul %153, %154, %cst_58 {dimension_numbers = #tpu.dot_dimension_numbers<[1], [0], [0], [1], [0, 0, 1, 1], [], []>} : vector<128x32xbf16>, vector<32x128xbf16>, vector<128x128xf32> -> vector<128x128xf32>
    %c0_59 = arith.constant 0 : index
    %c0_60 = arith.constant 0 : index
    %156 = vector.load %arg13[%c0_59, %c0_60] : memref<128x1xf32, #tpu.memory_space<vmem>>, vector<128x1xf32>
    %157 = vector.broadcast %156 : vector<128x1xf32> to vector<128x128xf32>
    %158 = arith.addf %155, %157 : vector<128x128xf32>
    %cst_61 = arith.constant 5.000000e-01 : f32
    %159 = vector.broadcast %cst_61 : f32 to vector<128x128xf32>
    %160 = arith.mulf %159, %158 : vector<128x128xf32>
    %cst_62 = arith.constant 4.471500e-02 : f32
    %161 = vector.broadcast %cst_62 : f32 to vector<128x128xf32>
    %162 = arith.mulf %161, %158 : vector<128x128xf32>
    %163 = arith.mulf %162, %158 : vector<128x128xf32>
    %164 = arith.mulf %163, %158 : vector<128x128xf32>
    %165 = arith.addf %158, %164 : vector<128x128xf32>
    %cst_63 = arith.constant 0.797884583 : f32
    %166 = vector.broadcast %cst_63 : f32 to vector<128x128xf32>
    %167 = arith.mulf %166, %165 : vector<128x128xf32>
    %168 = math.tanh %167 : vector<128x128xf32>
    %cst_64 = arith.constant 1.000000e+00 : f32
    %169 = vector.broadcast %cst_64 : f32 to vector<128x128xf32>
    %170 = arith.addf %169, %168 : vector<128x128xf32>
    %171 = arith.mulf %160, %170 : vector<128x128xf32>
    %c0_65 = arith.constant 0 : index
    %c0_66 = arith.constant 0 : index
    %172 = vector.load %arg14[%c0_65, %c0_66] : memref<32x128xbf16, #tpu.memory_space<vmem>>, vector<32x128xbf16>
    %173 = arith.truncf %171 : vector<128x128xf32> to vector<128x128xbf16>
    %cst_67 = arith.constant dense<0.000000e+00> : vector<32x128xf32>
    %174 = tpu.matmul %172, %173, %cst_67 {dimension_numbers = #tpu.dot_dimension_numbers<[1], [0], [0], [1], [0, 0, 1, 1], [], []>} : vector<32x128xbf16>, vector<128x128xbf16>, vector<32x128xf32> -> vector<32x128xf32>
    %c0_68 = arith.constant 0 : index
    %c0_69 = arith.constant 0 : index
    %175 = vector.load %arg15[%c0_68, %c0_69] : memref<32x1xf32, #tpu.memory_space<vmem>>, vector<32x1xf32>
    %176 = vector.broadcast %175 : vector<32x1xf32> to vector<32x128xf32>
    %177 = arith.addf %174, %176 : vector<32x128xf32>
    %178 = arith.addf %130, %177 : vector<32x128xf32>
    %c0_70 = arith.constant 0 : index
    %c0_71 = arith.constant 0 : index
    %179 = vector.load %arg16[%c0_70, %c0_71] : memref<32x128xf32, #tpu.memory_space<vmem>>, vector<32x128xf32>
    tpu.vector_store %arg16[%c0_70, %c0_71], %178 {strides = array<i32>} : memref<32x128xf32, #tpu.memory_space<vmem>>, vector<32x128xf32>,
    return
  }
  func.func @transform_0(%arg0: i32) -> (i32, i32) {
    %c0_i32 = arith.constant 0 : i32
    %c0_i32_0 = arith.constant 0 : i32
    return %c0_i32, %arg0 : i32, i32
  }
  func.func @transform_1(%arg0: i32) -> (i32, i32) {
    %c0_i32 = arith.constant 0 : i32
    %c0_i32_0 = arith.constant 0 : i32
    %c0_i32_1 = arith.constant 0 : i32
    return %c0_i32, %c0_i32_0 : i32, i32
  }
  func.func @transform_2(%arg0: i32) -> (i32, i32) {
    %c0_i32 = arith.constant 0 : i32
    %c0_i32_0 = arith.constant 0 : i32
    %c0_i32_1 = arith.constant 0 : i32
    return %c0_i32, %c0_i32_0 : i32, i32
  }
  func.func @transform_3(%arg0: i32) -> (i32, i32) {
    %c0_i32 = arith.constant 0 : i32
    %c0_i32_0 = arith.constant 0 : i32
    %c0_i32_1 = arith.constant 0 : i32
    return %c0_i32, %c0_i32_0 : i32, i32
  }
  func.func @transform_4(%arg0: i32) -> (i32, i32) {
    %c0_i32 = arith.constant 0 : i32
    %c0_i32_0 = arith.constant 0 : i32
    %c0_i32_1 = arith.constant 0 : i32
    return %c0_i32, %c0_i32_0 : i32, i32
  }
  func.func @transform_5(%arg0: i32) -> (i32, i32) {
    %c0_i32 = arith.constant 0 : i32
    %c0_i32_0 = arith.constant 0 : i32
    %c0_i32_1 = arith.constant 0 : i32
    return %c0_i32, %c0_i32_0 : i32, i32
  }
  func.func @transform_6(%arg0: i32) -> (i32, i32) {
    %c0_i32 = arith.constant 0 : i32
    %c0_i32_0 = arith.constant 0 : i32
    %c0_i32_1 = arith.constant 0 : i32
    return %c0_i32, %c0_i32_0 : i32, i32
  }
  func.func @transform_7(%arg0: i32) -> (i32, i32, i32) {
    %c0_i32 = arith.constant 0 : i32
    %c0_i32_0 = arith.constant 0 : i32
    %c0_i32_1 = arith.constant 0 : i32
    %c0_i32_2 = arith.constant 0 : i32
    return %c0_i32, %c0_i32_0, %c0_i32_1 : i32, i32, i32
  }
  func.func @transform_8(%arg0: i32) -> (i32, i32, i32) {
    %c0_i32 = arith.constant 0 : i32
    %c0_i32_0 = arith.constant 0 : i32
    %c0_i32_1 = arith.constant 0 : i32
    return %arg0, %c0_i32, %c0_i32_0 : i32, i32, i32
  }
  func.func @transform_9(%arg0: i32) -> (i32, i32) {
    %c0_i32 = arith.constant 0 : i32
    %c0_i32_0 = arith.constant 0 : i32
    %c0_i32_1 = arith.constant 0 : i32
    return %c0_i32, %c0_i32_0 : i32, i32
  }
  func.func @transform_10(%arg0: i32) -> (i32, i32) {
    %c0_i32 = arith.constant 0 : i32
    %c0_i32_0 = arith.constant 0 : i32
    %c0_i32_1 = arith.constant 0 : i32
    return %c0_i32, %c0_i32_0 : i32, i32
  }
  func.func @transform_11(%arg0: i32) -> (i32, i32) {
    %c0_i32 = arith.constant 0 : i32
    %c0_i32_0 = arith.constant 0 : i32
    %c0_i32_1 = arith.constant 0 : i32
    return %c0_i32, %c0_i32_0 : i32, i32
  }
  func.func @transform_12(%arg0: i32) -> (i32, i32) {
    %c0_i32 = arith.constant 0 : i32
    %c0_i32_0 = arith.constant 0 : i32
    %c0_i32_1 = arith.constant 0 : i32
    return %c0_i32, %c0_i32_0 : i32, i32
  }
  func.func @transform_13(%arg0: i32) -> (i32, i32) {
    %c0_i32 = arith.constant 0 : i32
    %c0_i32_0 = arith.constant 0 : i32
    %c0_i32_1 = arith.constant 0 : i32
    return %c0_i32, %c0_i32_0 : i32, i32
  }
  func.func @transform_14(%arg0: i32) -> (i32, i32) {
    %c0_i32 = arith.constant 0 : i32
    %c0_i32_0 = arith.constant 0 : i32
    %c0_i32_1 = arith.constant 0 : i32
    return %c0_i32, %c0_i32_0 : i32, i32
  }
  func.func @transform_15(%arg0: i32) -> (i32, i32) {
    %c0_i32 = arith.constant 0 : i32
    %c0_i32_0 = arith.constant 0 : i32
    return %c0_i32, %arg0 : i32, i32
  }
}

</mosaic_0001>

<llo_original>
// kernel: swin_stage_pallas.2
$region0: #{swin_stage_pallas.2}
  #allocation0 [shape = 'u32[]', space=smem, size = 0x4, offset = 0x4, fixed_abs, tag = 'smem constant byte address 0x4 - core index']
  #allocation1 [shape = 'u32[72,128]{1,0:T(1,128)}', space=vmem, size = 0x9000, scoped, tag = 'internal scratch']
  %s0 = inlined_call_operand.vmem [shape: f32[32,256], index: 0, kind: input, shape index: {}]
  %s1 = inlined_call_operand.vmem [shape: f32[32,1], index: 1, kind: input, shape index: {}]
  %s2 = inlined_call_operand.vmem [shape: f32[32,1], index: 2, kind: input, shape index: {}]
  %s3 = inlined_call_operand.vmem [shape: bf16[96,32], index: 3, kind: input, shape index: {}]
  %s4 = inlined_call_operand.vmem [shape: f32[96,1], index: 4, kind: input, shape index: {}]
  %s5 = inlined_call_operand.vmem [shape: bf16[32,32], index: 5, kind: input, shape index: {}]
  %s6 = inlined_call_operand.vmem [shape: f32[32,1], index: 6, kind: input, shape index: {}]
  %s7 = inlined_call_operand.vmem [shape: f32[4,128,128], index: 7, kind: input, shape index: {}]
  %s8 = inlined_call_operand.vmem [shape: f32[2,128,128], index: 8, kind: input, shape index: {}]
  %s9 = inlined_call_operand.vmem [shape: f32[32,1], index: 9, kind: input, shape index: {}]
  %s10 = inlined_call_operand.vmem [shape: f32[32,1], index: 10, kind: input, shape index: {}]
  %s11 = inlined_call_operand.vmem [shape: bf16[128,32], index: 11, kind: input, shape index: {}]
  %s12 = inlined_call_operand.vmem [shape: f32[128,1], index: 12, kind: input, shape index: {}]
  %s13 = inlined_call_operand.vmem [shape: bf16[32,128], index: 13, kind: input, shape index: {}]
  %s14 = inlined_call_operand.vmem [shape: f32[32,1], index: 14, kind: input, shape index: {}]
  %s15 = inlined_call_operand.vmem [shape: f32[32,256], index: 15, kind: output, shape index: {}]
  %s16 = sld [smem:[#allocation0]]
  $region165: #{swin_stage_pallas.2} parent=0
    _
  %s18 = ssub.s32 1, %s16
  %s19 = scalar_select 0, %s18, %s16
  $region1: #{swin_stage_pallas.2} parent=0
    #allocation2 [shape = 'u8[32768]{0}', space=vmem, size = 0x8000, scoped, tag = 'input window, operand 0']
    #allocation3 [shape = 'u8[32768]{0}', space=vmem, size = 0x8000, scoped, tag = 'output window, operand 0']
    loop: start=0, step=1, limit=4
    $region2: #{swin_stage_pallas.2} parent=1 // loop_pre_header
      _
    $region3: #{swin_stage_pallas.2} parent=1 // loop_header
      %s21 = sphi 0, %s25
      %p22 = scmp.ge.s32.totalorder %s21, 4
      %s31 = sphi 0, %s33
      %s34 = sphi 0, %s31
      %s35 = sphi 0, %s34
      %s51 = sphi 0, %s35
      %s55 = sphi 0, %s55
      %s57 = sphi 0, %s55
      %s58 = sphi 0, %s57
      %s72 = sphi 0, %s58
      %s76 = sphi 0, %s76
      %s78 = sphi 0, %s76
      %s79 = sphi 0, %s78
      %s93 = sphi 0, %s79
      %s97 = sphi 0, %s97
      %s99 = sphi 0, %s97
      %s100 = sphi 0, %s99
      %s114 = sphi 0, %s100
      %s118 = sphi 0, %s118
      %s120 = sphi 0, %s118
      %s121 = sphi 0, %s120
      %s135 = sphi 0, %s121
      %s139 = sphi 0, %s139
      %s141 = sphi 0, %s139
      %s142 = sphi 0, %s141
      %s156 = sphi 0, %s142
      %s160 = sphi 0, %s160
      %s162 = sphi 0, %s160
      %s163 = sphi 0, %s162
      %s177 = sphi 0, %s163
      %s181 = sphi 0, %s181
      %s183 = sphi 0, %s181
      %s184 = sphi 0, %s183
      %s198 = sphi 0, %s184
      %s204 = sphi 0, %s206
      %s207 = sphi 0, %s204
      %s208 = sphi 0, %s207
      %s224 = sphi 0, %s208
      %s228 = sphi 0, %s228
      %s230 = sphi 0, %s228
      %s231 = sphi 0, %s230
      %s245 = sphi 0, %s231
      %s249 = sphi 0, %s249
      %s251 = sphi 0, %s249
      %s252 = sphi 0, %s251
      %s266 = sphi 0, %s252
      %s270 = sphi 0, %s270
      %s272 = sphi 0, %s270
      %s273 = sphi 0, %s272
      %s287 = sphi 0, %s273
      %s291 = sphi 0, %s291
      %s293 = sphi 0, %s291
      %s294 = sphi 0, %s293
      %s308 = sphi 0, %s294
      %s312 = sphi 0, %s312
      %s314 = sphi 0, %s312
      %s315 = sphi 0, %s314
      %s329 = sphi 0, %s315
      %s333 = sphi 0, %s333
      %s335 = sphi 0, %s333
      %s336 = sphi 0, %s335
      %s350 = sphi 0, %s336
      %s356 = sphi 0, %s358
      %s359 = sphi 0, %s356
      %s360 = sphi 0, %s359
      %s376 = sphi 0, %s360
    $region4: #{swin_stage_pallas.2} parent=1 // loop_header_branch
      %24 = sbr.rel (%p22) target = $region8
    $region5: #{swin_stage_pallas.2} parent=1 // loop_body
      %s26 = ssub.s32 %s21, 1
      %s27 = ssub.s32 %s21, 2
      %s28 = sadd.s32 %s21, 1
      %s29 = ssub.s32 %s21, %s28
      %p30 = scmp.eq.s32.totalorder %s29, 0
      %s32 = sadd.s32 %s31, 1
      %s33 = scalar_select %p30, %s31, %s32
      %p36 = pneg %p30
      %p37 = scmp.eq.s32.totalorder %s21, 1
      %p38 = por %p36, %p37
      %p39 = scmp.ne.s32.totalorder %s31, %s34
      %p40 = scmp.eq.s32.totalorder %s21, 0
      %p41 = por %p39, %p40
      %p42 = scmp.ne.s32.totalorder %s31, %s34
      %p43 = scmp.eq.s32.totalorder %s26, 1
      %p44 = por %p42, %p43
      %p45 = scmp.ne.s32.totalorder %s34, %s35
      %p46 = scmp.eq.s32.totalorder %s26, 0
      %p47 = por %p45, %p46
      %p48 = scmp.ne.s32.totalorder %s34, %s35
      %p49 = scmp.eq.s32.totalorder %s27, 1
      %p50 = por %p48, %p49
      %p52 = scmp.ne.s32.totalorder %s35, %s51
      %p53 = scmp.eq.s32.totalorder %s27, 0
      %p54 = por %p52, %p53
      %s56 = sadd.s32 %s55, 1
      %p59 = scmp.eq.s32.totalorder %s21, 1
      %p60 = scmp.ne.s32.totalorder %s55, %s57
      %p61 = scmp.eq.s32.totalorder %s21, 0
      %p62 = por %p60, %p61
      %p63 = scmp.ne.s32.totalorder %s55, %s57
      %p64 = scmp.eq.s32.totalorder %s26, 1
      %p65 = por %p63, %p64
      %p66 = scmp.ne.s32.totalorder %s57, %s58
      %p67 = scmp.eq.s32.totalorder %s26, 0
      %p68 = por %p66, %p67
      %p69 = scmp.ne.s32.totalorder %s57, %s58
      %p70 = scmp.eq.s32.totalorder %s27, 1
      %p71 = por %p69, %p70
      %p73 = scmp.ne.s32.totalorder %s58, %s72
      %p74 = scmp.eq.s32.totalorder %s27, 0
      %p75 = por %p73, %p74
      %s77 = sadd.s32 %s76, 1
      %p80 = scmp.eq.s32.totalorder %s21, 1
      %p81 = scmp.ne.s32.totalorder %s76, %s78
      %p82 = scmp.eq.s32.totalorder %s21, 0
      %p83 = por %p81, %p82
      %p84 = scmp.ne.s32.totalorder %s76, %s78
      %p85 = scmp.eq.s32.totalorder %s26, 1
      %p86 = por %p84, %p85
      %p87 = scmp.ne.s32.totalorder %s78, %s79
      %p88 = scmp.eq.s32.totalorder %s26, 0
      %p89 = por %p87, %p88
      %p90 = scmp.ne.s32.totalorder %s78, %s79
      %p91 = scmp.eq.s32.totalorder %s27, 1
      %p92 = por %p90, %p91
      %p94 = scmp.ne.s32.totalorder %s79, %s93
      %p95 = scmp.eq.s32.totalorder %s27, 0
      %p96 = por %p94, %p95
      %s98 = sadd.s32 %s97, 1
      %p101 = scmp.eq.s32.totalorder %s21, 1
      %p102 = scmp.ne.s32.totalorder %s97, %s99
      %p103 = scmp.eq.s32.totalorder %s21, 0
      %p104 = por %p102, %p103
      %p105 = scmp.ne.s32.totalorder %s97, %s99
      %p106 = scmp.eq.s32.totalorder %s26, 1
      %p107 = por %p105, %p106
      %p108 = scmp.ne.s32.totalorder %s99, %s100
      %p109 = scmp.eq.s32.totalorder %s26, 0
      %p110 = por %p108, %p109
      %p111 = scmp.ne.s32.totalorder %s99, %s100
      %p112 = scmp.eq.s32.totalorder %s27, 1
      %p113 = por %p111, %p112
      %p115 = scmp.ne.s32.totalorder %s100, %s114
      %p116 = scmp.eq.s32.totalorder %s27, 0
      %p117 = por %p115, %p116
      %s119 = sadd.s32 %s118, 1
      %p122 = scmp.eq.s32.totalorder %s21, 1
      %p123 = scmp.ne.s32.totalorder %s118, %s120
      %p124 = scmp.eq.s32.totalorder %s21, 0
      %p125 = por %p123, %p124
      %p126 = scmp.ne.s32.totalorder %s118, %s120
      %p127 = scmp.eq.s32.totalorder %s26, 1
      %p128 = por %p126, %p127
      %p129 = scmp.ne.s32.totalorder %s120, %s121
      %p130 = scmp.eq.s32.totalorder %s26, 0
      %p131 = por %p129, %p130
      %p132 = scmp.ne.s32.totalorder %s120, %s121
      %p133 = scmp.eq.s32.totalorder %s27, 1
      %p134 = por %p132, %p133
      %p136 = scmp.ne.s32.totalorder %s121, %s135
      %p137 = scmp.eq.s32.totalorder %s27, 0
      %p138 = por %p136, %p137
      %s140 = sadd.s32 %s139, 1
      %p143 = scmp.eq.s32.totalorder %s21, 1
      %p144 = scmp.ne.s32.totalorder %s139, %s141
      %p145 = scmp.eq.s32.totalorder %s21, 0
      %p146 = por %p144, %p145
      %p147 = scmp.ne.s32.totalorder %s139, %s141
      %p148 = scmp.eq.s32.totalorder %s26, 1
      %p149 = por %p147, %p148
      %p150 = scmp.ne.s32.totalorder %s141, %s142
      %p151 = scmp.eq.s32.totalorder %s26, 0
      %p152 = por %p150, %p151
      %p153 = scmp.ne.s32.totalorder %s141, %s142
      %p154 = scmp.eq.s32.totalorder %s27, 1
      %p155 = por %p153, %p154
      %p157 = scmp.ne.s32.totalorder %s142, %s156
      %p158 = scmp.eq.s32.totalorder %s27, 0
      %p159 = por %p157, %p158
      %s161 = sadd.s32 %s160, 1
      %p164 = scmp.eq.s32.totalorder %s21, 1
      %p165 = scmp.ne.s32.totalorder %s160, %s162
      %p166 = scmp.eq.s32.totalorder %s21, 0
      %p167 = por %p165, %p166
      %p168 = scmp.ne.s32.totalorder %s160, %s162
      %p169 = scmp.eq.s32.totalorder %s26, 1
      %p170 = por %p168, %p169
      %p171 = scmp.ne.s32.totalorder %s162, %s163
      %p172 = scmp.eq.s32.totalorder %s26, 0
      %p173 = por %p171, %p172
      %p174 = scmp.ne.s32.totalorder %s162, %s163
      %p175 = scmp.eq.s32.totalorder %s27, 1
      %p176 = por %p174, %p175
      %p178 = scmp.ne.s32.totalorder %s163, %s177
      %p179 = scmp.eq.s32.totalorder %s27, 0
      %p180 = por %p178, %p179
      %s182 = sadd.s32 %s181, 1
      %p185 = scmp.eq.s32.totalorder %s21, 1
      %p186 = scmp.ne.s32.totalorder %s181, %s183
      %p187 = scmp.eq.s32.totalorder %s21, 0
      %p188 = por %p186, %p187
      %p189 = scmp.ne.s32.totalorder %s181, %s183
      %p190 = scmp.eq.s32.totalorder %s26, 1
      %p191 = por %p189, %p190
      %p192 = scmp.ne.s32.totalorder %s183, %s184
      %p193 = scmp.eq.s32.totalorder %s26, 0
      %p194 = por %p192, %p193
      %p195 = scmp.ne.s32.totalorder %s183, %s184
      %p196 = scmp.eq.s32.totalorder %s27, 1
      %p197 = por %p195, %p196
      %p199 = scmp.ne.s32.totalorder %s184, %s198
      %p200 = scmp.eq.s32.totalorder %s27, 0
      %p201 = por %p199, %p200
      %s202 = ssub.s32 %s21, %s28
      %p203 = scmp.eq.s32.totalorder %s202, 0
      %s205 = sadd.s32 %s204, 1
      %s206 = scalar_select %p203, %s204, %s205
      %p209 = pneg %p203
      %p210 = scmp.eq.s32.totalorder %s21, 1
      %p211 = por %p209, %p210
      %p212 = scmp.ne.s32.totalorder %s204, %s207
      %p213 = scmp.eq.s32.totalorder %s21, 0
      %p214 = por %p212, %p213
      %p215 = scmp.ne.s32.totalorder %s204, %s207
      %p216 = scmp.eq.s32.totalorder %s26, 1
      %p217 = por %p215, %p216
      %p218 = scmp.ne.s32.totalorder %s207, %s208
      %p219 = scmp.eq.s32.totalorder %s26, 0
      %p220 = por %p218, %p219
      %p221 = scmp.ne.s32.totalorder %s207, %s208
      %p222 = scmp.eq.s32.totalorder %s27, 1
      %p223 = por %p221, %p222
      %p225 = scmp.ne.s32.totalorder %s208, %s224
      %p226 = scmp.eq.s32.totalorder %s27, 0
      %p227 = por %p225, %p226
      %s229 = sadd.s32 %s228, 1
      %p232 = scmp.eq.s32.totalorder %s21, 1
      %p233 = scmp.ne.s32.totalorder %s228, %s230
      %p234 = scmp.eq.s32.totalorder %s21, 0
      %p235 = por %p233, %p234
      %p236 = scmp.ne.s32.totalorder %s228, %s230
      %p237 = scmp.eq.s32.totalorder %s26, 1
      %p238 = por %p236, %p237
      %p239 = scmp.ne.s32.totalorder %s230, %s231
      %p240 = scmp.eq.s32.totalorder %s26, 0
      %p241 = por %p239, %p240
      %p242 = scmp.ne.s32.totalorder %s230, %s231
      %p243 = scmp.eq.s32.totalorder %s27, 1
      %p244 = por %p242, %p243
      %p246 = scmp.ne.s32.totalorder %s231, %s245
      %p247 = scmp.eq.s32.totalorder %s27, 0
      %p248 = por %p246, %p247
      %s250 = sadd.s32 %s249, 1
      %p253 = scmp.eq.s32.totalorder %s21, 1
      %p254 = scmp.ne.s32.totalorder %s249, %s251
      %p255 = scmp.eq.s32.totalorder %s21, 0
      %p256 = por %p254, %p255
      %p257 = scmp.ne.s32.totalorder %s249, %s251
      %p258 = scmp.eq.s32.totalorder %s26, 1
      %p259 = por %p257, %p258
      %p260 = scmp.ne.s32.totalorder %s251, %s252
      %p261 = scmp.eq.s32.totalorder %s26, 0
      %p262 = por %p260, %p261
      %p263 = scmp.ne.s32.totalorder %s251, %s252
      %p264 = scmp.eq.s32.totalorder %s27, 1
      %p265 = por %p263, %p264
      %p267 = scmp.ne.s32.totalorder %s252, %s266
      %p268 = scmp.eq.s32.totalorder %s27, 0
      %p269 = por %p267, %p268
      %s271 = sadd.s32 %s270, 1
      %p274 = scmp.eq.s32.totalorder %s21, 1
      %p275 = scmp.ne.s32.totalorder %s270, %s272
      %p276 = scmp.eq.s32.totalorder %s21, 0
      %p277 = por %p275, %p276
      %p278 = scmp.ne.s32.totalorder %s270, %s272
      %p279 = scmp.eq.s32.totalorder %s26, 1
      %p280 = por %p278, %p279
      %p281 = scmp.ne.s32.totalorder %s272, %s273
      %p282 = scmp.eq.s32.totalorder %s26, 0
      %p283 = por %p281, %p282
      %p284 = scmp.ne.s32.totalorder %s272, %s273
      %p285 = scmp.eq.s32.totalorder %s27, 1
      %p286 = por %p284, %p285
      %p288 = scmp.ne.s32.totalorder %s273, %s287
      %p289 = scmp.eq.s32.totalorder %s27, 0
      %p290 = por %p288, %p289
      %s292 = sadd.s32 %s291, 1
      %p295 = scmp.eq.s32.totalorder %s21, 1
      %p296 = scmp.ne.s32.totalorder %s291, %s293
      %p297 = scmp.eq.s32.totalorder %s21, 0
      %p298 = por %p296, %p297
      %p299 = scmp.ne.s32.totalorder %s291, %s293
      %p300 = scmp.eq.s32.totalorder %s26, 1
      %p301 = por %p299, %p300
      %p302 = scmp.ne.s32.totalorder %s293, %s294
      %p303 = scmp.eq.s32.totalorder %s26, 0
      %p304 = por %p302, %p303
      %p305 = scmp.ne.s32.totalorder %s293, %s294
      %p306 = scmp.eq.s32.totalorder %s27, 1
      %p307 = por %p305, %p306
      %p309 = scmp.ne.s32.totalorder %s294, %s308
      %p310 = scmp.eq.s32.totalorder %s27, 0
      %p311 = por %p309, %p310
      %s313 = sadd.s32 %s312, 1
      %p316 = scmp.eq.s32.totalorder %s21, 1
      %p317 = scmp.ne.s32.totalorder %s312, %s314
      %p318 = scmp.eq.s32.totalorder %s21, 0
      %p319 = por %p317, %p318
      %p320 = scmp.ne.s32.totalorder %s312, %s314
      %p321 = scmp.eq.s32.totalorder %s26, 1
      %p322 = por %p320, %p321
      %p323 = scmp.ne.s32.totalorder %s314, %s315
      %p324 = scmp.eq.s32.totalorder %s26, 0
      %p325 = por %p323, %p324
      %p326 = scmp.ne.s32.totalorder %s314, %s315
      %p327 = scmp.eq.s32.totalorder %s27, 1
      %p328 = por %p326, %p327
      %p330 = scmp.ne.s32.totalorder %s315, %s329
      %p331 = scmp.eq.s32.totalorder %s27, 0
      %p332 = por %p330, %p331
      %s334 = sadd.s32 %s333, 1
      %p337 = scmp.eq.s32.totalorder %s21, 1
      %p338 = scmp.ne.s32.totalorder %s333, %s335
      %p339 = scmp.eq.s32.totalorder %s21, 0
      %p340 = por %p338, %p339
      %p341 = scmp.ne.s32.totalorder %s333, %s335
      %p342 = scmp.eq.s32.totalorder %s26, 1
      %p343 = por %p341, %p342
      %p344 = scmp.ne.s32.totalorder %s335, %s336
      %p345 = scmp.eq.s32.totalorder %s26, 0
      %p346 = por %p344, %p345
      %p347 = scmp.ne.s32.totalorder %s335, %s336
      %p348 = scmp.eq.s32.totalorder %s27, 1
      %p349 = por %p347, %p348
      %p351 = scmp.ne.s32.totalorder %s336, %s350
      %p352 = scmp.eq.s32.totalorder %s27, 0
      %p353 = por %p351, %p352
      %s354 = ssub.s32 %s21, %s28
      %p355 = scmp.eq.s32.totalorder %s354, 0
      %s357 = sadd.s32 %s356, 1
      %s358 = scalar_select %p355, %s356, %s357
      %p361 = pneg %p355
      %p362 = scmp.eq.s32.totalorder %s21, 1
      %p363 = por %p361, %p362
      %p364 = scmp.ne.s32.totalorder %s356, %s359
      %p365 = scmp.eq.s32.totalorder %s21, 0
      %p366 = por %p364, %p365
      %p367 = scmp.ne.s32.totalorder %s356, %s359
      %p368 = scmp.eq.s32.totalorder %s26, 1
      %p369 = por %p367, %p368
      %p370 = scmp.ne.s32.totalorder %s359, %s360
      %p371 = scmp.eq.s32.totalorder %s26, 0
      %p372 = por %p370, %p371
      %p373 = scmp.ne.s32.totalorder %s359, %s360
      %p374 = scmp.eq.s32.totalorder %s27, 1
      %p375 = por %p373, %p374
      %p377 = scmp.ne.s32.totalorder %s360, %s376
      %p378 = scmp.eq.s32.totalorder %s27, 0
      %p379 = por %p377, %p378
      %p380 = scmp.le.s32.totalorder 1, %s21
      %p381 = scmp.lt.s32.totalorder %s21, 3
      %p382 = pnand %p380, %p381
      %p383 = pneg %p382
      // Predicated region
      $region9: #{swin_stage_pallas.2} parent=5 // pred_check
        _
      $region10: #{swin_stage_pallas.2} parent=5 // pred_check_branch
        %385 = sbr.rel (%p382) target = $region12
      $region11: #{swin_stage_pallas.2} parent=5 // pred_region
        %s386 = ssub.s32 %s21, 1
        // Predicated region
        $region13: #{swin_stage_pallas.2} parent=11 // pred_check
          %p387 = pneg %p68
        $region14: #{swin_stage_pallas.2} parent=11 // pred_check_branch
          %389 = sbr.rel (%p387) target = $region16
        $region15: #{swin_stage_pallas.2} parent=11 // pred_region
          _
        $region16: #{swin_stage_pallas.2} parent=11 // pred_fallthru
          _
        // Predicated region
        $region17: #{swin_stage_pallas.2} parent=11 // pred_check
          %p390 = pneg %p89
        $region18: #{swin_stage_pallas.2} parent=11 // pred_check_branch
          %392 = sbr.rel (%p390) target = $region20
        $region19: #{swin_stage_pallas.2} parent=11 // pred_region
          _
        $region20: #{swin_stage_pallas.2} parent=11 // pred_fallthru
          _
        // Predicated region
        $region21: #{swin_stage_pallas.2} parent=11 // pred_check
          %p393 = pneg %p110
        $region22: #{swin_stage_pallas.2} parent=11 // pred_check_branch
          %395 = sbr.rel (%p393) target = $region24
        $region23: #{swin_stage_pallas.2} parent=11 // pred_region
          _
        $region24: #{swin_stage_pallas.2} parent=11 // pred_fallthru
          _
        // Predicated region
        $region25: #{swin_stage_pallas.2} parent=11 // pred_check
          %p396 = pneg %p131
        $region26: #{swin_stage_pallas.2} parent=11 // pred_check_branch
          %398 = sbr.rel (%p396) target = $region28
        $region27: #{swin_stage_pallas.2} parent=11 // pred_region
          _
        $region28: #{swin_stage_pallas.2} parent=11 // pred_fallthru
          _
        // Predicated region
        $region29: #{swin_stage_pallas.2} parent=11 // pred_check
          %p399 = pneg %p152
        $region30: #{swin_stage_pallas.2} parent=11 // pred_check_branch
          %401 = sbr.rel (%p399) target = $region32
        $region31: #{swin_stage_pallas.2} parent=11 // pred_region
          _
        $region32: #{swin_stage_pallas.2} parent=11 // pred_fallthru
          _
        // Predicated region
        $region33: #{swin_stage_pallas.2} parent=11 // pred_check
          %p402 = pneg %p173
        $region34: #{swin_stage_pallas.2} parent=11 // pred_check_branch
          %404 = sbr.rel (%p402) target = $region36
        $region35: #{swin_stage_pallas.2} parent=11 // pred_region
          _
        $region36: #{swin_stage_pallas.2} parent=11 // pred_fallthru
          _
        // Predicated region
        $region37: #{swin_stage_pallas.2} parent=11 // pred_check
          %p405 = pneg %p194
        $region38: #{swin_stage_pallas.2} parent=11 // pred_check_branch
          %407 = sbr.rel (%p405) target = $region40
        $region39: #{swin_stage_pallas.2} parent=11 // pred_region
          _
        $region40: #{swin_stage_pallas.2} parent=11 // pred_fallthru
          _
        // Predicated region
        $region41: #{swin_stage_pallas.2} parent=11 // pred_check
          %p408 = pneg %p241
        $region42: #{swin_stage_pallas.2} parent=11 // pred_check_branch
          %410 = sbr.rel (%p408) target = $region44
        $region43: #{swin_stage_pallas.2} parent=11 // pred_region
          _
        $region44: #{swin_stage_pallas.2} parent=11 // pred_fallthru
          _
        // Predicated region
        $region45: #{swin_stage_pallas.2} parent=11 // pred_check
          %p411 = pneg %p262
        $region46: #{swin_stage_pallas.2} parent=11 // pred_check_branch
          %413 = sbr.rel (%p411) target = $region48
        $region47: #{swin_stage_pallas.2} parent=11 // pred_region
          _
        $region48: #{swin_stage_pallas.2} parent=11 // pred_fallthru
          _
        // Predicated region
        $region49: #{swin_stage_pallas.2} parent=11 // pred_check
          %p414 = pneg %p283
        $region50: #{swin_stage_pallas.2} parent=11 // pred_check_branch
          %416 = sbr.rel (%p414) target = $region52
        $region51: #{swin_stage_pallas.2} parent=11 // pred_region
          _
        $region52: #{swin_stage_pallas.2} parent=11 // pred_fallthru
          _
        // Predicated region
        $region53: #{swin_stage_pallas.2} parent=11 // pred_check
          %p417 = pneg %p304
        $region54: #{swin_stage_pallas.2} parent=11 // pred_check_branch
          %419 = sbr.rel (%p417) target = $region56
        $region55: #{swin_stage_pallas.2} parent=11 // pred_region
          _
        $region56: #{swin_stage_pallas.2} parent=11 // pred_fallthru
          _
        // Predicated region
        $region57: #{swin_stage_pallas.2} parent=11 // pred_check
          %p420 = pneg %p325
        $region58: #{swin_stage_pallas.2} parent=11 // pred_check_branch
          %422 = sbr.rel (%p420) target = $region60
        $region59: #{swin_stage_pallas.2} parent=11 // pred_region
          _
        $region60: #{swin_stage_pallas.2} parent=11 // pred_fallthru
          _
        // Predicated region
        $region61: #{swin_stage_pallas.2} parent=11 // pred_check
          %p423 = pneg %p346
        $region62: #{swin_stage_pallas.2} parent=11 // pred_check_branch
          %425 = sbr.rel (%p423) target = $region64
        $region63: #{swin_stage_pallas.2} parent=11 // pred_region
          _
        $region64: #{swin_stage_pallas.2} parent=11 // pred_fallthru
          _
      $region12: #{swin_stage_pallas.2} parent=5 // pred_fallthru
        _
      %p426 = scmp.lt.s32.totalorder %s21, 2
      // Predicated region
      $region65: #{swin_stage_pallas.2} parent=5 // pred_check
        %p427 = pneg %p426
      $region66: #{swin_stage_pallas.2} parent=5 // pred_check_branch
        %429 = sbr.rel (%p427) target = $region68
      $region67: #{swin_stage_pallas.2} parent=5 // pred_region
        // Predicated region
        $region69: #{swin_stage_pallas.2} parent=67 // pred_check
          %p430 = pneg %p41
        $region70: #{swin_stage_pallas.2} parent=67 // pred_check_branch
          %432 = sbr.rel (%p430) target = $region72
        $region71: #{swin_stage_pallas.2} parent=67 // pred_region
          %s433 = sand.u32 %s31, 1
          %s434 = sand.u32 %s31, 1
          %s435 = smul.addr %s434, 32
          %s436 = scalar_lea.vmem [#allocation2], %s435
          %s437 = smul.addr %s21, 8
          %s438 = scalar_lea.vmem %s0, %s437
          // Predicated region
          $region73: #{swin_stage_pallas.2} parent=71 // pred_check
            _
          $region74: #{swin_stage_pallas.2} parent=71 // pred_check_branch
            %440 = sbr.rel (0) target = $region76
          $region75: #{swin_stage_pallas.2} parent=71 // pred_region
            // Predicated region
            $region77: #{swin_stage_pallas.2} parent=75 // pred_check
              _
            $region78: #{swin_stage_pallas.2} parent=75 // pred_check_branch
              %442 = sbr.rel (0) target = $region80
            $region79: #{swin_stage_pallas.2} parent=75 // pred_region
              // Predicated region
              $region92: #{swin_stage_pallas.2} parent=79 // pred_check
                _
              $region93: #{swin_stage_pallas.2} parent=79 // pred_check_branch
                %464 = sbr.rel (0) target = $region95
              $region94: #{swin_stage_pallas.2} parent=79 // pred_region
                loop: start=0, step=1, limit=1
                $region96: #{swin_stage_pallas.2} parent=94 // loop_pre_header
                  _
                $region97: #{swin_stage_pallas.2} parent=94 // loop_header
                  %s466 = sphi 0, %s470
                  %p467 = scmp.ge.s32.totalorder %s466, 1
                  %s471 = sphi %s438, %s438
                  %s472 = sphi %s436, %s436
                $region98: #{swin_stage_pallas.2} parent=94 // loop_header_branch
                  %469 = sbr.rel (%p467) target = $region102
                $region99: #{swin_stage_pallas.2} parent=94 // loop_body
                  %v473 = vld [vmem:[%s471] sm:$0xff]
                  %474 = vst [vmem:[%s472] sm:$0xff] %v473
                  %v475 = vld [vmem:[%s471 + $0x10] sm:$0xff]
                  %476 = vst [vmem:[%s472 + $0x8] sm:$0xff] %v475
                  %v477 = vld [vmem:[%s471 + $0x20] sm:$0xff]
                  %478 = vst [vmem:[%s472 + $0x10] sm:$0xff] %v477
                  %v479 = vld [vmem:[%s471 + $0x30] sm:$0xff]
                  %480 = vst [vmem:[%s472 + $0x18] sm:$0xff] %v479
                $region100: #{swin_stage_pallas.2} parent=94 // loop_footer
                  %s470 = sadd.s32 1, %s466
                $region101: #{swin_stage_pallas.2} parent=94 // loop_footer_branch
                  %465 = sbr.rel target = $region97
                $region102: #{swin_stage_pallas.2} parent=94 // loop_exit
                  _
              $region95: #{swin_stage_pallas.2} parent=79 // pred_fallthru
                _
              // Predicated region
              $region103: #{swin_stage_pallas.2} parent=79 // pred_check
                _
              $region104: #{swin_stage_pallas.2} parent=79 // pred_check_branch
                %482 = sbr.rel target = $region106
              $region105: #{swin_stage_pallas.2} parent=79 // pred_region
                _
              $region106: #{swin_stage_pallas.2} parent=79 // pred_fallthru
                _
            $region80: #{swin_stage_pallas.2} parent=75 // pred_fallthru
              _
            // Predicated region
            $region81: #{swin_stage_pallas.2} parent=75 // pred_check
              _
            $region82: #{swin_stage_pallas.2} parent=75 // pred_check_branch
              %444 = sbr.rel target = $region84
            $region83: #{swin_stage_pallas.2} parent=75 // pred_region
              %s446 = ssub.s32 256, 1
              loop: start=0, step=1, limit=1
              $region85: #{swin_stage_pallas.2} parent=83 // loop_pre_header
                _
              $region86: #{swin_stage_pallas.2} parent=83 // loop_header
                %s448 = sphi 0, %s452
                %p449 = scmp.ge.s32.totalorder %s448, 1
                %s453 = sphi %s438, %s438
                %s454 = sphi %s436, %s436
              $region87: #{swin_stage_pallas.2} parent=83 // loop_header_branch
                %451 = sbr.rel (%p449) target = $region91
              $region88: #{swin_stage_pallas.2} parent=83 // loop_body
                %v455 = vld [vmem:[%s453] sm:%s446]
                %456 = vst [vmem:[%s454] sm:%s446] %v455
                %v457 = vld [vmem:[%s453 + $0x10] sm:%s446]
                %458 = vst [vmem:[%s454 + $0x8] sm:%s446] %v457
                %v459 = vld [vmem:[%s453 + $0x20] sm:%s446]
                %460 = vst [vmem:[%s454 + $0x10] sm:%s446] %v459
                %v461 = vld [vmem:[%s453 + $0x30] sm:%s446]
                %462 = vst [vmem:[%s454 + $0x18] sm:%s446] %v461
              $region89: #{swin_stage_pallas.2} parent=83 // loop_footer
                %s452 = sadd.s32 1, %s448
              $region90: #{swin_stage_pallas.2} parent=83 // loop_footer_branch
                %447 = sbr.rel target = $region86
              $region91: #{swin_stage_pallas.2} parent=83 // loop_exit
                _
            $region84: #{swin_stage_pallas.2} parent=75 // pred_fallthru
              _
          $region76: #{swin_stage_pallas.2} parent=71 // pred_fallthru
            _
          %483 = vnop
        $region72: #{swin_stage_pallas.2} parent=67 // pred_fallthru
          _
        // Predicated region
        $region107: #{swin_stage_pallas.2} parent=67 // pred_check
          %p484 = pneg %p214
        $region108: #{swin_stage_pallas.2} parent=67 // pred_check_branch
          %486 = sbr.rel (%p484) target = $region110
        $region109: #{swin_stage_pallas.2} parent=67 // pred_region
          %p487 = scmp.lt.s32.totalorder %s21, 1
          %s488 = scalar_select %p487, %s21, 1
          %s489 = smul.addr %s488, 16
          %s490 = smul.addr %s489, 8
          %s491 = scalar_lea.vmem %s8, %s490
        $region110: #{swin_stage_pallas.2} parent=67 // pred_fallthru
          _
      $region68: #{swin_stage_pallas.2} parent=5 // pred_fallthru
        _
      %p492 = scmp.le.s32.totalorder 1, %s21
      %p493 = scmp.lt.s32.totalorder %s21, 3
      %p494 = pnand %p492, %p493
      %p495 = pneg %p494
      // Predicated region
      $region111: #{swin_stage_pallas.2} parent=5 // pred_check
        _
      $region112: #{swin_stage_pallas.2} parent=5 // pred_check_branch
        %497 = sbr.rel (%p494) target = $region114
      $region113: #{swin_stage_pallas.2} parent=5 // pred_region
        %s498 = ssub.s32 %s21, 1
        %s499 = sand.u32 %s34, 1
        %s500 = sand.u32 %s34, 1
        %s501 = smul.addr %s500, 32
        %s502 = scalar_lea.vmem [#allocation2], %s501
        // Predicated region
        $region115: #{swin_stage_pallas.2} parent=113 // pred_check
          %p503 = pneg %p47
        $region116: #{swin_stage_pallas.2} parent=113 // pred_check_branch
          %505 = sbr.rel (%p503) target = $region118
        $region117: #{swin_stage_pallas.2} parent=113 // pred_region
          _
        $region118: #{swin_stage_pallas.2} parent=113 // pred_fallthru
          _
        %s506 = sand.u32 %s34, 1
        %s507 = sand.u32 %s34, 1
        %s508 = smul.addr %s507, 32
        %s509 = scalar_lea.vmem [#allocation2], %s508
        %p510 = pneg %p47
        %p511 = pneg %p44
        %p512 = pneg %p68
        %p513 = pneg %p65
        %p514 = pneg %p89
        %p515 = pneg %p86
        %p516 = pneg %p110
        %p517 = pneg %p107
        %p518 = pneg %p131
        %p519 = pneg %p128
        %p520 = pneg %p152
        %p521 = pneg %p149
        %p522 = pneg %p173
        %p523 = pneg %p170
        %p524 = pneg %p194
        %p525 = pneg %p191
        %p526 = scmp.lt.s32.totalorder %s26, 1
        %s527 = scalar_select %p526, %s26, 1
        %s528 = smul.addr %s527, 16
        %s529 = smul.addr %s528, 8
        %s530 = scalar_lea.vmem %s8, %s529
        %p531 = pneg %p220
        %p532 = pneg %p217
        %p533 = pneg %p241
        %p534 = pneg %p238
        %p535 = pneg %p262
        %p536 = pneg %p259
        %p537 = pneg %p283
        %p538 = pneg %p280
        %p539 = pneg %p304
        %p540 = pneg %p301
        %p541 = pneg %p325
        %p542 = pneg %p322
        %p543 = pneg %p346
        %p544 = pneg %p343
        %p545 = pneg %p372
        %p546 = pneg %p369
        %s547 = sand.u32 %s359, 1
        %s548 = sand.u32 %s359, 1
        %s549 = smul.addr %s548, 32
        %s550 = scalar_lea.vmem [#allocation3], %s549
        %p551 = scmp.lt.s32.totalorder %s26, 1
        %s552 = scalar_select %p551, %s26, 1
        %s553 = smul.addr %s552, 16
        %s554 = smul.addr %s553, 8
        %s555 = scalar_lea.vmem %s8, %s554
        %v557 = vld [vmem:[%s502] sm:$0xff]
        %v558 = vld [vmem:[%s502 + $0x8] sm:$0xff]
        %v559 = vld [vmem:[%s502 + $0x10] sm:$0xff]
        %v560 = vld [vmem:[%s502 + $0x18] sm:$0xff]
        %v561 = vadd.f32 %v557, %v558
        %v562 = vadd.f32 %v561, %v559
        %v563 = vadd.f32 %v562, %v560
        %v564 = vrot.slane %v563, 4
        %v565 = vadd.f32 %v563, %v564
        %v566 = vrot.slane %v565, 2
        %v567 = vadd.f32 %v565, %v566
        %v568 = vrot.slane %v567, 1
        %v569 = vadd.f32 %v567, %v568
        %v570 = vrcp.pop 32.0
        %v571 = vmul.f32 32.0, %v570
        %v572 = vsub.f32 1.0, %v571
        %v573 = vmul.f32 %v570, %v572
        %v574 = vadd.f32 %v570, %v573
        %vm575 = vweird.f32 %v570
        %v576 = vsel %vm575, %v570, %v574
        %v577 = vmul.f32 %v569, %v576
        %v578 = vsub.f32 %v557, %v577
        %v579 = vsub.f32 %v558, %v577
        %v580 = vsub.f32 %v559, %v577
        %v581 = vsub.f32 %v560, %v577
        %v582 = vmul.f32 %v578, %v578
        %v583 = vmul.f32 %v579, %v579
        %v584 = vmul.f32 %v580, %v580
        %v585 = vmul.f32 %v581, %v581
        %v586 = vadd.f32 %v582, %v583
        %v587 = vadd.f32 %v586, %v584
        %v588 = vadd.f32 %v587, %v585
        %v589 = vrot.slane %v588, 4
        %v590 = vadd.f32 %v588, %v589
        %v591 = vrot.slane %v590, 2
        %v592 = vadd.f32 %v590, %v591
        %v593 = vrot.slane %v592, 1
        %v594 = vadd.f32 %v592, %v593
        %v595 = vmul.f32 %v594, %v576
        %v596 = vadd.f32 %v595, 1e-05
        %v597 = vrsqrt.pop %v596
        %v598 = vmul.f32 %v597, %v596
        %v599 = vmul.f32 %v598, %v597
        %v600 = vmul.f32 0.5, %v599
        %v601 = vsub.f32 1.5, %v600
        %v602 = vmul.f32 %v597, %v601
        %vm603 = vweird.f32 %v596
        %vm604 = vweird.f32 %v597
        %vm605 = vmor %vm603, %vm604
        %v606 = vsel %vm605, %v597, %v602
        %v607 = vmul.f32 %v578, %v606
        %v608 = vmul.f32 %v579, %v606
        %v609 = vmul.f32 %v580, %v606
        %v610 = vmul.f32 %v581, %v606
        %v611 = vld [vmem:[%s1] sm:$0xff]
        %v612 = vld [vmem:[%s1 + $0x8] sm:$0xff]
        %v613 = vld [vmem:[%s1 + $0x10] sm:$0xff]
        %v614 = vld [vmem:[%s1 + $0x18] sm:$0xff]
        %616 = vset.pattern.permute.xlu0 0
        %617 = vperm.xlu0 %616, %v611
        %v618 = vpop.permute.xlu0 %617
        %621 = vset.pattern.permute.xlu0 0
        %622 = vperm.xlu0 %621, %v612
        %v623 = vpop.permute.xlu0 %622
        %626 = vset.pattern.permute.xlu0 0
        %627 = vperm.xlu0 %626, %v613
        %v628 = vpop.permute.xlu0 %627
        %631 = vset.pattern.permute.xlu0 0
        %632 = vperm.xlu0 %631, %v614
        %v633 = vpop.permute.xlu0 %632
        %v635 = vmul.f32 %v607, %v618
        %v636 = vmul.f32 %v608, %v623
        %v637 = vmul.f32 %v609, %v628
        %v638 = vmul.f32 %v610, %v633
        %v639 = vld [vmem:[%s2] sm:$0xff]
        %v640 = vld [vmem:[%s2 + $0x8] sm:$0xff]
        %v641 = vld [vmem:[%s2 + $0x10] sm:$0xff]
        %v642 = vld [vmem:[%s2 + $0x18] sm:$0xff]
        %644 = vset.pattern.permute.xlu0 0
        %645 = vperm.xlu0 %644, %v639
        %v646 = vpop.permute.xlu0 %645
        %649 = vset.pattern.permute.xlu0 0
        %650 = vperm.xlu0 %649, %v640
        %v651 = vpop.permute.xlu0 %650
        %654 = vset.pattern.permute.xlu0 0
        %655 = vperm.xlu0 %654, %v641
        %v656 = vpop.permute.xlu0 %655
        %659 = vset.pattern.permute.xlu0 0
        %660 = vperm.xlu0 %659, %v642
        %v661 = vpop.permute.xlu0 %660
        %v663 = vadd.f32 %v635, %v646
        %v664 = vadd.f32 %v636, %v651
        %v665 = vadd.f32 %v637, %v656
        %v666 = vadd.f32 %v638, %v661
        %v667 = vld [vmem:[%s3] sm:$0xf]
        %v668 = vld [vmem:[%s3 + $0x4] sm:$0xf]
        %v669 = vld [vmem:[%s3 + $0x8] sm:$0xf]
        %v670 = vld [vmem:[%s3 + $0xc] sm:$0xf]
        %v671 = vld [vmem:[%s3 + $0x10] sm:$0xf]
        %v672 = vld [vmem:[%s3 + $0x14] sm:$0xf]
        %v673 = vld [vmem:[%s3 + $0x18] sm:$0xf]
        %v674 = vld [vmem:[%s3 + $0x1c] sm:$0xf]
        %v675 = vld [vmem:[%s3 + $0x20] sm:$0xf]
        %v676 = vld [vmem:[%s3 + $0x24] sm:$0xf]
        %v677 = vld [vmem:[%s3 + $0x28] sm:$0xf]
        %v678 = vld [vmem:[%s3 + $0x2c] sm:$0xf]
        %v679 = vpack.c.bf16 %v664, %v663
        %v680 = vpack.c.bf16 %v666, %v665
        %v681 = vld [vmem:[%s4] sm:$0xff]
        %v682 = vld [vmem:[%s4 + $0x8] sm:$0xff]
        %v683 = vld [vmem:[%s4 + $0x10] sm:$0xff]
        %v684 = vld [vmem:[%s4 + $0x18] sm:$0xff]
        %v685 = vld [vmem:[%s4 + $0x20] sm:$0xff]
        %v686 = vld [vmem:[%s4 + $0x28] sm:$0xff]
        %v687 = vld [vmem:[%s4 + $0x30] sm:$0xff]
        %v688 = vld [vmem:[%s4 + $0x38] sm:$0xff]
        %v689 = vld [vmem:[%s4 + $0x40] sm:$0xff]
        %v690 = vld [vmem:[%s4 + $0x48] sm:$0xff]
        %v691 = vld [vmem:[%s4 + $0x50] sm:$0xff]
        %v692 = vld [vmem:[%s4 + $0x58] sm:$0xff]
        %694 = vset.pattern.permute.xlu0 0
        %695 = vperm.xlu0 %694, %v681
        %v696 = vpop.permute.xlu0 %695
        %699 = vset.pattern.permute.xlu0 0
        %700 = vperm.xlu0 %699, %v682
        %v701 = vpop.permute.xlu0 %700
        %704 = vset.pattern.permute.xlu0 0
        %705 = vperm.xlu0 %704, %v683
        %v706 = vpop.permute.xlu0 %705
        %709 = vset.pattern.permute.xlu0 0
        %710 = vperm.xlu0 %709, %v684
        %v711 = vpop.permute.xlu0 %710
        %714 = vset.pattern.permute.xlu0 0
        %715 = vperm.xlu0 %714, %v685
        %v716 = vpop.permute.xlu0 %715
        %719 = vset.pattern.permute.xlu0 0
        %720 = vperm.xlu0 %719, %v686
        %v721 = vpop.permute.xlu0 %720
        %724 = vset.pattern.permute.xlu0 0
        %725 = vperm.xlu0 %724, %v687
        %v726 = vpop.permute.xlu0 %725
        %729 = vset.pattern.permute.xlu0 0
        %730 = vperm.xlu0 %729, %v688
        %v731 = vpop.permute.xlu0 %730
        %734 = vset.pattern.permute.xlu0 0
        %735 = vperm.xlu0 %734, %v689
        %v736 = vpop.permute.xlu0 %735
        %739 = vset.pattern.permute.xlu0 0
        %740 = vperm.xlu0 %739, %v690
        %v741 = vpop.permute.xlu0 %740
        %744 = vset.pattern.permute.xlu0 0
        %745 = vperm.xlu0 %744, %v691
        %v746 = vpop.permute.xlu0 %745
        %749 = vset.pattern.permute.xlu0 0
        %750 = vperm.xlu0 %749, %v692
        %v751 = vpop.permute.xlu0 %750
        %v765 = vunpack.c.l.b16 %v667
        %v766 = vunpack.c.l.b16 %v668
        %v767 = vunpack.c.l.b16 %v669
        %v768 = vunpack.c.l.b16 %v670
        %v769 = vunpack.c.l.b16 %v671
        %v770 = vunpack.c.l.b16 %v672
        %v771 = vunpack.c.l.b16 %v673
        %v772 = vunpack.c.l.b16 %v674
        %v773 = vunpack.c.l.b16 %v675
        %v774 = vunpack.c.l.b16 %v676
        %v775 = vunpack.c.l.b16 %v677
        %v776 = vunpack.c.l.b16 %v678
        %v777 = vpack.c.b16 %v766, %v765
        %v778 = vpack.c.b16 %v768, %v767
        %v779 = vpack.c.b16 %v770, %v769
        %v780 = vpack.c.b16 %v772, %v771
        %v781 = vpack.c.b16 %v774, %v773
        %v782 = vpack.c.b16 %v776, %v775
        %vm783 = vcmask 261120
        %v785 = vsel %vm783, %v777, 0
        %v788 = vsel %vm783, %v778, 0
        %v791 = vsel %vm783, %v779, 0
        %v794 = vsel %vm783, %v780, 0
        %v797 = vsel %vm783, %v781, 0
        %v800 = vsel %vm783, %v782, 0
        %802 = vmatpush.bf16.msra.mxu0 0
        %803 = vmatpush.bf16.msra.mxu0 0
        %804 = vmatpush.bf16.msra.mxu0 0
        %805 = vmatpush.bf16.msra.mxu0 0
        %806 = vmatpush.bf16.msra.mxu0 0
        %807 = vmatpush.bf16.msra.mxu0 0
        %808 = vmatpush.bf16.msra.mxu0 %v680
        %809 = vmatpush.bf16.msra.mxu0 %v679
        %810 = vmatmul.bf16.gmra.mxu0 %v785
        %v811 = vpop.f32.mrf.mxu0
        %v812 = vadd.f32 %v696, %v811
        %v813 = vpop.f32.mrf.mxu0
        %v814 = vadd.f32 %v701, %v813
        %815 = vmatmul.bf16.gmra.mxu0 %v788
        %v816 = vpop.f32.mrf.mxu0
        %v817 = vadd.f32 %v706, %v816
        %v818 = vpop.f32.mrf.mxu0
        %v819 = vadd.f32 %v711, %v818
        %820 = vmatmul.bf16.gmra.mxu0 %v791
        %v821 = vpop.f32.mrf.mxu0
        %v822 = vadd.f32 %v716, %v821
        %v823 = vpop.f32.mrf.mxu0
        %v824 = vadd.f32 %v721, %v823
        %825 = vmatmul.bf16.gmra.mxu0 %v794
        %v826 = vpop.f32.mrf.mxu0
        %v827 = vadd.f32 %v726, %v826
        %v828 = vpop.f32.mrf.mxu0
        %v829 = vadd.f32 %v731, %v828
        %830 = vmatmul.bf16.gmra.mxu0 %v797
        %v831 = vpop.f32.mrf.mxu0
        %v832 = vadd.f32 %v736, %v831
        %v833 = vpop.f32.mrf.mxu0
        %v834 = vadd.f32 %v741, %v833
        %835 = vmatmul.bf16.gmra.mxu0 %v800
        %v836 = vpop.f32.mrf.mxu0
        %v837 = vadd.f32 %v746, %v836
        %v838 = vpop.f32.mrf.mxu0
        %v839 = vadd.f32 %v751, %v838
        %840 = vdwg.mxu0
        %v841 = vld [vmem:[%s555] sm:$0xff]
        %v842 = vld [vmem:[%s555 + $0x8] sm:$0xff]
        %v843 = vld [vmem:[%s555 + $0x10] sm:$0xff]
        %v844 = vld [vmem:[%s555 + $0x18] sm:$0xff]
        %v845 = vld [vmem:[%s555 + $0x20] sm:$0xff]
        %v846 = vld [vmem:[%s555 + $0x28] sm:$0xff]
        %v847 = vld [vmem:[%s555 + $0x30] sm:$0xff]
        %v848 = vld [vmem:[%s555 + $0x38] sm:$0xff]
        %v849 = vld [vmem:[%s555 + $0x40] sm:$0xff]
        %v850 = vld [vmem:[%s555 + $0x48] sm:$0xff]
        %v851 = vld [vmem:[%s555 + $0x50] sm:$0xff]
        %v852 = vld [vmem:[%s555 + $0x58] sm:$0xff]
        %v853 = vld [vmem:[%s555 + $0x60] sm:$0xff]
        %v854 = vld [vmem:[%s555 + $0x68] sm:$0xff]
        %v855 = vld [vmem:[%s555 + $0x70] sm:$0xff]
        %v856 = vld [vmem:[%s555 + $0x78] sm:$0xff]
        %v857 = vpack.c.bf16 %v812, %v812
        %v858 = vpack.c.bf16 %v822, %v822
        %v859 = vpack.c.bf16 %v832, %v832
        %v860 = vld [vmem:[%s7] sm:$0xff]
        %v861 = vld [vmem:[%s7 + $0x8] sm:$0xff]
        %v862 = vld [vmem:[%s7 + $0x10] sm:$0xff]
        %v863 = vld [vmem:[%s7 + $0x18] sm:$0xff]
        %v864 = vld [vmem:[%s7 + $0x20] sm:$0xff]
        %v865 = vld [vmem:[%s7 + $0x28] sm:$0xff]
        %v866 = vld [vmem:[%s7 + $0x30] sm:$0xff]
        %v867 = vld [vmem:[%s7 + $0x38] sm:$0xff]
        %v868 = vld [vmem:[%s7 + $0x40] sm:$0xff]
        %v869 = vld [vmem:[%s7 + $0x48] sm:$0xff]
        %v870 = vld [vmem:[%s7 + $0x50] sm:$0xff]
        %v871 = vld [vmem:[%s7 + $0x58] sm:$0xff]
        %v872 = vld [vmem:[%s7 + $0x60] sm:$0xff]
        %v873 = vld [vmem:[%s7 + $0x68] sm:$0xff]
        %v874 = vld [vmem:[%s7 + $0x70] sm:$0xff]
        %v875 = vld [vmem:[%s7 + $0x78] sm:$0xff]
        %876 = vxpose.xlu0.c.b16.start [1/8] %v857, 128
        %877 = vxpose.xlu0.c.b16.cont [2/8] 0, 128
        %878 = vxpose.xlu0.c.b16.cont [3/8] 0, 128
        %879 = vxpose.xlu0.c.b16.cont [4/8] 0, 128
        %880 = vxpose.xlu0.c.b16.cont [5/8] 0, 128
        %881 = vxpose.xlu0.c.b16.cont [6/8] 0, 128
        %882 = vxpose.xlu0.c.b16.cont [7/8] 0, 128
        %883 = vxpose.xlu0.c.b16.end [8/8] 0, 128
        %v884 = vpop.trf.xlu0
        %v885 = vpop.trf.xlu0
        %v886 = vpop.trf.xlu0
        %v887 = vpop.trf.xlu0
        %v888 = vpop.trf.xlu0
        %v889 = vpop.trf.xlu0
        %v890 = vpop.trf.xlu0
        %v891 = vpop.trf.xlu0
        %vm892 = vcmask 64512
        %v894 = vsel %vm892, %v884, 0
        %v897 = vsel %vm892, %v885, 0
        %v900 = vsel %vm892, %v886, 0
        %v903 = vsel %vm892, %v887, 0
        %v906 = vsel %vm892, %v888, 0
        %v909 = vsel %vm892, %v889, 0
        %v912 = vsel %vm892, %v890, 0
        %v915 = vsel %vm892, %v891, 0
        %vm917 = vcmask 1043456
        %v919 = vsel %vm917, %v858, 0
        %921 = vmatpush.bf16.msra.mxu0 0
        %922 = vmatpush.bf16.msra.mxu0 0
        %923 = vmatpush.bf16.msra.mxu0 0
        %924 = vmatpush.bf16.msra.mxu0 0
        %925 = vmatpush.bf16.msra.mxu0 0
        %926 = vmatpush.bf16.msra.mxu0 0
        %927 = vmatpush.bf16.msra.mxu0 0
        %928 = vmatpush.bf16.msra.mxu0 %v919
        %929 = vmatmul.bf16.gmra.mxu0 %v894
        %v930 = vpop.f32.mrf.mxu0
        %v931 = vadd.f32 %v860, %v930
        %v932 = vpop.f32.mrf.mxu0
        %v933 = vadd.f32 %v861, %v932
        %934 = vmatmul.bf16.gmra.mxu0 %v897
        %v935 = vpop.f32.mrf.mxu0
        %v936 = vadd.f32 %v862, %v935
        %v937 = vpop.f32.mrf.mxu0
        %v938 = vadd.f32 %v863, %v937
        %939 = vmatmul.bf16.gmra.mxu0 %v900
        %v940 = vpop.f32.mrf.mxu0
        %v941 = vadd.f32 %v864, %v940
        %v942 = vpop.f32.mrf.mxu0
        %v943 = vadd.f32 %v865, %v942
        %944 = vmatmul.bf16.gmra.mxu0 %v903
        %v945 = vpop.f32.mrf.mxu0
        %v946 = vadd.f32 %v866, %v945
        %v947 = vpop.f32.mrf.mxu0
        %v948 = vadd.f32 %v867, %v947
        %949 = vmatmul.bf16.gmra.mxu0 %v906
        %v950 = vpop.f32.mrf.mxu0
        %v951 = vadd.f32 %v868, %v950
        %v952 = vpop.f32.mrf.mxu0
        %v953 = vadd.f32 %v869, %v952
        %954 = vmatmul.bf16.gmra.mxu0 %v909
        %v955 = vpop.f32.mrf.mxu0
        %v956 = vadd.f32 %v870, %v955
        %v957 = vpop.f32.mrf.mxu0
        %v958 = vadd.f32 %v871, %v957
        %959 = vmatmul.bf16.gmra.mxu0 %v912
        %v960 = vpop.f32.mrf.mxu0
        %v961 = vadd.f32 %v872, %v960
        %v962 = vpop.f32.mrf.mxu0
        %v963 = vadd.f32 %v873, %v962
        %964 = vmatmul.bf16.gmra.mxu0 %v915
        %v965 = vpop.f32.mrf.mxu0
        %v966 = vadd.f32 %v874, %v965
        %v967 = vpop.f32.mrf.mxu0
        %v968 = vadd.f32 %v875, %v967
        %969 = vdwg.mxu0
        %v970 = vadd.f32 %v931, %v841
        %v971 = vadd.f32 %v933, %v842
        %v972 = vadd.f32 %v936, %v843
        %v973 = vadd.f32 %v938, %v844
        %v974 = vadd.f32 %v941, %v845
        %v975 = vadd.f32 %v943, %v846
        %v976 = vadd.f32 %v946, %v847
        %v977 = vadd.f32 %v948, %v848
        %v978 = vadd.f32 %v951, %v849
        %v979 = vadd.f32 %v953, %v850
        %v980 = vadd.f32 %v956, %v851
        %v981 = vadd.f32 %v958, %v852
        %v982 = vadd.f32 %v961, %v853
        %v983 = vadd.f32 %v963, %v854
        %v984 = vadd.f32 %v966, %v855
        %v985 = vadd.f32 %v968, %v856
        %986 = vmax.xlane.f32.xlu0 %v970
        %v987 = vpop.xlane.xlu0 %986
        %988 = vmax.xlane.f32.xlu0 %v971
        %v989 = vpop.xlane.xlu0 %988
        %990 = vmax.xlane.f32.xlu0 %v972
        %v991 = vpop.xlane.xlu0 %990
        %992 = vmax.xlane.f32.xlu0 %v973
        %v993 = vpop.xlane.xlu0 %992
        %994 = vmax.xlane.f32.xlu0 %v974
        %v995 = vpop.xlane.xlu0 %994
        %996 = vmax.xlane.f32.xlu0 %v975
        %v997 = vpop.xlane.xlu0 %996
        %998 = vmax.xlane.f32.xlu0 %v976
        %v999 = vpop.xlane.xlu0 %998
        %1000 = vmax.xlane.f32.xlu0 %v977
        %v1001 = vpop.xlane.xlu0 %1000
        %1002 = vmax.xlane.f32.xlu0 %v978
        %v1003 = vpop.xlane.xlu0 %1002
        %1004 = vmax.xlane.f32.xlu0 %v979
        %v1005 = vpop.xlane.xlu0 %1004
        %1006 = vmax.xlane.f32.xlu0 %v980
        %v1007 = vpop.xlane.xlu0 %1006
        %1008 = vmax.xlane.f32.xlu0 %v981
        %v1009 = vpop.xlane.xlu0 %1008
        %1010 = vmax.xlane.f32.xlu0 %v982
        %v1011 = vpop.xlane.xlu0 %1010
        %1012 = vmax.xlane.f32.xlu0 %v983
        %v1013 = vpop.xlane.xlu0 %1012
        %1014 = vmax.xlane.f32.xlu0 %v984
        %v1015 = vpop.xlane.xlu0 %1014
        %1016 = vmax.xlane.f32.xlu0 %v985
        %v1017 = vpop.xlane.xlu0 %1016
        %v1018 = vsub.f32 %v970, %v987
        %v1019 = vsub.f32 %v971, %v989
        %v1020 = vsub.f32 %v972, %v991
        %v1021 = vsub.f32 %v973, %v993
        %v1022 = vsub.f32 %v974, %v995
        %v1023 = vsub.f32 %v975, %v997
        %v1024 = vsub.f32 %v976, %v999
        %v1025 = vsub.f32 %v977, %v1001
        %v1026 = vsub.f32 %v978, %v1003
        %v1027 = vsub.f32 %v979, %v1005
        %v1028 = vsub.f32 %v980, %v1007
        %v1029 = vsub.f32 %v981, %v1009
        %v1030 = vsub.f32 %v982, %v1011
        %v1031 = vsub.f32 %v983, %v1013
        %v1032 = vsub.f32 %v984, %v1015
        %v1033 = vsub.f32 %v985, %v1017
        %v1034 = vmul.f32 %v1018, 1.442695
        %v1035 = vpow.pop %v1034
        %v1036 = vmul.f32 %v1019, 1.442695
        %v1037 = vpow.pop %v1036
        %v1038 = vmul.f32 %v1020, 1.442695
        %v1039 = vpow.pop %v1038
        %v1040 = vmul.f32 %v1021, 1.442695
        %v1041 = vpow.pop %v1040
        %v1042 = vmul.f32 %v1022, 1.442695
        %v1043 = vpow.pop %v1042
        %v1044 = vmul.f32 %v1023, 1.442695
        %v1045 = vpow.pop %v1044
        %v1046 = vmul.f32 %v1024, 1.442695
        %v1047 = vpow.pop %v1046
        %v1048 = vmul.f32 %v1025, 1.442695
        %v1049 = vpow.pop %v1048
        %v1050 = vmul.f32 %v1026, 1.442695
        %v1051 = vpow.pop %v1050
        %v1052 = vmul.f32 %v1027, 1.442695
        %v1053 = vpow.pop %v1052
        %v1054 = vmul.f32 %v1028, 1.442695
        %v1055 = vpow.pop %v1054
        %v1056 = vmul.f32 %v1029, 1.442695
        %v1057 = vpow.pop %v1056
        %v1058 = vmul.f32 %v1030, 1.442695
        %v1059 = vpow.pop %v1058
        %v1060 = vmul.f32 %v1031, 1.442695
        %v1061 = vpow.pop %v1060
        %v1062 = vmul.f32 %v1032, 1.442695
        %v1063 = vpow.pop %v1062
        %v1064 = vmul.f32 %v1033, 1.442695
        %v1065 = vpow.pop %v1064
        %1066 = vadd.xlane.f32.xlu0 %v1035
        %v1067 = vpop.xlane.xlu0 %1066
        %1068 = vadd.xlane.f32.xlu0 %v1037
        %v1069 = vpop.xlane.xlu0 %1068
        %1070 = vadd.xlane.f32.xlu0 %v1039
        %v1071 = vpop.xlane.xlu0 %1070
        %1072 = vadd.xlane.f32.xlu0 %v1041
        %v1073 = vpop.xlane.xlu0 %1072
        %1074 = vadd.xlane.f32.xlu0 %v1043
        %v1075 = vpop.xlane.xlu0 %1074
        %1076 = vadd.xlane.f32.xlu0 %v1045
        %v1077 = vpop.xlane.xlu0 %1076
        %1078 = vadd.xlane.f32.xlu0 %v1047
        %v1079 = vpop.xlane.xlu0 %1078
        %1080 = vadd.xlane.f32.xlu0 %v1049
        %v1081 = vpop.xlane.xlu0 %1080
        %1082 = vadd.xlane.f32.xlu0 %v1051
        %v1083 = vpop.xlane.xlu0 %1082
        %1084 = vadd.xlane.f32.xlu0 %v1053
        %v1085 = vpop.xlane.xlu0 %1084
        %1086 = vadd.xlane.f32.xlu0 %v1055
        %v1087 = vpop.xlane.xlu0 %1086
        %1088 = vadd.xlane.f32.xlu0 %v1057
        %v1089 = vpop.xlane.xlu0 %1088
        %1090 = vadd.xlane.f32.xlu0 %v1059
        %v1091 = vpop.xlane.xlu0 %1090
        %1092 = vadd.xlane.f32.xlu0 %v1061
        %v1093 = vpop.xlane.xlu0 %1092
        %1094 = vadd.xlane.f32.xlu0 %v1063
        %v1095 = vpop.xlane.xlu0 %1094
        %1096 = vadd.xlane.f32.xlu0 %v1065
        %v1097 = vpop.xlane.xlu0 %1096
        %v1098 = vrcp.pop %v1067
        %v1099 = vrcp.pop %v1069
        %v1100 = vrcp.pop %v1071
        %v1101 = vrcp.pop %v1073
        %v1102 = vrcp.pop %v1075
        %v1103 = vrcp.pop %v1077
        %v1104 = vrcp.pop %v1079
        %v1105 = vrcp.pop %v1081
        %v1106 = vrcp.pop %v1083
        %v1107 = vrcp.pop %v1085
        %v1108 = vrcp.pop %v1087
        %v1109 = vrcp.pop %v1089
        %v1110 = vrcp.pop %v1091
        %v1111 = vrcp.pop %v1093
        %v1112 = vrcp.pop %v1095
        %v1113 = vrcp.pop %v1097
        %v1114 = vmul.f32 %v1035, %v1098
        %v1115 = vmul.f32 %v1037, %v1099
        %v1116 = vmul.f32 %v1039, %v1100
        %v1117 = vmul.f32 %v1041, %v1101
        %v1118 = vmul.f32 %v1043, %v1102
        %v1119 = vmul.f32 %v1045, %v1103
        %v1120 = vmul.f32 %v1047, %v1104
        %v1121 = vmul.f32 %v1049, %v1105
        %v1122 = vmul.f32 %v1051, %v1106
        %v1123 = vmul.f32 %v1053, %v1107
        %v1124 = vmul.f32 %v1055, %v1108
        %v1125 = vmul.f32 %v1057, %v1109
        %v1126 = vmul.f32 %v1059, %v1110
        %v1127 = vmul.f32 %v1061, %v1111
        %v1128 = vmul.f32 %v1063, %v1112
        %v1129 = vmul.f32 %v1065, %v1113
        %v1130 = vpack.c.bf16 %v1115, %v1114
        %v1131 = vpack.c.bf16 %v1117, %v1116
        %v1132 = vpack.c.bf16 %v1119, %v1118
        %v1133 = vpack.c.bf16 %v1121, %v1120
        %v1134 = vpack.c.bf16 %v1123, %v1122
        %v1135 = vpack.c.bf16 %v1125, %v1124
        %v1136 = vpack.c.bf16 %v1127, %v1126
        %v1137 = vpack.c.bf16 %v1129, %v1128
        %1138 = vmatpush.bf16.xpose.msra.mxu0 %v1137
        %1139 = vmatpush.bf16.xpose.msra.mxu0 %v1136
        %1140 = vmatpush.bf16.xpose.msra.mxu0 %v1135
        %1141 = vmatpush.bf16.xpose.msra.mxu0 %v1134
        %1142 = vmatpush.bf16.xpose.msra.mxu0 %v1133
        %1143 = vmatpush.bf16.xpose.msra.mxu0 %v1132
        %1144 = vmatpush.bf16.xpose.msra.mxu0 %v1131
        %1145 = vmatpush.bf16.xpose.msra.mxu0 %v1130
        %1146 = vmatmul.bf16.gmra.mxu0 %v859
        %v1147 = vpop.f32.mrf.mxu0
        %v1148 = vadd.f32 0.0, %v1147
        %v1149 = vpop.f32.mrf.mxu0
        %1150 = vdwg.mxu0
        %v1151 = vpack.c.bf16 %v814, %v814
        %v1152 = vpack.c.bf16 %v824, %v824
        %v1153 = vpack.c.bf16 %v834, %v834
        %s1154 = scalar_lea.vmem %s7, 128
        %v1155 = vld [vmem:[%s1154] sm:$0xff]
        %v1156 = vld [vmem:[%s1154 + $0x8] sm:$0xff]
        %v1157 = vld [vmem:[%s1154 + $0x10] sm:$0xff]
        %v1158 = vld [vmem:[%s1154 + $0x18] sm:$0xff]
        %v1159 = vld [vmem:[%s1154 + $0x20] sm:$0xff]
        %v1160 = vld [vmem:[%s1154 + $0x28] sm:$0xff]
        %v1161 = vld [vmem:[%s1154 + $0x30] sm:$0xff]
        %v1162 = vld [vmem:[%s1154 + $0x38] sm:$0xff]
        %v1163 = vld [vmem:[%s1154 + $0x40] sm:$0xff]
        %v1164 = vld [vmem:[%s1154 + $0x48] sm:$0xff]
        %v1165 = vld [vmem:[%s1154 + $0x50] sm:$0xff]
        %v1166 = vld [vmem:[%s1154 + $0x58] sm:$0xff]
        %v1167 = vld [vmem:[%s1154 + $0x60] sm:$0xff]
        %v1168 = vld [vmem:[%s1154 + $0x68] sm:$0xff]
        %v1169 = vld [vmem:[%s1154 + $0x70] sm:$0xff]
        %v1170 = vld [vmem:[%s1154 + $0x78] sm:$0xff]
        %1171 = vxpose.xlu0.c.b16.start [1/8] %v1151, 128
        %1172 = vxpose.xlu0.c.b16.cont [2/8] 0, 128
        %1173 = vxpose.xlu0.c.b16.cont [3/8] 0, 128
        %1174 = vxpose.xlu0.c.b16.cont [4/8] 0, 128
        %1175 = vxpose.xlu0.c.b16.cont [5/8] 0, 128
        %1176 = vxpose.xlu0.c.b16.cont [6/8] 0, 128
        %1177 = vxpose.xlu0.c.b16.cont [7/8] 0, 128
        %1178 = vxpose.xlu0.c.b16.end [8/8] 0, 128
        %v1179 = vpop.trf.xlu0
        %v1180 = vpop.trf.xlu0
        %v1181 = vpop.trf.xlu0
        %v1182 = vpop.trf.xlu0
        %v1183 = vpop.trf.xlu0
        %v1184 = vpop.trf.xlu0
        %v1185 = vpop.trf.xlu0
        %v1186 = vpop.trf.xlu0
        %v1188 = vsel %vm892, %v1179, 0
        %v1191 = vsel %vm892, %v1180, 0
        %v1194 = vsel %vm892, %v1181, 0
        %v1197 = vsel %vm892, %v1182, 0
        %v1200 = vsel %vm892, %v1183, 0
        %v1203 = vsel %vm892, %v1184, 0
        %v1206 = vsel %vm892, %v1185, 0
        %v1209 = vsel %vm892, %v1186, 0
        %v1212 = vsel %vm917, %v1152, 0
        %1214 = vmatpush.bf16.msra.mxu0 0
        %1215 = vmatpush.bf16.msra.mxu0 0
        %1216 = vmatpush.bf16.msra.mxu0 0
        %1217 = vmatpush.bf16.msra.mxu0 0
        %1218 = vmatpush.bf16.msra.mxu0 0
        %1219 = vmatpush.bf16.msra.mxu0 0
        %1220 = vmatpush.bf16.msra.mxu0 0
        %1221 = vmatpush.bf16.msra.mxu0 %v1212
        %1222 = vmatmul.bf16.gmra.mxu0 %v1188
        %v1223 = vpop.f32.mrf.mxu0
        %v1224 = vadd.f32 %v1155, %v1223
        %v1225 = vpop.f32.mrf.mxu0
        %v1226 = vadd.f32 %v1156, %v1225
        %1227 = vmatmul.bf16.gmra.mxu0 %v1191
        %v1228 = vpop.f32.mrf.mxu0
        %v1229 = vadd.f32 %v1157, %v1228
        %v1230 = vpop.f32.mrf.mxu0
        %v1231 = vadd.f32 %v1158, %v1230
        %1232 = vmatmul.bf16.gmra.mxu0 %v1194
        %v1233 = vpop.f32.mrf.mxu0
        %v1234 = vadd.f32 %v1159, %v1233
        %v1235 = vpop.f32.mrf.mxu0
        %v1236 = vadd.f32 %v1160, %v1235
        %1237 = vmatmul.bf16.gmra.mxu0 %v1197
        %v1238 = vpop.f32.mrf.mxu0
        %v1239 = vadd.f32 %v1161, %v1238
        %v1240 = vpop.f32.mrf.mxu0
        %v1241 = vadd.f32 %v1162, %v1240
        %1242 = vmatmul.bf16.gmra.mxu0 %v1200
        %v1243 = vpop.f32.mrf.mxu0
        %v1244 = vadd.f32 %v1163, %v1243
        %v1245 = vpop.f32.mrf.mxu0
        %v1246 = vadd.f32 %v1164, %v1245
        %1247 = vmatmul.bf16.gmra.mxu0 %v1203
        %v1248 = vpop.f32.mrf.mxu0
        %v1249 = vadd.f32 %v1165, %v1248
        %v1250 = vpop.f32.mrf.mxu0
        %v1251 = vadd.f32 %v1166, %v1250
        %1252 = vmatmul.bf16.gmra.mxu0 %v1206
        %v1253 = vpop.f32.mrf.mxu0
        %v1254 = vadd.f32 %v1167, %v1253
        %v1255 = vpop.f32.mrf.mxu0
        %v1256 = vadd.f32 %v1168, %v1255
        %1257 = vmatmul.bf16.gmra.mxu0 %v1209
        %v1258 = vpop.f32.mrf.mxu0
        %v1259 = vadd.f32 %v1169, %v1258
        %v1260 = vpop.f32.mrf.mxu0
        %v1261 = vadd.f32 %v1170, %v1260
        %1262 = vdwg.mxu0
        %v1263 = vadd.f32 %v1224, %v841
        %v1264 = vadd.f32 %v1226, %v842
        %v1265 = vadd.f32 %v1229, %v843
        %v1266 = vadd.f32 %v1231, %v844
        %v1267 = vadd.f32 %v1234, %v845
        %v1268 = vadd.f32 %v1236, %v846
        %v1269 = vadd.f32 %v1239, %v847
        %v1270 = vadd.f32 %v1241, %v848
        %v1271 = vadd.f32 %v1244, %v849
        %v1272 = vadd.f32 %v1246, %v850
        %v1273 = vadd.f32 %v1249, %v851
        %v1274 = vadd.f32 %v1251, %v852
        %v1275 = vadd.f32 %v1254, %v853
        %v1276 = vadd.f32 %v1256, %v854
        %v1277 = vadd.f32 %v1259, %v855
        %v1278 = vadd.f32 %v1261, %v856
        %1279 = vmax.xlane.f32.xlu0 %v1263
        %v1280 = vpop.xlane.xlu0 %1279
        %1281 = vmax.xlane.f32.xlu0 %v1264
        %v1282 = vpop.xlane.xlu0 %1281
        %1283 = vmax.xlane.f32.xlu0 %v1265
        %v1284 = vpop.xlane.xlu0 %1283
        %1285 = vmax.xlane.f32.xlu0 %v1266
        %v1286 = vpop.xlane.xlu0 %1285
        %1287 = vmax.xlane.f32.xlu0 %v1267
        %v1288 = vpop.xlane.xlu0 %1287
        %1289 = vmax.xlane.f32.xlu0 %v1268
        %v1290 = vpop.xlane.xlu0 %1289
        %1291 = vmax.xlane.f32.xlu0 %v1269
        %v1292 = vpop.xlane.xlu0 %1291
        %1293 = vmax.xlane.f32.xlu0 %v1270
        %v1294 = vpop.xlane.xlu0 %1293
        %1295 = vmax.xlane.f32.xlu0 %v1271
        %v1296 = vpop.xlane.xlu0 %1295
        %1297 = vmax.xlane.f32.xlu0 %v1272
        %v1298 = vpop.xlane.xlu0 %1297
        %1299 = vmax.xlane.f32.xlu0 %v1273
        %v1300 = vpop.xlane.xlu0 %1299
        %1301 = vmax.xlane.f32.xlu0 %v1274
        %v1302 = vpop.xlane.xlu0 %1301
        %1303 = vmax.xlane.f32.xlu0 %v1275
        %v1304 = vpop.xlane.xlu0 %1303
        %1305 = vmax.xlane.f32.xlu0 %v1276
        %v1306 = vpop.xlane.xlu0 %1305
        %1307 = vmax.xlane.f32.xlu0 %v1277
        %v1308 = vpop.xlane.xlu0 %1307
        %1309 = vmax.xlane.f32.xlu0 %v1278
        %v1310 = vpop.xlane.xlu0 %1309
        %v1311 = vsub.f32 %v1263, %v1280
        %v1312 = vsub.f32 %v1264, %v1282
        %v1313 = vsub.f32 %v1265, %v1284
        %v1314 = vsub.f32 %v1266, %v1286
        %v1315 = vsub.f32 %v1267, %v1288
        %v1316 = vsub.f32 %v1268, %v1290
        %v1317 = vsub.f32 %v1269, %v1292
        %v1318 = vsub.f32 %v1270, %v1294
        %v1319 = vsub.f32 %v1271, %v1296
        %v1320 = vsub.f32 %v1272, %v1298
        %v1321 = vsub.f32 %v1273, %v1300
        %v1322 = vsub.f32 %v1274, %v1302
        %v1323 = vsub.f32 %v1275, %v1304
        %v1324 = vsub.f32 %v1276, %v1306
        %v1325 = vsub.f32 %v1277, %v1308
        %v1326 = vsub.f32 %v1278, %v1310
        %v1327 = vmul.f32 %v1311, 1.442695
        %v1328 = vpow.pop %v1327
        %v1329 = vmul.f32 %v1312, 1.442695
        %v1330 = vpow.pop %v1329
        %v1331 = vmul.f32 %v1313, 1.442695
        %v1332 = vpow.pop %v1331
        %v1333 = vmul.f32 %v1314, 1.442695
        %v1334 = vpow.pop %v1333
        %v1335 = vmul.f32 %v1315, 1.442695
        %v1336 = vpow.pop %v1335
        %v1337 = vmul.f32 %v1316, 1.442695
        %v1338 = vpow.pop %v1337
        %v1339 = vmul.f32 %v1317, 1.442695
        %v1340 = vpow.pop %v1339
        %v1341 = vmul.f32 %v1318, 1.442695
        %v1342 = vpow.pop %v1341
        %v1343 = vmul.f32 %v1319, 1.442695
        %v1344 = vpow.pop %v1343
        %v1345 = vmul.f32 %v1320, 1.442695
        %v1346 = vpow.pop %v1345
        %v1347 = vmul.f32 %v1321, 1.442695
        %v1348 = vpow.pop %v1347
        %v1349 = vmul.f32 %v1322, 1.442695
        %v1350 = vpow.pop %v1349
        %v1351 = vmul.f32 %v1323, 1.442695
        %v1352 = vpow.pop %v1351
        %v1353 = vmul.f32 %v1324, 1.442695
        %v1354 = vpow.pop %v1353
        %v1355 = vmul.f32 %v1325, 1.442695
        %v1356 = vpow.pop %v1355
        %v1357 = vmul.f32 %v1326, 1.442695
        %v1358 = vpow.pop %v1357
        %1359 = vadd.xlane.f32.xlu0 %v1328
        %v1360 = vpop.xlane.xlu0 %1359
        %1361 = vadd.xlane.f32.xlu0 %v1330
        %v1362 = vpop.xlane.xlu0 %1361
        %1363 = vadd.xlane.f32.xlu0 %v1332
        %v1364 = vpop.xlane.xlu0 %1363
        %1365 = vadd.xlane.f32.xlu0 %v1334
        %v1366 = vpop.xlane.xlu0 %1365
        %1367 = vadd.xlane.f32.xlu0 %v1336
        %v1368 = vpop.xlane.xlu0 %1367
        %1369 = vadd.xlane.f32.xlu0 %v1338
        %v1370 = vpop.xlane.xlu0 %1369
        %1371 = vadd.xlane.f32.xlu0 %v1340
        %v1372 = vpop.xlane.xlu0 %1371
        %1373 = vadd.xlane.f32.xlu0 %v1342
        %v1374 = vpop.xlane.xlu0 %1373
        %1375 = vadd.xlane.f32.xlu0 %v1344
        %v1376 = vpop.xlane.xlu0 %1375
        %1377 = vadd.xlane.f32.xlu0 %v1346
        %v1378 = vpop.xlane.xlu0 %1377
        %1379 = vadd.xlane.f32.xlu0 %v1348
        %v1380 = vpop.xlane.xlu0 %1379
        %1381 = vadd.xlane.f32.xlu0 %v1350
        %v1382 = vpop.xlane.xlu0 %1381
        %1383 = vadd.xlane.f32.xlu0 %v1352
        %v1384 = vpop.xlane.xlu0 %1383
        %1385 = vadd.xlane.f32.xlu0 %v1354
        %v1386 = vpop.xlane.xlu0 %1385
        %1387 = vadd.xlane.f32.xlu0 %v1356
        %v1388 = vpop.xlane.xlu0 %1387
        %1389 = vadd.xlane.f32.xlu0 %v1358
        %v1390 = vpop.xlane.xlu0 %1389
        %v1391 = vrcp.pop %v1360
        %v1392 = vrcp.pop %v1362
        %v1393 = vrcp.pop %v1364
        %v1394 = vrcp.pop %v1366
        %v1395 = vrcp.pop %v1368
        %v1396 = vrcp.pop %v1370
        %v1397 = vrcp.pop %v1372
        %v1398 = vrcp.pop %v1374
        %v1399 = vrcp.pop %v1376
        %v1400 = vrcp.pop %v1378
        %v1401 = vrcp.pop %v1380
        %v1402 = vrcp.pop %v1382
        %v1403 = vrcp.pop %v1384
        %v1404 = vrcp.pop %v1386
        %v1405 = vrcp.pop %v1388
        %v1406 = vrcp.pop %v1390
        %v1407 = vmul.f32 %v1328, %v1391
        %v1408 = vmul.f32 %v1330, %v1392
        %v1409 = vmul.f32 %v1332, %v1393
        %v1410 = vmul.f32 %v1334, %v1394
        %v1411 = vmul.f32 %v1336, %v1395
        %v1412 = vmul.f32 %v1338, %v1396
        %v1413 = vmul.f32 %v1340, %v1397
        %v1414 = vmul.f32 %v1342, %v1398
        %v1415 = vmul.f32 %v1344, %v1399
        %v1416 = vmul.f32 %v1346, %v1400
        %v1417 = vmul.f32 %v1348, %v1401
        %v1418 = vmul.f32 %v1350, %v1402
        %v1419 = vmul.f32 %v1352, %v1403
        %v1420 = vmul.f32 %v1354, %v1404
        %v1421 = vmul.f32 %v1356, %v1405
        %v1422 = vmul.f32 %v1358, %v1406
        %v1423 = vpack.c.bf16 %v1408, %v1407
        %v1424 = vpack.c.bf16 %v1410, %v1409
        %v1425 = vpack.c.bf16 %v1412, %v1411
        %v1426 = vpack.c.bf16 %v1414, %v1413
        %v1427 = vpack.c.bf16 %v1416, %v1415
        %v1428 = vpack.c.bf16 %v1418, %v1417
        %v1429 = vpack.c.bf16 %v1420, %v1419
        %v1430 = vpack.c.bf16 %v1422, %v1421
        %1431 = vmatpush.bf16.xpose.msra.mxu0 %v1430
        %1432 = vmatpush.bf16.xpose.msra.mxu0 %v1429
        %1433 = vmatpush.bf16.xpose.msra.mxu0 %v1428
        %1434 = vmatpush.bf16.xpose.msra.mxu0 %v1427
        %1435 = vmatpush.bf16.xpose.msra.mxu0 %v1426
        %1436 = vmatpush.bf16.xpose.msra.mxu0 %v1425
        %1437 = vmatpush.bf16.xpose.msra.mxu0 %v1424
        %1438 = vmatpush.bf16.xpose.msra.mxu0 %v1423
        %1439 = vmatmul.bf16.gmra.mxu0 %v1153
        %v1440 = vpop.f32.mrf.mxu0
        %v1441 = vadd.f32 0.0, %v1440
        %v1442 = vpop.f32.mrf.mxu0
        %1443 = vdwg.mxu0
        %v1444 = vpack.c.bf16 %v817, %v817
        %v1445 = vpack.c.bf16 %v827, %v827
        %v1446 = vpack.c.bf16 %v837, %v837
        %s1447 = scalar_lea.vmem %s7, 256
        %v1448 = vld [vmem:[%s1447] sm:$0xff]
        %v1449 = vld [vmem:[%s1447 + $0x8] sm:$0xff]
        %v1450 = vld [vmem:[%s1447 + $0x10] sm:$0xff]
        %v1451 = vld [vmem:[%s1447 + $0x18] sm:$0xff]
        %v1452 = vld [vmem:[%s1447 + $0x20] sm:$0xff]
        %v1453 = vld [vmem:[%s1447 + $0x28] sm:$0xff]
        %v1454 = vld [vmem:[%s1447 + $0x30] sm:$0xff]
        %v1455 = vld [vmem:[%s1447 + $0x38] sm:$0xff]
        %v1456 = vld [vmem:[%s1447 + $0x40] sm:$0xff]
        %v1457 = vld [vmem:[%s1447 + $0x48] sm:$0xff]
        %v1458 = vld [vmem:[%s1447 + $0x50] sm:$0xff]
        %v1459 = vld [vmem:[%s1447 + $0x58] sm:$0xff]
        %v1460 = vld [vmem:[%s1447 + $0x60] sm:$0xff]
        %v1461 = vld [vmem:[%s1447 + $0x68] sm:$0xff]
        %v1462 = vld [vmem:[%s1447 + $0x70] sm:$0xff]
        %v1463 = vld [vmem:[%s1447 + $0x78] sm:$0xff]
        %1464 = vxpose.xlu0.c.b16.start [1/8] %v1444, 128
        %1465 = vxpose.xlu0.c.b16.cont [2/8] 0, 128
        %1466 = vxpose.xlu0.c.b16.cont [3/8] 0, 128
        %1467 = vxpose.xlu0.c.b16.cont [4/8] 0, 128
        %1468 = vxpose.xlu0.c.b16.cont [5/8] 0, 128
        %1469 = vxpose.xlu0.c.b16.cont [6/8] 0, 128
        %1470 = vxpose.xlu0.c.b16.cont [7/8] 0, 128
        %1471 = vxpose.xlu0.c.b16.end [8/8] 0, 128
        %v1472 = vpop.trf.xlu0
        %v1473 = vpop.trf.xlu0
        %v1474 = vpop.trf.xlu0
        %v1475 = vpop.trf.xlu0
        %v1476 = vpop.trf.xlu0
        %v1477 = vpop.trf.xlu0
        %v1478 = vpop.trf.xlu0
        %v1479 = vpop.trf.xlu0
        %v1481 = vsel %vm892, %v1472, 0
        %v1484 = vsel %vm892, %v1473, 0
        %v1487 = vsel %vm892, %v1474, 0
        %v1490 = vsel %vm892, %v1475, 0
        %v1493 = vsel %vm892, %v1476, 0
        %v1496 = vsel %vm892, %v1477, 0
        %v1499 = vsel %vm892, %v1478, 0
        %v1502 = vsel %vm892, %v1479, 0
        %v1505 = vsel %vm917, %v1445, 0
        %1507 = vmatpush.bf16.msra.mxu0 0
        %1508 = vmatpush.bf16.msra.mxu0 0
        %1509 = vmatpush.bf16.msra.mxu0 0
        %1510 = vmatpush.bf16.msra.mxu0 0
        %1511 = vmatpush.bf16.msra.mxu0 0
        %1512 = vmatpush.bf16.msra.mxu0 0
        %1513 = vmatpush.bf16.msra.mxu0 0
        %1514 = vmatpush.bf16.msra.mxu0 %v1505
        %1515 = vmatmul.bf16.gmra.mxu0 %v1481
        %v1516 = vpop.f32.mrf.mxu0
        %v1517 = vadd.f32 %v1448, %v1516
        %v1518 = vpop.f32.mrf.mxu0
        %v1519 = vadd.f32 %v1449, %v1518
        %1520 = vmatmul.bf16.gmra.mxu0 %v1484
        %v1521 = vpop.f32.mrf.mxu0
        %v1522 = vadd.f32 %v1450, %v1521
        %v1523 = vpop.f32.mrf.mxu0
        %v1524 = vadd.f32 %v1451, %v1523
        %1525 = vmatmul.bf16.gmra.mxu0 %v1487
        %v1526 = vpop.f32.mrf.mxu0
        %v1527 = vadd.f32 %v1452, %v1526
        %v1528 = vpop.f32.mrf.mxu0
        %v1529 = vadd.f32 %v1453, %v1528
        %1530 = vmatmul.bf16.gmra.mxu0 %v1490
        %v1531 = vpop.f32.mrf.mxu0
        %v1532 = vadd.f32 %v1454, %v1531
        %v1533 = vpop.f32.mrf.mxu0
        %v1534 = vadd.f32 %v1455, %v1533
        %1535 = vmatmul.bf16.gmra.mxu0 %v1493
        %v1536 = vpop.f32.mrf.mxu0
        %v1537 = vadd.f32 %v1456, %v1536
        %v1538 = vpop.f32.mrf.mxu0
        %v1539 = vadd.f32 %v1457, %v1538
        %1540 = vmatmul.bf16.gmra.mxu0 %v1496
        %v1541 = vpop.f32.mrf.mxu0
        %v1542 = vadd.f32 %v1458, %v1541
        %v1543 = vpop.f32.mrf.mxu0
        %v1544 = vadd.f32 %v1459, %v1543
        %1545 = vmatmul.bf16.gmra.mxu0 %v1499
        %v1546 = vpop.f32.mrf.mxu0
        %v1547 = vadd.f32 %v1460, %v1546
        %v1548 = vpop.f32.mrf.mxu0
        %v1549 = vadd.f32 %v1461, %v1548
        %1550 = vmatmul.bf16.gmra.mxu0 %v1502
        %v1551 = vpop.f32.mrf.mxu0
        %v1552 = vadd.f32 %v1462, %v1551
        %v1553 = vpop.f32.mrf.mxu0
        %v1554 = vadd.f32 %v1463, %v1553
        %1555 = vdwg.mxu0
        %v1556 = vadd.f32 %v1517, %v841
        %v1557 = vadd.f32 %v1519, %v842
        %v1558 = vadd.f32 %v1522, %v843
        %v1559 = vadd.f32 %v1524, %v844
        %v1560 = vadd.f32 %v1527, %v845
        %v1561 = vadd.f32 %v1529, %v846
        %v1562 = vadd.f32 %v1532, %v847
        %v1563 = vadd.f32 %v1534, %v848
        %v1564 = vadd.f32 %v1537, %v849
        %v1565 = vadd.f32 %v1539, %v850
        %v1566 = vadd.f32 %v1542, %v851
        %v1567 = vadd.f32 %v1544, %v852
        %v1568 = vadd.f32 %v1547, %v853
        %v1569 = vadd.f32 %v1549, %v854
        %v1570 = vadd.f32 %v1552, %v855
        %v1571 = vadd.f32 %v1554, %v856
        %1572 = vmax.xlane.f32.xlu0 %v1556
        %v1573 = vpop.xlane.xlu0 %1572
        %1574 = vmax.xlane.f32.xlu0 %v1557
        %v1575 = vpop.xlane.xlu0 %1574
        %1576 = vmax.xlane.f32.xlu0 %v1558
        %v1577 = vpop.xlane.xlu0 %1576
        %1578 = vmax.xlane.f32.xlu0 %v1559
        %v1579 = vpop.xlane.xlu0 %1578
        %1580 = vmax.xlane.f32.xlu0 %v1560
        %v1581 = vpop.xlane.xlu0 %1580
        %1582 = vmax.xlane.f32.xlu0 %v1561
        %v1583 = vpop.xlane.xlu0 %1582
        %1584 = vmax.xlane.f32.xlu0 %v1562
        %v1585 = vpop.xlane.xlu0 %1584
        %1586 = vmax.xlane.f32.xlu0 %v1563
        %v1587 = vpop.xlane.xlu0 %1586
        %1588 = vmax.xlane.f32.xlu0 %v1564
        %v1589 = vpop.xlane.xlu0 %1588
        %1590 = vmax.xlane.f32.xlu0 %v1565
        %v1591 = vpop.xlane.xlu0 %1590
        %1592 = vmax.xlane.f32.xlu0 %v1566
        %v1593 = vpop.xlane.xlu0 %1592
        %1594 = vmax.xlane.f32.xlu0 %v1567
        %v1595 = vpop.xlane.xlu0 %1594
        %1596 = vmax.xlane.f32.xlu0 %v1568
        %v1597 = vpop.xlane.xlu0 %1596
        %1598 = vmax.xlane.f32.xlu0 %v1569
        %v1599 = vpop.xlane.xlu0 %1598
        %1600 = vmax.xlane.f32.xlu0 %v1570
        %v1601 = vpop.xlane.xlu0 %1600
        %1602 = vmax.xlane.f32.xlu0 %v1571
        %v1603 = vpop.xlane.xlu0 %1602
        %v1604 = vsub.f32 %v1556, %v1573
        %v1605 = vsub.f32 %v1557, %v1575
        %v1606 = vsub.f32 %v1558, %v1577
        %v1607 = vsub.f32 %v1559, %v1579
        %v1608 = vsub.f32 %v1560, %v1581
        %v1609 = vsub.f32 %v1561, %v1583
        %v1610 = vsub.f32 %v1562, %v1585
        %v1611 = vsub.f32 %v1563, %v1587
        %v1612 = vsub.f32 %v1564, %v1589
        %v1613 = vsub.f32 %v1565, %v1591
        %v1614 = vsub.f32 %v1566, %v1593
        %v1615 = vsub.f32 %v1567, %v1595
        %v1616 = vsub.f32 %v1568, %v1597
        %v1617 = vsub.f32 %v1569, %v1599
        %v1618 = vsub.f32 %v1570, %v1601
        %v1619 = vsub.f32 %v1571, %v1603
        %v1620 = vmul.f32 %v1604, 1.442695
        %v1621 = vpow.pop %v1620
        %v1622 = vmul.f32 %v1605, 1.442695
        %v1623 = vpow.pop %v1622
        %v1624 = vmul.f32 %v1606, 1.442695
        %v1625 = vpow.pop %v1624
        %v1626 = vmul.f32 %v1607, 1.442695
        %v1627 = vpow.pop %v1626
        %v1628 = vmul.f32 %v1608, 1.442695
        %v1629 = vpow.pop %v1628
        %v1630 = vmul.f32 %v1609, 1.442695
        %v1631 = vpow.pop %v1630
        %v1632 = vmul.f32 %v1610, 1.442695
        %v1633 = vpow.pop %v1632
        %v1634 = vmul.f32 %v1611, 1.442695
        %v1635 = vpow.pop %v1634
        %v1636 = vmul.f32 %v1612, 1.442695
        %v1637 = vpow.pop %v1636
        %v1638 = vmul.f32 %v1613, 1.442695
        %v1639 = vpow.pop %v1638
        %v1640 = vmul.f32 %v1614, 1.442695
        %v1641 = vpow.pop %v1640
        %v1642 = vmul.f32 %v1615, 1.442695
        %v1643 = vpow.pop %v1642
        %v1644 = vmul.f32 %v1616, 1.442695
        %v1645 = vpow.pop %v1644
        %v1646 = vmul.f32 %v1617, 1.442695
        %v1647 = vpow.pop %v1646
        %v1648 = vmul.f32 %v1618, 1.442695
        %v1649 = vpow.pop %v1648
        %v1650 = vmul.f32 %v1619, 1.442695
        %v1651 = vpow.pop %v1650
        %1652 = vadd.xlane.f32.xlu0 %v1621
        %v1653 = vpop.xlane.xlu0 %1652
        %1654 = vadd.xlane.f32.xlu0 %v1623
        %v1655 = vpop.xlane.xlu0 %1654
        %1656 = vadd.xlane.f32.xlu0 %v1625
        %v1657 = vpop.xlane.xlu0 %1656
        %1658 = vadd.xlane.f32.xlu0 %v1627
        %v1659 = vpop.xlane.xlu0 %1658
        %1660 = vadd.xlane.f32.xlu0 %v1629
        %v1661 = vpop.xlane.xlu0 %1660
        %1662 = vadd.xlane.f32.xlu0 %v1631
        %v1663 = vpop.xlane.xlu0 %1662
        %1664 = vadd.xlane.f32.xlu0 %v1633
        %v1665 = vpop.xlane.xlu0 %1664
        %1666 = vadd.xlane.f32.xlu0 %v1635
        %v1667 = vpop.xlane.xlu0 %1666
        %1668 = vadd.xlane.f32.xlu0 %v1637
        %v1669 = vpop.xlane.xlu0 %1668
        %1670 = vadd.xlane.f32.xlu0 %v1639
        %v1671 = vpop.xlane.xlu0 %1670
        %1672 = vadd.xlane.f32.xlu0 %v1641
        %v1673 = vpop.xlane.xlu0 %1672
        %1674 = vadd.xlane.f32.xlu0 %v1643
        %v1675 = vpop.xlane.xlu0 %1674
        %1676 = vadd.xlane.f32.xlu0 %v1645
        %v1677 = vpop.xlane.xlu0 %1676
        %1678 = vadd.xlane.f32.xlu0 %v1647
        %v1679 = vpop.xlane.xlu0 %1678
        %1680 = vadd.xlane.f32.xlu0 %v1649
        %v1681 = vpop.xlane.xlu0 %1680
        %1682 = vadd.xlane.f32.xlu0 %v1651
        %v1683 = vpop.xlane.xlu0 %1682
        %v1684 = vrcp.pop %v1653
        %v1685 = vrcp.pop %v1655
        %v1686 = vrcp.pop %v1657
        %v1687 = vrcp.pop %v1659
        %v1688 = vrcp.pop %v1661
        %v1689 = vrcp.pop %v1663
        %v1690 = vrcp.pop %v1665
        %v1691 = vrcp.pop %v1667
        %v1692 = vrcp.pop %v1669
        %v1693 = vrcp.pop %v1671
        %v1694 = vrcp.pop %v1673
        %v1695 = vrcp.pop %v1675
        %v1696 = vrcp.pop %v1677
        %v1697 = vrcp.pop %v1679
        %v1698 = vrcp.pop %v1681
        %v1699 = vrcp.pop %v1683
        %v1700 = vmul.f32 %v1621, %v1684
        %v1701 = vmul.f32 %v1623, %v1685
        %v1702 = vmul.f32 %v1625, %v1686
        %v1703 = vmul.f32 %v1627, %v1687
        %v1704 = vmul.f32 %v1629, %v1688
        %v1705 = vmul.f32 %v1631, %v1689
        %v1706 = vmul.f32 %v1633, %v1690
        %v1707 = vmul.f32 %v1635, %v1691
        %v1708 = vmul.f32 %v1637, %v1692
        %v1709 = vmul.f32 %v1639, %v1693
        %v1710 = vmul.f32 %v1641, %v1694
        %v1711 = vmul.f32 %v1643, %v1695
        %v1712 = vmul.f32 %v1645, %v1696
        %v1713 = vmul.f32 %v1647, %v1697
        %v1714 = vmul.f32 %v1649, %v1698
        %v1715 = vmul.f32 %v1651, %v1699
        %v1716 = vpack.c.bf16 %v1701, %v1700
        %v1717 = vpack.c.bf16 %v1703, %v1702
        %v1718 = vpack.c.bf16 %v1705, %v1704
        %v1719 = vpack.c.bf16 %v1707, %v1706
        %v1720 = vpack.c.bf16 %v1709, %v1708
        %v1721 = vpack.c.bf16 %v1711, %v1710
        %v1722 = vpack.c.bf16 %v1713, %v1712
        %v1723 = vpack.c.bf16 %v1715, %v1714
        %1724 = vmatpush.bf16.xpose.msra.mxu0 %v1723
        %1725 = vmatpush.bf16.xpose.msra.mxu0 %v1722
        %1726 = vmatpush.bf16.xpose.msra.mxu0 %v1721
        %1727 = vmatpush.bf16.xpose.msra.mxu0 %v1720
        %1728 = vmatpush.bf16.xpose.msra.mxu0 %v1719
        %1729 = vmatpush.bf16.xpose.msra.mxu0 %v1718
        %1730 = vmatpush.bf16.xpose.msra.mxu0 %v1717
        %1731 = vmatpush.bf16.xpose.msra.mxu0 %v1716
        %1732 = vmatmul.bf16.gmra.mxu0 %v1446
        %v1733 = vpop.f32.mrf.mxu0
        %v1734 = vadd.f32 0.0, %v1733
        %v1735 = vpop.f32.mrf.mxu0
        %1736 = vdwg.mxu0
        %v1737 = vpack.c.bf16 %v819, %v819
        %v1738 = vpack.c.bf16 %v829, %v829
        %v1739 = vpack.c.bf16 %v839, %v839
        %s1740 = scalar_lea.vmem %s7, 384
        %v1741 = vld [vmem:[%s1740] sm:$0xff]
        %v1742 = vld [vmem:[%s1740 + $0x8] sm:$0xff]
        %v1743 = vld [vmem:[%s1740 + $0x10] sm:$0xff]
        %v1744 = vld [vmem:[%s1740 + $0x18] sm:$0xff]
        %v1745 = vld [vmem:[%s1740 + $0x20] sm:$0xff]
        %v1746 = vld [vmem:[%s1740 + $0x28] sm:$0xff]
        %v1747 = vld [vmem:[%s1740 + $0x30] sm:$0xff]
        %v1748 = vld [vmem:[%s1740 + $0x38] sm:$0xff]
        %v1749 = vld [vmem:[%s1740 + $0x40] sm:$0xff]
        %v1750 = vld [vmem:[%s1740 + $0x48] sm:$0xff]
        %v1751 = vld [vmem:[%s1740 + $0x50] sm:$0xff]
        %v1752 = vld [vmem:[%s1740 + $0x58] sm:$0xff]
        %v1753 = vld [vmem:[%s1740 + $0x60] sm:$0xff]
        %v1754 = vld [vmem:[%s1740 + $0x68] sm:$0xff]
        %v1755 = vld [vmem:[%s1740 + $0x70] sm:$0xff]
        %v1756 = vld [vmem:[%s1740 + $0x78] sm:$0xff]
        %1757 = vxpose.xlu0.c.b16.start [1/8] %v1737, 128
        %1758 = vxpose.xlu0.c.b16.cont [2/8] 0, 128
        %1759 = vxpose.xlu0.c.b16.cont [3/8] 0, 128
        %1760 = vxpose.xlu0.c.b16.cont [4/8] 0, 128
        %1761 = vxpose.xlu0.c.b16.cont [5/8] 0, 128
        %1762 = vxpose.xlu0.c.b16.cont [6/8] 0, 128
        %1763 = vxpose.xlu0.c.b16.cont [7/8] 0, 128
        %1764 = vxpose.xlu0.c.b16.end [8/8] 0, 128
        %v1765 = vpop.trf.xlu0
        %v1766 = vpop.trf.xlu0
        %v1767 = vpop.trf.xlu0
        %v1768 = vpop.trf.xlu0
        %v1769 = vpop.trf.xlu0
        %v1770 = vpop.trf.xlu0
        %v1771 = vpop.trf.xlu0
        %v1772 = vpop.trf.xlu0
        %v1774 = vsel %vm892, %v1765, 0
        %v1777 = vsel %vm892, %v1766, 0
        %v1780 = vsel %vm892, %v1767, 0
        %v1783 = vsel %vm892, %v1768, 0
        %v1786 = vsel %vm892, %v1769, 0
        %v1789 = vsel %vm892, %v1770, 0
        %v1792 = vsel %vm892, %v1771, 0
        %v1795 = vsel %vm892, %v1772, 0
        %v1798 = vsel %vm917, %v1738, 0
        %1800 = vmatpush.bf16.msra.mxu0 0
        %1801 = vmatpush.bf16.msra.mxu0 0
        %1802 = vmatpush.bf16.msra.mxu0 0
        %1803 = vmatpush.bf16.msra.mxu0 0
        %1804 = vmatpush.bf16.msra.mxu0 0
        %1805 = vmatpush.bf16.msra.mxu0 0
        %1806 = vmatpush.bf16.msra.mxu0 0
        %1807 = vmatpush.bf16.msra.mxu0 %v1798
        %1808 = vmatmul.bf16.gmra.mxu0 %v1774
        %v1809 = vpop.f32.mrf.mxu0
        %v1810 = vadd.f32 %v1741, %v1809
        %v1811 = vpop.f32.mrf.mxu0
        %v1812 = vadd.f32 %v1742, %v1811
        %1813 = vmatmul.bf16.gmra.mxu0 %v1777
        %v1814 = vpop.f32.mrf.mxu0
        %v1815 = vadd.f32 %v1743, %v1814
        %v1816 = vpop.f32.mrf.mxu0
        %v1817 = vadd.f32 %v1744, %v1816
        %1818 = vmatmul.bf16.gmra.mxu0 %v1780
        %v1819 = vpop.f32.mrf.mxu0
        %v1820 = vadd.f32 %v1745, %v1819
        %v1821 = vpop.f32.mrf.mxu0
        %v1822 = vadd.f32 %v1746, %v1821
        %1823 = vmatmul.bf16.gmra.mxu0 %v1783
        %v1824 = vpop.f32.mrf.mxu0
        %v1825 = vadd.f32 %v1747, %v1824
        %v1826 = vpop.f32.mrf.mxu0
        %v1827 = vadd.f32 %v1748, %v1826
        %1828 = vmatmul.bf16.gmra.mxu0 %v1786
        %v1829 = vpop.f32.mrf.mxu0
        %v1830 = vadd.f32 %v1749, %v1829
        %v1831 = vpop.f32.mrf.mxu0
        %v1832 = vadd.f32 %v1750, %v1831
        %1833 = vmatmul.bf16.gmra.mxu0 %v1789
        %v1834 = vpop.f32.mrf.mxu0
        %v1835 = vadd.f32 %v1751, %v1834
        %v1836 = vpop.f32.mrf.mxu0
        %v1837 = vadd.f32 %v1752, %v1836
        %1838 = vmatmul.bf16.gmra.mxu0 %v1792
        %v1839 = vpop.f32.mrf.mxu0
        %v1840 = vadd.f32 %v1753, %v1839
        %v1841 = vpop.f32.mrf.mxu0
        %v1842 = vadd.f32 %v1754, %v1841
        %1843 = vmatmul.bf16.gmra.mxu0 %v1795
        %v1844 = vpop.f32.mrf.mxu0
        %v1845 = vadd.f32 %v1755, %v1844
        %v1846 = vpop.f32.mrf.mxu0
        %v1847 = vadd.f32 %v1756, %v1846
        %1848 = vdwg.mxu0
        %v1849 = vadd.f32 %v1810, %v841
        %v1850 = vadd.f32 %v1812, %v842
        %v1851 = vadd.f32 %v1815, %v843
        %v1852 = vadd.f32 %v1817, %v844
        %v1853 = vadd.f32 %v1820, %v845
        %v1854 = vadd.f32 %v1822, %v846
        %v1855 = vadd.f32 %v1825, %v847
        %v1856 = vadd.f32 %v1827, %v848
        %v1857 = vadd.f32 %v1830, %v849
        %v1858 = vadd.f32 %v1832, %v850
        %v1859 = vadd.f32 %v1835, %v851
        %v1860 = vadd.f32 %v1837, %v852
        %v1861 = vadd.f32 %v1840, %v853
        %v1862 = vadd.f32 %v1842, %v854
        %v1863 = vadd.f32 %v1845, %v855
        %v1864 = vadd.f32 %v1847, %v856
        %1865 = vmax.xlane.f32.xlu0 %v1849
        %v1866 = vpop.xlane.xlu0 %1865
        %1867 = vmax.xlane.f32.xlu0 %v1850
        %v1868 = vpop.xlane.xlu0 %1867
        %1869 = vmax.xlane.f32.xlu0 %v1851
        %v1870 = vpop.xlane.xlu0 %1869
        %1871 = vmax.xlane.f32.xlu0 %v1852
        %v1872 = vpop.xlane.xlu0 %1871
        %1873 = vmax.xlane.f32.xlu0 %v1853
        %v1874 = vpop.xlane.xlu0 %1873
        %1875 = vmax.xlane.f32.xlu0 %v1854
        %v1876 = vpop.xlane.xlu0 %1875
        %1877 = vmax.xlane.f32.xlu0 %v1855
        %v1878 = vpop.xlane.xlu0 %1877
        %1879 = vmax.xlane.f32.xlu0 %v1856
        %v1880 = vpop.xlane.xlu0 %1879
        %1881 = vmax.xlane.f32.xlu0 %v1857
        %v1882 = vpop.xlane.xlu0 %1881
        %1883 = vmax.xlane.f32.xlu0 %v1858
        %v1884 = vpop.xlane.xlu0 %1883
        %1885 = vmax.xlane.f32.xlu0 %v1859
        %v1886 = vpop.xlane.xlu0 %1885
        %1887 = vmax.xlane.f32.xlu0 %v1860
        %v1888 = vpop.xlane.xlu0 %1887
        %1889 = vmax.xlane.f32.xlu0 %v1861
        %v1890 = vpop.xlane.xlu0 %1889
        %1891 = vmax.xlane.f32.xlu0 %v1862
        %v1892 = vpop.xlane.xlu0 %1891
        %1893 = vmax.xlane.f32.xlu0 %v1863
        %v1894 = vpop.xlane.xlu0 %1893
        %1895 = vmax.xlane.f32.xlu0 %v1864
        %v1896 = vpop.xlane.xlu0 %1895
        %v1897 = vsub.f32 %v1849, %v1866
        %v1898 = vsub.f32 %v1850, %v1868
        %v1899 = vsub.f32 %v1851, %v1870
        %v1900 = vsub.f32 %v1852, %v1872
        %v1901 = vsub.f32 %v1853, %v1874
        %v1902 = vsub.f32 %v1854, %v1876
        %v1903 = vsub.f32 %v1855, %v1878
        %v1904 = vsub.f32 %v1856, %v1880
        %v1905 = vsub.f32 %v1857, %v1882
        %v1906 = vsub.f32 %v1858, %v1884
        %v1907 = vsub.f32 %v1859, %v1886
        %v1908 = vsub.f32 %v1860, %v1888
        %v1909 = vsub.f32 %v1861, %v1890
        %v1910 = vsub.f32 %v1862, %v1892
        %v1911 = vsub.f32 %v1863, %v1894
        %v1912 = vsub.f32 %v1864, %v1896
        %v1913 = vmul.f32 %v1897, 1.442695
        %v1914 = vpow.pop %v1913
        %v1915 = vmul.f32 %v1898, 1.442695
        %v1916 = vpow.pop %v1915
        %v1917 = vmul.f32 %v1899, 1.442695
        %v1918 = vpow.pop %v1917
        %v1919 = vmul.f32 %v1900, 1.442695
        %v1920 = vpow.pop %v1919
        %v1921 = vmul.f32 %v1901, 1.442695
        %v1922 = vpow.pop %v1921
        %v1923 = vmul.f32 %v1902, 1.442695
        %v1924 = vpow.pop %v1923
        %v1925 = vmul.f32 %v1903, 1.442695
        %v1926 = vpow.pop %v1925
        %v1927 = vmul.f32 %v1904, 1.442695
        %v1928 = vpow.pop %v1927
        %v1929 = vmul.f32 %v1905, 1.442695
        %v1930 = vpow.pop %v1929
        %v1931 = vmul.f32 %v1906, 1.442695
        %v1932 = vpow.pop %v1931
        %v1933 = vmul.f32 %v1907, 1.442695
        %v1934 = vpow.pop %v1933
        %v1935 = vmul.f32 %v1908, 1.442695
        %v1936 = vpow.pop %v1935
        %v1937 = vmul.f32 %v1909, 1.442695
        %v1938 = vpow.pop %v1937
        %v1939 = vmul.f32 %v1910, 1.442695
        %v1940 = vpow.pop %v1939
        %v1941 = vmul.f32 %v1911, 1.442695
        %v1942 = vpow.pop %v1941
        %v1943 = vmul.f32 %v1912, 1.442695
        %v1944 = vpow.pop %v1943
        %1945 = vadd.xlane.f32.xlu0 %v1914
        %v1946 = vpop.xlane.xlu0 %1945
        %1947 = vadd.xlane.f32.xlu0 %v1916
        %v1948 = vpop.xlane.xlu0 %1947
        %1949 = vadd.xlane.f32.xlu0 %v1918
        %v1950 = vpop.xlane.xlu0 %1949
        %1951 = vadd.xlane.f32.xlu0 %v1920
        %v1952 = vpop.xlane.xlu0 %1951
        %1953 = vadd.xlane.f32.xlu0 %v1922
        %v1954 = vpop.xlane.xlu0 %1953
        %1955 = vadd.xlane.f32.xlu0 %v1924
        %v1956 = vpop.xlane.xlu0 %1955
        %1957 = vadd.xlane.f32.xlu0 %v1926
        %v1958 = vpop.xlane.xlu0 %1957
        %1959 = vadd.xlane.f32.xlu0 %v1928
        %v1960 = vpop.xlane.xlu0 %1959
        %1961 = vadd.xlane.f32.xlu0 %v1930
        %v1962 = vpop.xlane.xlu0 %1961
        %1963 = vadd.xlane.f32.xlu0 %v1932
        %v1964 = vpop.xlane.xlu0 %1963
        %1965 = vadd.xlane.f32.xlu0 %v1934
        %v1966 = vpop.xlane.xlu0 %1965
        %1967 = vadd.xlane.f32.xlu0 %v1936
        %v1968 = vpop.xlane.xlu0 %1967
        %1969 = vadd.xlane.f32.xlu0 %v1938
        %v1970 = vpop.xlane.xlu0 %1969
        %1971 = vadd.xlane.f32.xlu0 %v1940
        %v1972 = vpop.xlane.xlu0 %1971
        %1973 = vadd.xlane.f32.xlu0 %v1942
        %v1974 = vpop.xlane.xlu0 %1973
        %1975 = vadd.xlane.f32.xlu0 %v1944
        %v1976 = vpop.xlane.xlu0 %1975
        %v1977 = vrcp.pop %v1946
        %v1978 = vrcp.pop %v1948
        %v1979 = vrcp.pop %v1950
        %v1980 = vrcp.pop %v1952
        %v1981 = vrcp.pop %v1954
        %v1982 = vrcp.pop %v1956
        %v1983 = vrcp.pop %v1958
        %v1984 = vrcp.pop %v1960
        %v1985 = vrcp.pop %v1962
        %v1986 = vrcp.pop %v1964
        %v1987 = vrcp.pop %v1966
        %v1988 = vrcp.pop %v1968
        %v1989 = vrcp.pop %v1970
        %v1990 = vrcp.pop %v1972
        %v1991 = vrcp.pop %v1974
        %v1992 = vrcp.pop %v1976
        %v1993 = vmul.f32 %v1914, %v1977
        %v1994 = vmul.f32 %v1916, %v1978
        %v1995 = vmul.f32 %v1918, %v1979
        %v1996 = vmul.f32 %v1920, %v1980
        %v1997 = vmul.f32 %v1922, %v1981
        %v1998 = vmul.f32 %v1924, %v1982
        %v1999 = vmul.f32 %v1926, %v1983
        %v2000 = vmul.f32 %v1928, %v1984
        %v2001 = vmul.f32 %v1930, %v1985
        %v2002 = vmul.f32 %v1932, %v1986
        %v2003 = vmul.f32 %v1934, %v1987
        %v2004 = vmul.f32 %v1936, %v1988
        %v2005 = vmul.f32 %v1938, %v1989
        %v2006 = vmul.f32 %v1940, %v1990
        %v2007 = vmul.f32 %v1942, %v1991
        %v2008 = vmul.f32 %v1944, %v1992
        %v2009 = vpack.c.bf16 %v1994, %v1993
        %v2010 = vpack.c.bf16 %v1996, %v1995
        %v2011 = vpack.c.bf16 %v1998, %v1997
        %v2012 = vpack.c.bf16 %v2000, %v1999
        %v2013 = vpack.c.bf16 %v2002, %v2001
        %v2014 = vpack.c.bf16 %v2004, %v2003
        %v2015 = vpack.c.bf16 %v2006, %v2005
        %v2016 = vpack.c.bf16 %v2008, %v2007
        %2017 = vmatpush.bf16.xpose.msra.mxu0 %v2016
        %2018 = vmatpush.bf16.xpose.msra.mxu0 %v2015
        %2019 = vmatpush.bf16.xpose.msra.mxu0 %v2014
        %2020 = vmatpush.bf16.xpose.msra.mxu0 %v2013
        %2021 = vmatpush.bf16.xpose.msra.mxu0 %v2012
        %2022 = vmatpush.bf16.xpose.msra.mxu0 %v2011
        %2023 = vmatpush.bf16.xpose.msra.mxu0 %v2010
        %2024 = vmatpush.bf16.xpose.msra.mxu0 %v2009
        %2025 = vmatmul.bf16.gmra.mxu0 %v1739
        %v2026 = vpop.f32.mrf.mxu0
        %v2027 = vadd.f32 0.0, %v2026
        %v2028 = vpop.f32.mrf.mxu0
        %2029 = vdwg.mxu0
        %v2030 = vpack.c.bf16 %v1441, %v1148
        %v2031 = vpack.c.bf16 %v2027, %v1734
        %v2032 = vld [vmem:[%s5] sm:$0xf]
        %v2033 = vld [vmem:[%s5 + $0x4] sm:$0xf]
        %v2034 = vld [vmem:[%s5 + $0x8] sm:$0xf]
        %v2035 = vld [vmem:[%s5 + $0xc] sm:$0xf]
        %v2040 = vunpack.c.l.b16 %v2032
        %v2041 = vunpack.c.l.b16 %v2033
        %v2042 = vunpack.c.l.b16 %v2034
        %v2043 = vunpack.c.l.b16 %v2035
        %v2044 = vpack.c.b16 %v2041, %v2040
        %v2045 = vpack.c.b16 %v2043, %v2042
        %v2047 = vsel %vm783, %v2044, 0
        %v2050 = vsel %vm783, %v2045, 0
        %2052 = vmatpush.bf16.msra.mxu0 0
        %2053 = vmatpush.bf16.msra.mxu0 0
        %2054 = vmatpush.bf16.msra.mxu0 0
        %2055 = vmatpush.bf16.msra.mxu0 0
        %2056 = vmatpush.bf16.msra.mxu0 0
        %2057 = vmatpush.bf16.msra.mxu0 0
        %2058 = vmatpush.bf16.msra.mxu0 %v2031
        %2059 = vmatpush.bf16.msra.mxu0 %v2030
        %2060 = vmatmul.bf16.gmra.mxu0 %v2047
        %v2061 = vpop.f32.mrf.mxu0
        %v2062 = vadd.f32 0.0, %v2061
        %v2063 = vpop.f32.mrf.mxu0
        %v2064 = vadd.f32 0.0, %v2063
        %2065 = vmatmul.bf16.gmra.mxu0 %v2050
        %v2066 = vpop.f32.mrf.mxu0
        %v2067 = vadd.f32 0.0, %v2066
        %v2068 = vpop.f32.mrf.mxu0
        %v2069 = vadd.f32 0.0, %v2068
        %2070 = vdwg.mxu0
        %v2071 = vadd.f32 %v557, %v2062
        %v2072 = vadd.f32 %v558, %v2064
        %v2073 = vadd.f32 %v559, %v2067
        %v2074 = vadd.f32 %v560, %v2069
        %v2075 = vld [vmem:[%s6] sm:$0xff]
        %v2076 = vld [vmem:[%s6 + $0x8] sm:$0xff]
        %v2077 = vld [vmem:[%s6 + $0x10] sm:$0xff]
        %v2078 = vld [vmem:[%s6 + $0x18] sm:$0xff]
        %2080 = vset.pattern.permute.xlu0 0
        %2081 = vperm.xlu0 %2080, %v2075
        %v2082 = vpop.permute.xlu0 %2081
        %2085 = vset.pattern.permute.xlu0 0
        %2086 = vperm.xlu0 %2085, %v2076
        %v2087 = vpop.permute.xlu0 %2086
        %2090 = vset.pattern.permute.xlu0 0
        %2091 = vperm.xlu0 %2090, %v2077
        %v2092 = vpop.permute.xlu0 %2091
        %2095 = vset.pattern.permute.xlu0 0
        %2096 = vperm.xlu0 %2095, %v2078
        %v2097 = vpop.permute.xlu0 %2096
        %v2099 = vadd.f32 %v2071, %v2082
        %v2100 = vadd.f32 %v2072, %v2087
        %v2101 = vadd.f32 %v2073, %v2092
        %v2102 = vadd.f32 %v2074, %v2097
        %v2103 = vadd.f32 %v2099, %v2100
        %v2104 = vadd.f32 %v2103, %v2101
        %v2105 = vadd.f32 %v2104, %v2102
        %v2106 = vrot.slane %v2105, 4
        %v2107 = vadd.f32 %v2105, %v2106
        %v2108 = vrot.slane %v2107, 2
        %v2109 = vadd.f32 %v2107, %v2108
        %v2110 = vrot.slane %v2109, 1
        %v2111 = vadd.f32 %v2109, %v2110
        %v2112 = vmul.f32 %v2111, %v576
        %v2113 = vsub.f32 %v2099, %v2112
        %v2114 = vsub.f32 %v2100, %v2112
        %v2115 = vsub.f32 %v2101, %v2112
        %v2116 = vsub.f32 %v2102, %v2112
        %v2117 = vmul.f32 %v2113, %v2113
        %v2118 = vmul.f32 %v2114, %v2114
        %v2119 = vmul.f32 %v2115, %v2115
        %v2120 = vmul.f32 %v2116, %v2116
        %v2121 = vadd.f32 %v2117, %v2118
        %v2122 = vadd.f32 %v2121, %v2119
        %v2123 = vadd.f32 %v2122, %v2120
        %v2124 = vrot.slane %v2123, 4
        %v2125 = vadd.f32 %v2123, %v2124
        %v2126 = vrot.slane %v2125, 2
        %v2127 = vadd.f32 %v2125, %v2126
        %v2128 = vrot.slane %v2127, 1
        %v2129 = vadd.f32 %v2127, %v2128
        %v2130 = vmul.f32 %v2129, %v576
        %v2131 = vadd.f32 %v2130, 1e-05
        %v2132 = vrsqrt.pop %v2131
        %v2133 = vmul.f32 %v2132, %v2131
        %v2134 = vmul.f32 %v2133, %v2132
        %v2135 = vmul.f32 0.5, %v2134
        %v2136 = vsub.f32 1.5, %v2135
        %v2137 = vmul.f32 %v2132, %v2136
        %vm2138 = vweird.f32 %v2131
        %vm2139 = vweird.f32 %v2132
        %vm2140 = vmor %vm2138, %vm2139
        %v2141 = vsel %vm2140, %v2132, %v2137
        %v2142 = vmul.f32 %v2113, %v2141
        %v2143 = vmul.f32 %v2114, %v2141
        %v2144 = vmul.f32 %v2115, %v2141
        %v2145 = vmul.f32 %v2116, %v2141
        %v2146 = vld [vmem:[%s9] sm:$0xff]
        %v2147 = vld [vmem:[%s9 + $0x8] sm:$0xff]
        %v2148 = vld [vmem:[%s9 + $0x10] sm:$0xff]
        %v2149 = vld [vmem:[%s9 + $0x18] sm:$0xff]
        %2151 = vset.pattern.permute.xlu0 0
        %2152 = vperm.xlu0 %2151, %v2146
        %v2153 = vpop.permute.xlu0 %2152
        %2156 = vset.pattern.permute.xlu0 0
        %2157 = vperm.xlu0 %2156, %v2147
        %v2158 = vpop.permute.xlu0 %2157
        %2161 = vset.pattern.permute.xlu0 0
        %2162 = vperm.xlu0 %2161, %v2148
        %v2163 = vpop.permute.xlu0 %2162
        %2166 = vset.pattern.permute.xlu0 0
        %2167 = vperm.xlu0 %2166, %v2149
        %v2168 = vpop.permute.xlu0 %2167
        %v2170 = vmul.f32 %v2142, %v2153
        %v2171 = vmul.f32 %v2143, %v2158
        %v2172 = vmul.f32 %v2144, %v2163
        %v2173 = vmul.f32 %v2145, %v2168
        %v2174 = vld [vmem:[%s10] sm:$0xff]
        %v2175 = vld [vmem:[%s10 + $0x8] sm:$0xff]
        %v2176 = vld [vmem:[%s10 + $0x10] sm:$0xff]
        %v2177 = vld [vmem:[%s10 + $0x18] sm:$0xff]
        %2179 = vset.pattern.permute.xlu0 0
        %2180 = vperm.xlu0 %2179, %v2174
        %v2181 = vpop.permute.xlu0 %2180
        %2184 = vset.pattern.permute.xlu0 0
        %2185 = vperm.xlu0 %2184, %v2175
        %v2186 = vpop.permute.xlu0 %2185
        %2189 = vset.pattern.permute.xlu0 0
        %2190 = vperm.xlu0 %2189, %v2176
        %v2191 = vpop.permute.xlu0 %2190
        %2194 = vset.pattern.permute.xlu0 0
        %2195 = vperm.xlu0 %2194, %v2177
        %v2196 = vpop.permute.xlu0 %2195
        %v2198 = vadd.f32 %v2170, %v2181
        %v2199 = vadd.f32 %v2171, %v2186
        %v2200 = vadd.f32 %v2172, %v2191
        %v2201 = vadd.f32 %v2173, %v2196
        %v2202 = vld [vmem:[%s11] sm:$0xf]
        %v2203 = vld [vmem:[%s11 + $0x4] sm:$0xf]
        %v2204 = vld [vmem:[%s11 + $0x8] sm:$0xf]
        %v2205 = vld [vmem:[%s11 + $0xc] sm:$0xf]
        %v2206 = vld [vmem:[%s11 + $0x10] sm:$0xf]
        %v2207 = vld [vmem:[%s11 + $0x14] sm:$0xf]
        %v2208 = vld [vmem:[%s11 + $0x18] sm:$0xf]
        %v2209 = vld [vmem:[%s11 + $0x1c] sm:$0xf]
        %v2210 = vld [vmem:[%s11 + $0x20] sm:$0xf]
        %v2211 = vld [vmem:[%s11 + $0x24] sm:$0xf]
        %v2212 = vld [vmem:[%s11 + $0x28] sm:$0xf]
        %v2213 = vld [vmem:[%s11 + $0x2c] sm:$0xf]
        %v2214 = vld [vmem:[%s11 + $0x30] sm:$0xf]
        %v2215 = vld [vmem:[%s11 + $0x34] sm:$0xf]
        %v2216 = vld [vmem:[%s11 + $0x38] sm:$0xf]
        %v2217 = vld [vmem:[%s11 + $0x3c] sm:$0xf]
        %v2218 = vpack.c.bf16 %v2199, %v2198
        %v2219 = vpack.c.bf16 %v2201, %v2200
        %v2220 = vld [vmem:[%s12] sm:$0xff]
        %v2221 = vld [vmem:[%s12 + $0x8] sm:$0xff]
        %v2222 = vld [vmem:[%s12 + $0x10] sm:$0xff]
        %v2223 = vld [vmem:[%s12 + $0x18] sm:$0xff]
        %v2224 = vld [vmem:[%s12 + $0x20] sm:$0xff]
        %v2225 = vld [vmem:[%s12 + $0x28] sm:$0xff]
        %v2226 = vld [vmem:[%s12 + $0x30] sm:$0xff]
        %v2227 = vld [vmem:[%s12 + $0x38] sm:$0xff]
        %v2228 = vld [vmem:[%s12 + $0x40] sm:$0xff]
        %v2229 = vld [vmem:[%s12 + $0x48] sm:$0xff]
        %v2230 = vld [vmem:[%s12 + $0x50] sm:$0xff]
        %v2231 = vld [vmem:[%s12 + $0x58] sm:$0xff]
        %v2232 = vld [vmem:[%s12 + $0x60] sm:$0xff]
        %v2233 = vld [vmem:[%s12 + $0x68] sm:$0xff]
        %v2234 = vld [vmem:[%s12 + $0x70] sm:$0xff]
        %v2235 = vld [vmem:[%s12 + $0x78] sm:$0xff]
        %2237 = vset.pattern.permute.xlu0 0
        %2238 = vperm.xlu0 %2237, %v2220
        %v2239 = vpop.permute.xlu0 %2238
        %2242 = vset.pattern.permute.xlu0 0
        %2243 = vperm.xlu0 %2242, %v2221
        %v2244 = vpop.permute.xlu0 %2243
        %2247 = vset.pattern.permute.xlu0 0
        %2248 = vperm.xlu0 %2247, %v2222
        %v2249 = vpop.permute.xlu0 %2248
        %2252 = vset.pattern.permute.xlu0 0
        %2253 = vperm.xlu0 %2252, %v2223
        %v2254 = vpop.permute.xlu0 %2253
        %2257 = vset.pattern.permute.xlu0 0
        %2258 = vperm.xlu0 %2257, %v2224
        %v2259 = vpop.permute.xlu0 %2258
        %2262 = vset.pattern.permute.xlu0 0
        %2263 = vperm.xlu0 %2262, %v2225
        %v2264 = vpop.permute.xlu0 %2263
        %2267 = vset.pattern.permute.xlu0 0
        %2268 = vperm.xlu0 %2267, %v2226
        %v2269 = vpop.permute.xlu0 %2268
        %2272 = vset.pattern.permute.xlu0 0
        %2273 = vperm.xlu0 %2272, %v2227
        %v2274 = vpop.permute.xlu0 %2273
        %2277 = vset.pattern.permute.xlu0 0
        %2278 = vperm.xlu0 %2277, %v2228
        %v2279 = vpop.permute.xlu0 %2278
        %2282 = vset.pattern.permute.xlu0 0
        %2283 = vperm.xlu0 %2282, %v2229
        %v2284 = vpop.permute.xlu0 %2283
        %2287 = vset.pattern.permute.xlu0 0
        %2288 = vperm.xlu0 %2287, %v2230
        %v2289 = vpop.permute.xlu0 %2288
        %2292 = vset.pattern.permute.xlu0 0
        %2293 = vperm.xlu0 %2292, %v2231
        %v2294 = vpop.permute.xlu0 %2293
        %2297 = vset.pattern.permute.xlu0 0
        %2298 = vperm.xlu0 %2297, %v2232
        %v2299 = vpop.permute.xlu0 %2298
        %2302 = vset.pattern.permute.xlu0 0
        %2303 = vperm.xlu0 %2302, %v2233
        %v2304 = vpop.permute.xlu0 %2303
        %2307 = vset.pattern.permute.xlu0 0
        %2308 = vperm.xlu0 %2307, %v2234
        %v2309 = vpop.permute.xlu0 %2308
        %2312 = vset.pattern.permute.xlu0 0
        %2313 = vperm.xlu0 %2312, %v2235
        %v2314 = vpop.permute.xlu0 %2313
        %v2332 = vunpack.c.l.b16 %v2202
        %v2333 = vunpack.c.l.b16 %v2203
        %v2334 = vunpack.c.l.b16 %v2204
        %v2335 = vunpack.c.l.b16 %v2205
        %v2336 = vunpack.c.l.b16 %v2206
        %v2337 = vunpack.c.l.b16 %v2207
        %v2338 = vunpack.c.l.b16 %v2208
        %v2339 = vunpack.c.l.b16 %v2209
        %v2340 = vunpack.c.l.b16 %v2210
        %v2341 = vunpack.c.l.b16 %v2211
        %v2342 = vunpack.c.l.b16 %v2212
        %v2343 = vunpack.c.l.b16 %v2213
        %v2344 = vunpack.c.l.b16 %v2214
        %v2345 = vunpack.c.l.b16 %v2215
        %v2346 = vunpack.c.l.b16 %v2216
        %v2347 = vunpack.c.l.b16 %v2217
        %v2348 = vpack.c.b16 %v2333, %v2332
        %v2349 = vpack.c.b16 %v2335, %v2334
        %v2350 = vpack.c.b16 %v2337, %v2336
        %v2351 = vpack.c.b16 %v2339, %v2338
        %v2352 = vpack.c.b16 %v2341, %v2340
        %v2353 = vpack.c.b16 %v2343, %v2342
        %v2354 = vpack.c.b16 %v2345, %v2344
        %v2355 = vpack.c.b16 %v2347, %v2346
        %v2357 = vsel %vm783, %v2348, 0
        %v2360 = vsel %vm783, %v2349, 0
        %v2363 = vsel %vm783, %v2350, 0
        %v2366 = vsel %vm783, %v2351, 0
        %v2369 = vsel %vm783, %v2352, 0
        %v2372 = vsel %vm783, %v2353, 0
        %v2375 = vsel %vm783, %v2354, 0
        %v2378 = vsel %vm783, %v2355, 0
        %2380 = vmatpush.bf16.msra.mxu0 0
        %2381 = vmatpush.bf16.msra.mxu0 0
        %2382 = vmatpush.bf16.msra.mxu0 0
        %2383 = vmatpush.bf16.msra.mxu0 0
        %2384 = vmatpush.bf16.msra.mxu0 0
        %2385 = vmatpush.bf16.msra.mxu0 0
        %2386 = vmatpush.bf16.msra.mxu0 %v2219
        %2387 = vmatpush.bf16.msra.mxu0 %v2218
        %2388 = vmatmul.bf16.gmra.mxu0 %v2357
        %v2389 = vpop.f32.mrf.mxu0
        %v2390 = vadd.f32 %v2239, %v2389
        %v2391 = vpop.f32.mrf.mxu0
        %v2392 = vadd.f32 %v2244, %v2391
        %2393 = vmatmul.bf16.gmra.mxu0 %v2360
        %v2394 = vpop.f32.mrf.mxu0
        %v2395 = vadd.f32 %v2249, %v2394
        %v2396 = vpop.f32.mrf.mxu0
        %v2397 = vadd.f32 %v2254, %v2396
        %2398 = vmatmul.bf16.gmra.mxu0 %v2363
        %v2399 = vpop.f32.mrf.mxu0
        %v2400 = vadd.f32 %v2259, %v2399
        %v2401 = vpop.f32.mrf.mxu0
        %v2402 = vadd.f32 %v2264, %v2401
        %2403 = vmatmul.bf16.gmra.mxu0 %v2366
        %v2404 = vpop.f32.mrf.mxu0
        %v2405 = vadd.f32 %v2269, %v2404
        %v2406 = vpop.f32.mrf.mxu0
        %v2407 = vadd.f32 %v2274, %v2406
        %2408 = vmatmul.bf16.gmra.mxu0 %v2369
        %v2409 = vpop.f32.mrf.mxu0
        %v2410 = vadd.f32 %v2279, %v2409
        %v2411 = vpop.f32.mrf.mxu0
        %v2412 = vadd.f32 %v2284, %v2411
        %2413 = vmatmul.bf16.gmra.mxu0 %v2372
        %v2414 = vpop.f32.mrf.mxu0
        %v2415 = vadd.f32 %v2289, %v2414
        %v2416 = vpop.f32.mrf.mxu0
        %v2417 = vadd.f32 %v2294, %v2416
        %2418 = vmatmul.bf16.gmra.mxu0 %v2375
        %v2419 = vpop.f32.mrf.mxu0
        %v2420 = vadd.f32 %v2299, %v2419
        %v2421 = vpop.f32.mrf.mxu0
        %v2422 = vadd.f32 %v2304, %v2421
        %2423 = vmatmul.bf16.gmra.mxu0 %v2378
        %v2424 = vpop.f32.mrf.mxu0
        %v2425 = vadd.f32 %v2309, %v2424
        %v2426 = vpop.f32.mrf.mxu0
        %v2427 = vadd.f32 %v2314, %v2426
        %2428 = vdwg.mxu0
        %v2429 = vmul.f32 %v2390, 0.5
        %v2430 = vmul.f32 %v2392, 0.5
        %v2431 = vmul.f32 %v2395, 0.5
        %v2432 = vmul.f32 %v2397, 0.5
        %v2433 = vmul.f32 %v2400, 0.5
        %v2434 = vmul.f32 %v2402, 0.5
        %v2435 = vmul.f32 %v2405, 0.5
        %v2436 = vmul.f32 %v2407, 0.5
        %v2437 = vmul.f32 %v2410, 0.5
        %v2438 = vmul.f32 %v2412, 0.5
        %v2439 = vmul.f32 %v2415, 0.5
        %v2440 = vmul.f32 %v2417, 0.5
        %v2441 = vmul.f32 %v2420, 0.5
        %v2442 = vmul.f32 %v2422, 0.5
        %v2443 = vmul.f32 %v2425, 0.5
        %v2444 = vmul.f32 %v2427, 0.5
        %v2445 = vmul.f32 %v2390, 0.044715
        %v2446 = vmul.f32 %v2392, 0.044715
        %v2447 = vmul.f32 %v2395, 0.044715
        %v2448 = vmul.f32 %v2397, 0.044715
        %v2449 = vmul.f32 %v2400, 0.044715
        %v2450 = vmul.f32 %v2402, 0.044715
        %v2451 = vmul.f32 %v2405, 0.044715
        %v2452 = vmul.f32 %v2407, 0.044715
        %v2453 = vmul.f32 %v2410, 0.044715
        %v2454 = vmul.f32 %v2412, 0.044715
        %v2455 = vmul.f32 %v2415, 0.044715
        %v2456 = vmul.f32 %v2417, 0.044715
        %v2457 = vmul.f32 %v2420, 0.044715
        %v2458 = vmul.f32 %v2422, 0.044715
        %v2459 = vmul.f32 %v2425, 0.044715
        %v2460 = vmul.f32 %v2427, 0.044715
        %v2461 = vmul.f32 %v2445, %v2390
        %v2462 = vmul.f32 %v2446, %v2392
        %v2463 = vmul.f32 %v2447, %v2395
        %v2464 = vmul.f32 %v2448, %v2397
        %v2465 = vmul.f32 %v2449, %v2400
        %v2466 = vmul.f32 %v2450, %v2402
        %v2467 = vmul.f32 %v2451, %v2405
        %v2468 = vmul.f32 %v2452, %v2407
        %v2469 = vmul.f32 %v2453, %v2410
        %v2470 = vmul.f32 %v2454, %v2412
        %v2471 = vmul.f32 %v2455, %v2415
        %v2472 = vmul.f32 %v2456, %v2417
        %v2473 = vmul.f32 %v2457, %v2420
        %v2474 = vmul.f32 %v2458, %v2422
        %v2475 = vmul.f32 %v2459, %v2425
        %v2476 = vmul.f32 %v2460, %v2427
        %v2477 = vmul.f32 %v2461, %v2390
        %v2478 = vmul.f32 %v2462, %v2392
        %v2479 = vmul.f32 %v2463, %v2395
        %v2480 = vmul.f32 %v2464, %v2397
        %v2481 = vmul.f32 %v2465, %v2400
        %v2482 = vmul.f32 %v2466, %v2402
        %v2483 = vmul.f32 %v2467, %v2405
        %v2484 = vmul.f32 %v2468, %v2407
        %v2485 = vmul.f32 %v2469, %v2410
        %v2486 = vmul.f32 %v2470, %v2412
        %v2487 = vmul.f32 %v2471, %v2415
        %v2488 = vmul.f32 %v2472, %v2417
        %v2489 = vmul.f32 %v2473, %v2420
        %v2490 = vmul.f32 %v2474, %v2422
        %v2491 = vmul.f32 %v2475, %v2425
        %v2492 = vmul.f32 %v2476, %v2427
        %v2493 = vadd.f32 %v2390, %v2477
        %v2494 = vadd.f32 %v2392, %v2478
        %v2495 = vadd.f32 %v2395, %v2479
        %v2496 = vadd.f32 %v2397, %v2480
        %v2497 = vadd.f32 %v2400, %v2481
        %v2498 = vadd.f32 %v2402, %v2482
        %v2499 = vadd.f32 %v2405, %v2483
        %v2500 = vadd.f32 %v2407, %v2484
        %v2501 = vadd.f32 %v2410, %v2485
        %v2502 = vadd.f32 %v2412, %v2486
        %v2503 = vadd.f32 %v2415, %v2487
        %v2504 = vadd.f32 %v2417, %v2488
        %v2505 = vadd.f32 %v2420, %v2489
        %v2506 = vadd.f32 %v2422, %v2490
        %v2507 = vadd.f32 %v2425, %v2491
        %v2508 = vadd.f32 %v2427, %v2492
        %v2509 = vmul.f32 %v2493, 0.7978846
        %v2510 = vmul.f32 %v2494, 0.7978846
        %v2511 = vmul.f32 %v2495, 0.7978846
        %v2512 = vmul.f32 %v2496, 0.7978846
        %v2513 = vmul.f32 %v2497, 0.7978846
        %v2514 = vmul.f32 %v2498, 0.7978846
        %v2515 = vmul.f32 %v2499, 0.7978846
        %v2516 = vmul.f32 %v2500, 0.7978846
        %v2517 = vmul.f32 %v2501, 0.7978846
        %v2518 = vmul.f32 %v2502, 0.7978846
        %v2519 = vmul.f32 %v2503, 0.7978846
        %v2520 = vmul.f32 %v2504, 0.7978846
        %v2521 = vmul.f32 %v2505, 0.7978846
        %v2522 = vmul.f32 %v2506, 0.7978846
        %v2523 = vmul.f32 %v2507, 0.7978846
        %v2524 = vmul.f32 %v2508, 0.7978846
        %v2525 = vtanh.pop %v2509
        %v2526 = vtanh.pop %v2510
        %v2527 = vtanh.pop %v2511
        %v2528 = vtanh.pop %v2512
        %v2529 = vtanh.pop %v2513
        %v2530 = vtanh.pop %v2514
        %v2531 = vtanh.pop %v2515
        %v2532 = vtanh.pop %v2516
        %v2533 = vtanh.pop %v2517
        %v2534 = vtanh.pop %v2518
        %v2535 = vtanh.pop %v2519
        %v2536 = vtanh.pop %v2520
        %v2537 = vtanh.pop %v2521
        %v2538 = vtanh.pop %v2522
        %v2539 = vtanh.pop %v2523
        %v2540 = vtanh.pop %v2524
        %v2541 = vadd.f32 %v2525, 1.0
        %v2542 = vadd.f32 %v2526, 1.0
        %v2543 = vadd.f32 %v2527, 1.0
        %v2544 = vadd.f32 %v2528, 1.0
        %v2545 = vadd.f32 %v2529, 1.0
        %v2546 = vadd.f32 %v2530, 1.0
        %v2547 = vadd.f32 %v2531, 1.0
        %v2548 = vadd.f32 %v2532, 1.0
        %v2549 = vadd.f32 %v2533, 1.0
        %v2550 = vadd.f32 %v2534, 1.0
        %v2551 = vadd.f32 %v2535, 1.0
        %v2552 = vadd.f32 %v2536, 1.0
        %v2553 = vadd.f32 %v2537, 1.0
        %v2554 = vadd.f32 %v2538, 1.0
        %v2555 = vadd.f32 %v2539, 1.0
        %v2556 = vadd.f32 %v2540, 1.0
        %v2557 = vmul.f32 %v2429, %v2541
        %v2558 = vmul.f32 %v2430, %v2542
        %v2559 = vmul.f32 %v2431, %v2543
        %v2560 = vmul.f32 %v2432, %v2544
        %v2561 = vmul.f32 %v2433, %v2545
        %v2562 = vmul.f32 %v2434, %v2546
        %v2563 = vmul.f32 %v2435, %v2547
        %v2564 = vmul.f32 %v2436, %v2548
        %v2565 = vmul.f32 %v2437, %v2549
        %v2566 = vmul.f32 %v2438, %v2550
        %v2567 = vmul.f32 %v2439, %v2551
        %v2568 = vmul.f32 %v2440, %v2552
        %v2569 = vmul.f32 %v2441, %v2553
        %v2570 = vmul.f32 %v2442, %v2554
        %v2571 = vmul.f32 %v2443, %v2555
        %v2572 = vmul.f32 %v2444, %v2556
        %v2573 = vld [vmem:[%s13] sm:$0xf]
        %v2574 = vld [vmem:[%s13 + $0x4] sm:$0xf]
        %v2575 = vld [vmem:[%s13 + $0x8] sm:$0xf]
        %v2576 = vld [vmem:[%s13 + $0xc] sm:$0xf]
        %v2577 = vpack.c.bf16 %v2558, %v2557
        %v2578 = vpack.c.bf16 %v2560, %v2559
        %v2579 = vpack.c.bf16 %v2562, %v2561
        %v2580 = vpack.c.bf16 %v2564, %v2563
        %v2581 = vpack.c.bf16 %v2566, %v2565
        %v2582 = vpack.c.bf16 %v2568, %v2567
        %v2583 = vpack.c.bf16 %v2570, %v2569
        %v2584 = vpack.c.bf16 %v2572, %v2571
        %v2585 = vld [vmem:[%s14] sm:$0xff]
        %v2586 = vld [vmem:[%s14 + $0x8] sm:$0xff]
        %v2587 = vld [vmem:[%s14 + $0x10] sm:$0xff]
        %v2588 = vld [vmem:[%s14 + $0x18] sm:$0xff]
        %2590 = vset.pattern.permute.xlu0 0
        %2591 = vperm.xlu0 %2590, %v2585
        %v2592 = vpop.permute.xlu0 %2591
        %2595 = vset.pattern.permute.xlu0 0
        %2596 = vperm.xlu0 %2595, %v2586
        %v2597 = vpop.permute.xlu0 %2596
        %2600 = vset.pattern.permute.xlu0 0
        %2601 = vperm.xlu0 %2600, %v2587
        %v2602 = vpop.permute.xlu0 %2601
        %2605 = vset.pattern.permute.xlu0 0
        %2606 = vperm.xlu0 %2605, %v2588
        %v2607 = vpop.permute.xlu0 %2606
        %v2613 = vunpack.c.l.b16 %v2573
        %v2614 = vunpack.c.l.b16 %v2574
        %v2615 = vunpack.c.l.b16 %v2575
        %v2616 = vunpack.c.l.b16 %v2576
        %v2617 = vpack.c.b16 %v2614, %v2613
        %v2618 = vpack.c.b16 %v2616, %v2615
        %2621 = vmatpush.bf16.msra.mxu0 %v2584
        %2622 = vmatpush.bf16.msra.mxu0 %v2583
        %2623 = vmatpush.bf16.msra.mxu0 %v2582
        %2624 = vmatpush.bf16.msra.mxu0 %v2581
        %2625 = vmatpush.bf16.msra.mxu0 %v2580
        %2626 = vmatpush.bf16.msra.mxu0 %v2579
        %2627 = vmatpush.bf16.msra.mxu0 %v2578
        %2628 = vmatpush.bf16.msra.mxu0 %v2577
        %2629 = vmatmul.bf16.gmra.mxu0 %v2617
        %v2630 = vpop.f32.mrf.mxu0
        %v2631 = vadd.f32 %v2592, %v2630
        %v2632 = vpop.f32.mrf.mxu0
        %v2633 = vadd.f32 %v2597, %v2632
        %2634 = vmatmul.bf16.gmra.mxu0 %v2618
        %v2635 = vpop.f32.mrf.mxu0
        %v2636 = vadd.f32 %v2602, %v2635
        %v2637 = vpop.f32.mrf.mxu0
        %v2638 = vadd.f32 %v2607, %v2637
        %2639 = vdwg.mxu0
        %v2640 = vadd.f32 %v2099, %v2631
        %v2641 = vadd.f32 %v2100, %v2633
        %v2642 = vadd.f32 %v2101, %v2636
        %v2643 = vadd.f32 %v2102, %v2638
        %2644 = vst [vmem:[%s550] sm:$0xff] %v2640
        %2645 = vst [vmem:[%s550 + $0x8] sm:$0xff] %v2641
        %2646 = vst [vmem:[%s550 + $0x10] sm:$0xff] %v2642
        %2647 = vst [vmem:[%s550 + $0x18] sm:$0xff] %v2643
        %s2648 = sand.u32 %s359, 1
        %s2649 = sand.u32 %s359, 1
        %s2650 = smul.addr %s2649, 32
        %s2651 = scalar_lea.vmem [#allocation3], %s2650
        // Predicated region
        $region119: #{swin_stage_pallas.2} parent=113 // pred_check
          %p2652 = pneg %p369
        $region120: #{swin_stage_pallas.2} parent=113 // pred_check_branch
          %2654 = sbr.rel (%p2652) target = $region122
        $region121: #{swin_stage_pallas.2} parent=113 // pred_region
          %s2655 = smul.addr %s26, 8
          %s2656 = scalar_lea.vmem %s15, %s2655
          // Predicated region
          $region123: #{swin_stage_pallas.2} parent=121 // pred_check
            _
          $region124: #{swin_stage_pallas.2} parent=121 // pred_check_branch
            %2658 = sbr.rel (0) target = $region126
          $region125: #{swin_stage_pallas.2} parent=121 // pred_region
            // Predicated region
            $region127: #{swin_stage_pallas.2} parent=125 // pred_check
              _
            $region128: #{swin_stage_pallas.2} parent=125 // pred_check_branch
              %2660 = sbr.rel (0) target = $region130
            $region129: #{swin_stage_pallas.2} parent=125 // pred_region
              // Predicated region
              $region142: #{swin_stage_pallas.2} parent=129 // pred_check
                _
              $region143: #{swin_stage_pallas.2} parent=129 // pred_check_branch
                %2682 = sbr.rel (0) target = $region145
              $region144: #{swin_stage_pallas.2} parent=129 // pred_region
                loop: start=0, step=1, limit=1
                $region146: #{swin_stage_pallas.2} parent=144 // loop_pre_header
                  _
                $region147: #{swin_stage_pallas.2} parent=144 // loop_header
                  %s2684 = sphi 0, %s2688
                  %p2685 = scmp.ge.s32.totalorder %s2684, 1
                  %s2689 = sphi %s2651, %s2651
                  %s2690 = sphi %s2656, %s2656
                $region148: #{swin_stage_pallas.2} parent=144 // loop_header_branch
                  %2687 = sbr.rel (%p2685) target = $region152
                $region149: #{swin_stage_pallas.2} parent=144 // loop_body
                  %v2691 = vld [vmem:[%s2689] sm:$0xff]
                  %2692 = vst [vmem:[%s2690] sm:$0xff] %v2691
                  %v2693 = vld [vmem:[%s2689 + $0x8] sm:$0xff]
                  %2694 = vst [vmem:[%s2690 + $0x10] sm:$0xff] %v2693
                  %v2695 = vld [vmem:[%s2689 + $0x10] sm:$0xff]
                  %2696 = vst [vmem:[%s2690 + $0x20] sm:$0xff] %v2695
                  %v2697 = vld [vmem:[%s2689 + $0x18] sm:$0xff]
                  %2698 = vst [vmem:[%s2690 + $0x30] sm:$0xff] %v2697
                $region150: #{swin_stage_pallas.2} parent=144 // loop_footer
                  %s2688 = sadd.s32 1, %s2684
                $region151: #{swin_stage_pallas.2} parent=144 // loop_footer_branch
                  %2683 = sbr.rel target = $region147
                $region152: #{swin_stage_pallas.2} parent=144 // loop_exit
                  _
              $region145: #{swin_stage_pallas.2} parent=129 // pred_fallthru
                _
              // Predicated region
              $region153: #{swin_stage_pallas.2} parent=129 // pred_check
                _
              $region154: #{swin_stage_pallas.2} parent=129 // pred_check_branch
                %2700 = sbr.rel target = $region156
              $region155: #{swin_stage_pallas.2} parent=129 // pred_region
                _
              $region156: #{swin_stage_pallas.2} parent=129 // pred_fallthru
                _
            $region130: #{swin_stage_pallas.2} parent=125 // pred_fallthru
              _
            // Predicated region
            $region131: #{swin_stage_pallas.2} parent=125 // pred_check
              _
            $region132: #{swin_stage_pallas.2} parent=125 // pred_check_branch
              %2662 = sbr.rel target = $region134
            $region133: #{swin_stage_pallas.2} parent=125 // pred_region
              %s2664 = ssub.s32 256, 1
              loop: start=0, step=1, limit=1
              $region135: #{swin_stage_pallas.2} parent=133 // loop_pre_header
                _
              $region136: #{swin_stage_pallas.2} parent=133 // loop_header
                %s2666 = sphi 0, %s2670
                %p2667 = scmp.ge.s32.totalorder %s2666, 1
                %s2671 = sphi %s2651, %s2651
                %s2672 = sphi %s2656, %s2656
              $region137: #{swin_stage_pallas.2} parent=133 // loop_header_branch
                %2669 = sbr.rel (%p2667) target = $region141
              $region138: #{swin_stage_pallas.2} parent=133 // loop_body
                %v2673 = vld [vmem:[%s2671] sm:%s2664]
                %2674 = vst [vmem:[%s2672] sm:%s2664] %v2673
                %v2675 = vld [vmem:[%s2671 + $0x8] sm:%s2664]
                %2676 = vst [vmem:[%s2672 + $0x10] sm:%s2664] %v2675
                %v2677 = vld [vmem:[%s2671 + $0x10] sm:%s2664]
                %2678 = vst [vmem:[%s2672 + $0x20] sm:%s2664] %v2677
                %v2679 = vld [vmem:[%s2671 + $0x18] sm:%s2664]
                %2680 = vst [vmem:[%s2672 + $0x30] sm:%s2664] %v2679
              $region139: #{swin_stage_pallas.2} parent=133 // loop_footer
                %s2670 = sadd.s32 1, %s2666
              $region140: #{swin_stage_pallas.2} parent=133 // loop_footer_branch
                %2665 = sbr.rel target = $region136
              $region141: #{swin_stage_pallas.2} parent=133 // loop_exit
                _
            $region134: #{swin_stage_pallas.2} parent=125 // pred_fallthru
              _
          $region126: #{swin_stage_pallas.2} parent=121 // pred_fallthru
            _
          %2701 = vnop
        $region122: #{swin_stage_pallas.2} parent=113 // pred_fallthru
          _
      $region114: #{swin_stage_pallas.2} parent=5 // pred_fallthru
        _
      %p2702 = scmp.le.s32.totalorder 2, %s21
      // Predicated region
      $region157: #{swin_stage_pallas.2} parent=5 // pred_check
        %p2703 = pneg %p2702
      $region158: #{swin_stage_pallas.2} parent=5 // pred_check_branch
        %2705 = sbr.rel (%p2703) target = $region160
      $region159: #{swin_stage_pallas.2} parent=5 // pred_region
        %s2706 = ssub.s32 %s21, 2
        // Predicated region
        $region161: #{swin_stage_pallas.2} parent=159 // pred_check
          %p2707 = pneg %p375
        $region162: #{swin_stage_pallas.2} parent=159 // pred_check_branch
          %2709 = sbr.rel (%p2707) target = $region164
        $region163: #{swin_stage_pallas.2} parent=159 // pred_region
          %s2710 = sand.u32 %s360, 1
          %s2711 = sand.u32 %s360, 1
          %s2712 = smul.addr %s2711, 32
          %s2713 = scalar_lea.vmem [#allocation3], %s2712
        $region164: #{swin_stage_pallas.2} parent=159 // pred_fallthru
          _
      $region160: #{swin_stage_pallas.2} parent=5 // pred_fallthru
        _
    $region6: #{swin_stage_pallas.2} parent=1 // loop_footer
      %s25 = sadd.s32 1, %s21
    $region7: #{swin_stage_pallas.2} parent=1 // loop_footer_branch
      %20 = sbr.rel target = $region3
    $region8: #{swin_stage_pallas.2} parent=1 // loop_exit
      _

</llo_original>
